<compile_context>
chip_gen: v7x
topology: tpu7x:2x2x1
jax: 0.10.0
libtpu: 0.0.40
codegen_flags: <defaults>
</compile_context>

<pallas_src>
import numpy as np
import jax
import jax.numpy as jnp
from jax.experimental import pallas as pl
from jax.experimental.pallas import tpu as pltpu


# ----------------------------------------------------------------------------
# Static packing layouts (shared by init_params and the kernel factory).
# ----------------------------------------------------------------------------
def _align(n, a):
    return -(-n // a) * a


def _lstm_slab_layout(D, H):
    """Row offsets (16-row aligned, bf16 tiling) of the LSTM weights, all 8H wide."""
    F = 2 * H
    entries = [("wih0f", D), ("wih0b", D), ("whh0", F),
               ("wih1f", F), ("wih1b", F), ("whh1", F)]
    off, layout = 0, {}
    for name, rows in entries:
        layout[name] = (off, rows)
        off += _align(rows, 16)
    return layout, off


def _head_slab_layout(H):
    """Row offsets / shapes of the fused head matrices in one bf16 slab."""
    F = 2 * H
    width = _align(max(128, 3 * H), 128)
    entries = [("wa1", F, 64), ("wa2", 64, 1), ("wm1", F, 3 * H),
               ("wl2", F, H), ("wm3", F, 128), ("wm4", 128, 6)]
    off, layout = 0, {}
    for name, rows, cols in entries:
        layout[name] = (off, rows, cols)
        off += _align(rows, 16)
    return layout, off, width


def _vec_layout(H):
    """Lane offsets (128-aligned) of every bias / LayerNorm vector (f32 slab)."""
    F, G = 2 * H, 8 * H
    entries = [("b0f", G), ("b0b", G), ("b1f", G), ("b1b", G),
               ("ba1", 64), ("ga", 64), ("bea", 64), ("ba2", 1),
               ("bl1", F), ("gl1", F), ("bel1", F),
               ("br1", H), ("gr1", H), ("ber1", H),
               ("bl2", H), ("gl2", H), ("bel2", H),
               ("bm3", 128), ("bm4", 6)]
    off, layout = 0, {}
    for name, size in entries:
        layout[name] = (off, size)
        off += _align(size, 128)
    return layout, off


# ----------------------------------------------------------------------------
# Fused forward kernel.
# ----------------------------------------------------------------------------
def _make_fused_kernel(T, B, D, H):
    F, G = 2 * H, 8 * H
    slab_off, _ = _lstm_slab_layout(D, H)
    head_off, _, _ = _head_slab_layout(H)
    vec_off, _ = _vec_layout(H)

    def kernel(x_ref, lstm_w_ref, vecs_ref, head_ref, y_ref):
        f32, bf16 = jnp.float32, jnp.bfloat16

        def vec(name):
            off, size = vec_off[name]
            return vecs_ref[:, pl.ds(off, size)]               # (1, size) f32

        def wmat(name):
            off, rows = slab_off[name]
            return lstm_w_ref[pl.ds(off, rows), :]             # (rows, 8H) bf16

        def hmat(name):
            off, rows, cols = head_off[name]
            return head_ref[pl.ds(off, rows), pl.ds(0, cols)]  # (rows, cols) bf16

        def bdot(a, b):            # MXU matmul: bf16 x bf16 -> f32 accumulate
            return jnp.dot(a.astype(bf16), b, preferred_element_type=f32)

        def layernorm(v, gamma, beta, eps=1e-5):
            mu = jnp.mean(v, axis=-1, keepdims=True)
            var = jnp.mean(jnp.square(v - mu), axis=-1, keepdims=True)
            return (v - mu) * jax.lax.rsqrt(var + eps) * gamma + beta

        def bilstm_layer(xg_f, xg_b, whh):
            # Fused fwd+bwd recurrence.  xg_f/xg_b: (T*B, 8H) precomputed
            # x @ W_ih^T + b (own direction's gate lanes filled, other zero).
            # Gate lane layout: [i_f,i_b | f_f,f_b | o_f,o_b | g_f,g_b].
            h = jnp.zeros((B, F), f32)                         # [h_f | h_b]
            c = jnp.zeros((B, F), f32)                         # [c_f | c_b]
            hf = [None] * T
            hb = [None] * T
            for s in range(T):                                 # static unroll
                xg = (xg_f[s * B:(s + 1) * B, :]
                      + xg_b[(T - 1 - s) * B:(T - s) * B, :])
                gates = xg if s == 0 else xg + bdot(h, whh)    # h == 0 at s == 0
                sig = jax.nn.sigmoid(gates[:, :6 * H])         # i | f | o (both dirs)
                g = jnp.tanh(gates[:, 6 * H:])                 # g (both dirs)
                c = sig[:, 2 * H:4 * H] * c + sig[:, :2 * H] * g
                h = sig[:, 4 * H:6 * H] * jnp.tanh(c)
                hf[s] = h[:, :H]                               # fwd state is time s
                hb[T - 1 - s] = h[:, H:]                       # bwd state is time T-1-s
            return (jnp.concatenate(hf, axis=0),               # (T*B, H) each
                    jnp.concatenate(hb, axis=0))

        # ---- layer 0 (bidirectional): input projection hoisted out of the loop
        x = x_ref[...]                                         # (T*B, D) f32
        if D == 1:
            xg0f = x * wmat("wih0f").astype(f32) + vec("b0f")  # broadcast, no K=1 dot
            xg0b = x * wmat("wih0b").astype(f32) + vec("b0b")
        else:
            xg0f = bdot(x, wmat("wih0f")) + vec("b0f")
            xg0b = bdot(x, wmat("wih0b")) + vec("b0b")
        h0f, h0b = bilstm_layer(xg0f, xg0b, wmat("whh0"))
        x1 = jnp.concatenate([h0f, h0b], axis=-1)              # (T*B, 2H)

        # ---- layer 1 (bidirectional); inter-layer dropout = identity (inference)
        xg1f = bdot(x1, wmat("wih1f")) + vec("b1f")
        xg1b = bdot(x1, wmat("wih1b")) + vec("b1b")
        h1f, h1b = bilstm_layer(xg1f, xg1b, wmat("whh1"))
        outs = jnp.concatenate([h1f, h1b], axis=-1)            # (T*B, 2H)

        # ---- attention: Linear -> LayerNorm -> Tanh -> (Dropout=id) -> Linear
        #      -> Softmax over T (per batch element) -> weighted sum.
        a = jnp.tanh(layernorm(bdot(outs, hmat("wa1")) + vec("ba1"),
                               vec("ga"), vec("bea")))         # (T*B, 64)
        s = bdot(a, hmat("wa2")) + vec("ba2")                  # (T*B, 1)
        s3 = s.reshape(T, B, 1)                                # leading-dim split only
        m = jnp.max(s3, axis=0, keepdims=True)                 # (1, B, 1)
        e = jnp.exp(s3 - m)                                    # one exp over all T
        inv = pl.reciprocal(jnp.sum(e, axis=0, keepdims=True), approx=True)
        w3 = e * inv                                           # (T, B, 1) softmax
        ctx = jnp.sum(w3 * outs.reshape(T, B, F), axis=0)      # (B, 2H)

        # ---- fused location / release heads
        m1 = bdot(ctx, hmat("wm1"))                            # (B, 2H+H) = [l1 | r1]
        l1 = jnp.maximum(layernorm(m1[:, :F] + vec("bl1"),
                                   vec("gl1"), vec("bel1")), 0.0)
        r1 = jnp.maximum(layernorm(m1[:, F:] + vec("br1"),
                                   vec("gr1"), vec("ber1")), 0.0)
        l2 = jnp.maximum(layernorm(bdot(l1, hmat("wl2")) + vec("bl2"),
                                   vec("gl2"), vec("bel2")), 0.0)
        z3 = jnp.maximum(bdot(jnp.concatenate([l2, r1], axis=-1), hmat("wm3"))
                         + vec("bm3"), 0.0)                    # (B, 128) = [l3 | r2]
        y_ref[...] = bdot(z3, hmat("wm4")) + vec("bm4")        # (B, 6)  = [loc | rel]

    return kernel


# ----------------------------------------------------------------------------
# Parameter init (PyTorch-style uniform fans; LayerNorm = 1/0), packed layout.
# ----------------------------------------------------------------------------
def init_params(key, input_dim=1, hidden_dim=32):
    H, D = hidden_dim, input_dim
    F, G = 2 * H, 8 * H
    keys = iter(jax.random.split(key, 64))

    def unif(shape, scale):
        return np.asarray(jax.random.uniform(next(keys), shape, jnp.float32,
                                             -scale, scale))

    # PyTorch gate row blocks (i,f,g,o) -> column order (i,f,o,g) after transpose.
    perm = np.concatenate([np.arange(0, H), np.arange(H, 2 * H),
                           np.arange(3 * H, 4 * H), np.arange(2 * H, 3 * H)])

    def lstm_dir(in_dim):
        s = 1.0 / float(np.sqrt(H))
        w_ih = unif((4 * H, in_dim), s).T[:, perm]             # (in, 4H) (i,f,o,g)
        w_hh = unif((4 * H, H), s).T[:, perm]                  # (H, 4H)
        b = (unif((4 * H,), s) + unif((4 * H,), s))[perm]      # b_ih + b_hh
        return w_ih, w_hh, b

    def embed_cols(mat, d):
        """Scatter an (rows, 4H) block (cols i,f,o,g) into the fused (rows, 8H)
        layout [i_f,i_b | f_f,f_b | o_f,o_b | g_f,g_b]; d=0 fwd, d=1 bwd lanes."""
        out = np.zeros((mat.shape[0], G), np.float32)
        for k in range(4):
            out[:, (2 * k + d) * H:(2 * k + d + 1) * H] = mat[:, k * H:(k + 1) * H]
        return out

    def linear(in_f, out_f):
        s = 1.0 / float(np.sqrt(in_f))
        return unif((out_f, in_f), s).T, unif((out_f,), s).reshape(1, out_f)

    def ln(dim):
        return np.ones((1, dim), np.float32), np.zeros((1, dim), np.float32)

    slab_off, slab_rows = _lstm_slab_layout(D, H)
    head_off, head_rows, head_width = _head_slab_layout(H)
    vec_off, vec_lanes = _vec_layout(H)
    lstm_slab = np.zeros((slab_rows, G), np.float32)
    head_slab = np.zeros((head_rows, head_width), np.float32)
    vecs = np.zeros((1, vec_lanes), np.float32)

    def put_lstm(name, m):
        off, rows = slab_off[name]
        lstm_slab[off:off + rows, :] = m

    def put_head(name, m):
        off, rows, cols = head_off[name]
        head_slab[off:off + rows, :cols] = m

    def put_vec(name, v):
        off, size = vec_off[name]
        vecs[:, off:off + size] = np.asarray(v).reshape(1, size)

    # ---- LSTM layers (fwd + bwd fused / block-diagonal packing)
    for layer, in_dim in ((0, D), (1, F)):
        wih_f, whh_f, b_f = lstm_dir(in_dim)
        wih_b, whh_b, b_b = lstm_dir(in_dim)
        put_lstm(f"wih{layer}f", embed_cols(wih_f, 0))
        put_lstm(f"wih{layer}b", embed_cols(wih_b, 1))
        whh = np.zeros((F, G), np.float32)
        whh[:H, :] = embed_cols(whh_f, 0)                      # h_f -> fwd gate lanes
        whh[H:, :] = embed_cols(whh_b, 1)                      # h_b -> bwd gate lanes
        put_lstm(f"whh{layer}", whh)
        put_vec(f"b{layer}f", embed_cols(b_f.reshape(1, 4 * H), 0))
        put_vec(f"b{layer}b", embed_cols(b_b.reshape(1, 4 * H), 1))

    # ---- attention head
    wa1, ba1 = linear(F, 64); ga, bea = ln(64)
    wa2, ba2 = linear(64, 1)
    # ---- location net
    wl1, bl1 = linear(F, F); gl1, bel1 = ln(F)
    wl2, bl2 = linear(F, H); gl2, bel2 = ln(H)
    wl3, bl3 = linear(H, 64)
    wl4, bl4 = linear(64, 2)
    # ---- release net
    wr1, br1 = linear(F, H); gr1, ber1 = ln(H)
    wr2, br2 = linear(H, 64)
    wr3, br3 = linear(64, 4)

    put_head("wa1", wa1)
    put_head("wa2", wa2)
    put_head("wm1", np.concatenate([wl1, wr1], axis=1))        # (2H, 3H)
    put_head("wl2", wl2)
    wm3 = np.zeros((F, 128), np.float32)                       # blockdiag(wl3, wr2)
    wm3[:H, :64] = wl3
    wm3[H:, 64:] = wr2
    put_head("wm3", wm3)
    wm4 = np.zeros((128, 6), np.float32)                       # blockdiag(wl4, wr3)
    wm4[:64, :2] = wl4
    wm4[64:, 2:] = wr3
    put_head("wm4", wm4)

    for name, v in [("ba1", ba1), ("ga", ga), ("bea", bea), ("ba2", ba2),
                    ("bl1", bl1), ("gl1", gl1), ("bel1", bel1),
                    ("br1", br1), ("gr1", gr1), ("ber1", ber1),
                    ("bl2", bl2), ("gl2", gl2), ("bel2", bel2),
                    ("bm3", np.concatenate([bl3, br2], axis=1)),
                    ("bm4", np.concatenate([bl4, br3], axis=1))]:
        put_vec(name, v)

    return {"lstm_w": jnp.asarray(lstm_slab, jnp.bfloat16),
            "head_w": jnp.asarray(head_slab, jnp.bfloat16),
            "vecs": jnp.asarray(vecs, jnp.float32)}


# ----------------------------------------------------------------------------
# Forward pass: a single pallas_call (plus one trivial input transpose/reshape).
# ----------------------------------------------------------------------------
@jax.jit
def specialized_model_forward(x, params):
    # x: (B, input_dim, T)  -- the PyTorch NCL layout fed to the original module.
    B, D, T = x.shape
    H = params["lstm_w"].shape[1] // 8
    x_flat = jnp.transpose(x, (2, 0, 1)).reshape(T * B, D).astype(jnp.float32)
    kernel = _make_fused_kernel(T, B, D, H)
    vmem = pl.BlockSpec(memory_space=pltpu.MemorySpace.VMEM)   # whole-array blocks
    return pl.pallas_call(
        kernel,
        out_shape=jax.ShapeDtypeStruct((B, 6), jnp.float32),
        in_specs=[vmem, vmem, vmem, vmem],
        out_specs=vmem,
    )(x_flat, params["lstm_w"], params["vecs"], params["head_w"])


if __name__ == "__main__":
    # B=8 fills the vreg sublanes / MXU rows far better than B=2 (biggest
    # throughput lever per review); T=8 steps, H=32 hidden, input_dim=1.
    B, input_dim, T, H = 8, 1, 8, 32
    key = jax.random.PRNGKey(0)
    kx, kp = jax.random.split(key)
    x = jax.random.normal(kx, (B, input_dim, T), jnp.float32)
    params = init_params(kp, input_dim=input_dim, hidden_dim=H)

    y = specialized_model_forward(x, params)
    y = jax.block_until_ready(y)
    assert y.shape == (B, 6) and y.dtype == jnp.float32
    assert bool(jnp.all(jnp.isfinite(y)))
    print("KERNEL_OK")
</pallas_src>

<mosaic_0001>
module attributes {stable_mosaic.version = 11 : i64} {
  func.func @kernel(%arg0: memref<64x1xf32, #tpu.memory_space<vmem>>, %arg1: memref<288x256xbf16, #tpu.memory_space<vmem>>, %arg2: memref<1x2944xf32, #tpu.memory_space<vmem>>, %arg3: memref<448x128xbf16, #tpu.memory_space<vmem>>, %arg4: memref<8x6xf32, #tpu.memory_space<vmem>>) attributes {dimension_semantics = [], scalar_prefetch = 0 : i64, scratch_operands = 0 : i64, tpu.core_type = #tpu.core_type<tc>} {
    %c0 = arith.constant 0 : index
    %c0_0 = arith.constant 0 : index
    %0 = vector.load %arg0[%c0, %c0_0] : memref<64x1xf32, #tpu.memory_space<vmem>>, vector<64x1xf32>
    %c0_1 = arith.constant 0 : index
    %c0_2 = arith.constant 0 : index
    %1 = vector.load %arg1[%c0_1, %c0_2] : memref<288x256xbf16, #tpu.memory_space<vmem>>, vector<1x256xbf16>
    %2 = arith.extf %1 : vector<1x256xbf16> to vector<1x256xf32>
    %3 = vector.broadcast %0 : vector<64x1xf32> to vector<64x256xf32>
    %4 = vector.broadcast %2 : vector<1x256xf32> to vector<64x256xf32>
    %5 = arith.mulf %3, %4 : vector<64x256xf32>
    %c0_3 = arith.constant 0 : index
    %c0_4 = arith.constant 0 : index
    %6 = vector.load %arg2[%c0_3, %c0_4] : memref<1x2944xf32, #tpu.memory_space<vmem>>, vector<1x256xf32>
    %7 = vector.broadcast %6 : vector<1x256xf32> to vector<64x256xf32>
    %8 = arith.addf %5, %7 : vector<64x256xf32>
    %c16 = arith.constant 16 : index
    %c0_5 = arith.constant 0 : index
    %9 = vector.load %arg1[%c16, %c0_5] : memref<288x256xbf16, #tpu.memory_space<vmem>>, vector<1x256xbf16>
    %10 = arith.extf %9 : vector<1x256xbf16> to vector<1x256xf32>
    %11 = vector.broadcast %0 : vector<64x1xf32> to vector<64x256xf32>
    %12 = vector.broadcast %10 : vector<1x256xf32> to vector<64x256xf32>
    %13 = arith.mulf %11, %12 : vector<64x256xf32>
    %c0_6 = arith.constant 0 : index
    %c256 = arith.constant 256 : index
    %14 = vector.load %arg2[%c0_6, %c256] : memref<1x2944xf32, #tpu.memory_space<vmem>>, vector<1x256xf32>
    %15 = vector.broadcast %14 : vector<1x256xf32> to vector<64x256xf32>
    %16 = arith.addf %13, %15 : vector<64x256xf32>
    %c32 = arith.constant 32 : index
    %c0_7 = arith.constant 0 : index
    %17 = vector.load %arg1[%c32, %c0_7] : memref<288x256xbf16, #tpu.memory_space<vmem>>, vector<64x256xbf16>
    %cst = arith.constant 0.000000e+00 : f32
    %18 = vector.broadcast %cst : f32 to vector<8x64xf32>
    %19 = vector.extract_strided_slice %8 {offsets = [0, 0], sizes = [8, 256], strides = [1, 1]} : vector<64x256xf32> to vector<8x256xf32>
    %20 = vector.extract_strided_slice %16 {offsets = [56, 0], sizes = [8, 256], strides = [1, 1]} : vector<64x256xf32> to vector<8x256xf32>
    %21 = arith.addf %19, %20 : vector<8x256xf32>
    %22 = vector.extract_strided_slice %21 {offsets = [0, 0], sizes = [8, 192], strides = [1, 1]} : vector<8x256xf32> to vector<8x192xf32>
    %23 = arith.negf %22 : vector<8x192xf32>
    %24 = math.exp %23 : vector<8x192xf32>
    %cst_8 = arith.constant 1.000000e+00 : f32
    %25 = vector.broadcast %cst_8 : f32 to vector<8x192xf32>
    %26 = arith.addf %25, %24 : vector<8x192xf32>
    %27 = arith.divf %25, %26 : vector<8x192xf32>
    %28 = vector.extract_strided_slice %21 {offsets = [0, 192], sizes = [8, 64], strides = [1, 1]} : vector<8x256xf32> to vector<8x64xf32>
    %29 = math.tanh %28 : vector<8x64xf32>
    %30 = vector.extract_strided_slice %27 {offsets = [0, 64], sizes = [8, 64], strides = [1, 1]} : vector<8x192xf32> to vector<8x64xf32>
    %31 = arith.mulf %30, %18 : vector<8x64xf32>
    %32 = vector.extract_strided_slice %27 {offsets = [0, 0], sizes = [8, 64], strides = [1, 1]} : vector<8x192xf32> to vector<8x64xf32>
    %33 = arith.mulf %32, %29 : vector<8x64xf32>
    %34 = arith.addf %31, %33 : vector<8x64xf32>
    %35 = vector.extract_strided_slice %27 {offsets = [0, 128], sizes = [8, 64], strides = [1, 1]} : vector<8x192xf32> to vector<8x64xf32>
    %36 = math.tanh %34 : vector<8x64xf32>
    %37 = arith.mulf %35, %36 : vector<8x64xf32>
    %38 = vector.extract_strided_slice %37 {offsets = [0, 0], sizes = [8, 32], strides = [1, 1]} : vector<8x64xf32> to vector<8x32xf32>
    %39 = vector.extract_strided_slice %37 {offsets = [0, 32], sizes = [8, 32], strides = [1, 1]} : vector<8x64xf32> to vector<8x32xf32>
    %40 = vector.extract_strided_slice %8 {offsets = [8, 0], sizes = [8, 256], strides = [1, 1]} : vector<64x256xf32> to vector<8x256xf32>
    %41 = vector.extract_strided_slice %16 {offsets = [48, 0], sizes = [8, 256], strides = [1, 1]} : vector<64x256xf32> to vector<8x256xf32>
    %42 = arith.addf %40, %41 : vector<8x256xf32>
    %43 = arith.truncf %37 : vector<8x64xf32> to vector<8x64xbf16>
    %cst_9 = arith.constant dense<0.000000e+00> : vector<8x256xf32>
    %44 = tpu.matmul %43, %17, %cst_9 {dimension_numbers = #tpu.dot_dimension_numbers<[1], [0], [0], [1], [0, 0, 1, 1], [], []>} : vector<8x64xbf16>, vector<64x256xbf16>, vector<8x256xf32> -> vector<8x256xf32>
    %45 = arith.addf %42, %44 : vector<8x256xf32>
    %46 = vector.extract_strided_slice %45 {offsets = [0, 0], sizes = [8, 192], strides = [1, 1]} : vector<8x256xf32> to vector<8x192xf32>
    %47 = arith.negf %46 : vector<8x192xf32>
    %48 = math.exp %47 : vector<8x192xf32>
    %cst_10 = arith.constant 1.000000e+00 : f32
    %49 = vector.broadcast %cst_10 : f32 to vector<8x192xf32>
    %50 = arith.addf %49, %48 : vector<8x192xf32>
    %51 = arith.divf %49, %50 : vector<8x192xf32>
    %52 = vector.extract_strided_slice %45 {offsets = [0, 192], sizes = [8, 64], strides = [1, 1]} : vector<8x256xf32> to vector<8x64xf32>
    %53 = math.tanh %52 : vector<8x64xf32>
    %54 = vector.extract_strided_slice %51 {offsets = [0, 64], sizes = [8, 64], strides = [1, 1]} : vector<8x192xf32> to vector<8x64xf32>
    %55 = arith.mulf %54, %34 : vector<8x64xf32>
    %56 = vector.extract_strided_slice %51 {offsets = [0, 0], sizes = [8, 64], strides = [1, 1]} : vector<8x192xf32> to vector<8x64xf32>
    %57 = arith.mulf %56, %53 : vector<8x64xf32>
    %58 = arith.addf %55, %57 : vector<8x64xf32>
    %59 = vector.extract_strided_slice %51 {offsets = [0, 128], sizes = [8, 64], strides = [1, 1]} : vector<8x192xf32> to vector<8x64xf32>
    %60 = math.tanh %58 : vector<8x64xf32>
    %61 = arith.mulf %59, %60 : vector<8x64xf32>
    %62 = vector.extract_strided_slice %61 {offsets = [0, 0], sizes = [8, 32], strides = [1, 1]} : vector<8x64xf32> to vector<8x32xf32>
    %63 = vector.extract_strided_slice %61 {offsets = [0, 32], sizes = [8, 32], strides = [1, 1]} : vector<8x64xf32> to vector<8x32xf32>
    %64 = vector.extract_strided_slice %8 {offsets = [16, 0], sizes = [8, 256], strides = [1, 1]} : vector<64x256xf32> to vector<8x256xf32>
    %65 = vector.extract_strided_slice %16 {offsets = [40, 0], sizes = [8, 256], strides = [1, 1]} : vector<64x256xf32> to vector<8x256xf32>
    %66 = arith.addf %64, %65 : vector<8x256xf32>
    %67 = arith.truncf %61 : vector<8x64xf32> to vector<8x64xbf16>
    %cst_11 = arith.constant dense<0.000000e+00> : vector<8x256xf32>
    %68 = tpu.matmul %67, %17, %cst_11 {dimension_numbers = #tpu.dot_dimension_numbers<[1], [0], [0], [1], [0, 0, 1, 1], [], []>} : vector<8x64xbf16>, vector<64x256xbf16>, vector<8x256xf32> -> vector<8x256xf32>
    %69 = arith.addf %66, %68 : vector<8x256xf32>
    %70 = vector.extract_strided_slice %69 {offsets = [0, 0], sizes = [8, 192], strides = [1, 1]} : vector<8x256xf32> to vector<8x192xf32>
    %71 = arith.negf %70 : vector<8x192xf32>
    %72 = math.exp %71 : vector<8x192xf32>
    %cst_12 = arith.constant 1.000000e+00 : f32
    %73 = vector.broadcast %cst_12 : f32 to vector<8x192xf32>
    %74 = arith.addf %73, %72 : vector<8x192xf32>
    %75 = arith.divf %73, %74 : vector<8x192xf32>
    %76 = vector.extract_strided_slice %69 {offsets = [0, 192], sizes = [8, 64], strides = [1, 1]} : vector<8x256xf32> to vector<8x64xf32>
    %77 = math.tanh %76 : vector<8x64xf32>
    %78 = vector.extract_strided_slice %75 {offsets = [0, 64], sizes = [8, 64], strides = [1, 1]} : vector<8x192xf32> to vector<8x64xf32>
    %79 = arith.mulf %78, %58 : vector<8x64xf32>
    %80 = vector.extract_strided_slice %75 {offsets = [0, 0], sizes = [8, 64], strides = [1, 1]} : vector<8x192xf32> to vector<8x64xf32>
    %81 = arith.mulf %80, %77 : vector<8x64xf32>
    %82 = arith.addf %79, %81 : vector<8x64xf32>
    %83 = vector.extract_strided_slice %75 {offsets = [0, 128], sizes = [8, 64], strides = [1, 1]} : vector<8x192xf32> to vector<8x64xf32>
    %84 = math.tanh %82 : vector<8x64xf32>
    %85 = arith.mulf %83, %84 : vector<8x64xf32>
    %86 = vector.extract_strided_slice %85 {offsets = [0, 0], sizes = [8, 32], strides = [1, 1]} : vector<8x64xf32> to vector<8x32xf32>
    %87 = vector.extract_strided_slice %85 {offsets = [0, 32], sizes = [8, 32], strides = [1, 1]} : vector<8x64xf32> to vector<8x32xf32>
    %88 = vector.extract_strided_slice %8 {offsets = [24, 0], sizes = [8, 256], strides = [1, 1]} : vector<64x256xf32> to vector<8x256xf32>
    %89 = vector.extract_strided_slice %16 {offsets = [32, 0], sizes = [8, 256], strides = [1, 1]} : vector<64x256xf32> to vector<8x256xf32>
    %90 = arith.addf %88, %89 : vector<8x256xf32>
    %91 = arith.truncf %85 : vector<8x64xf32> to vector<8x64xbf16>
    %cst_13 = arith.constant dense<0.000000e+00> : vector<8x256xf32>
    %92 = tpu.matmul %91, %17, %cst_13 {dimension_numbers = #tpu.dot_dimension_numbers<[1], [0], [0], [1], [0, 0, 1, 1], [], []>} : vector<8x64xbf16>, vector<64x256xbf16>, vector<8x256xf32> -> vector<8x256xf32>
    %93 = arith.addf %90, %92 : vector<8x256xf32>
    %94 = vector.extract_strided_slice %93 {offsets = [0, 0], sizes = [8, 192], strides = [1, 1]} : vector<8x256xf32> to vector<8x192xf32>
    %95 = arith.negf %94 : vector<8x192xf32>
    %96 = math.exp %95 : vector<8x192xf32>
    %cst_14 = arith.constant 1.000000e+00 : f32
    %97 = vector.broadcast %cst_14 : f32 to vector<8x192xf32>
    %98 = arith.addf %97, %96 : vector<8x192xf32>
    %99 = arith.divf %97, %98 : vector<8x192xf32>
    %100 = vector.extract_strided_slice %93 {offsets = [0, 192], sizes = [8, 64], strides = [1, 1]} : vector<8x256xf32> to vector<8x64xf32>
    %101 = math.tanh %100 : vector<8x64xf32>
    %102 = vector.extract_strided_slice %99 {offsets = [0, 64], sizes = [8, 64], strides = [1, 1]} : vector<8x192xf32> to vector<8x64xf32>
    %103 = arith.mulf %102, %82 : vector<8x64xf32>
    %104 = vector.extract_strided_slice %99 {offsets = [0, 0], sizes = [8, 64], strides = [1, 1]} : vector<8x192xf32> to vector<8x64xf32>
    %105 = arith.mulf %104, %101 : vector<8x64xf32>
    %106 = arith.addf %103, %105 : vector<8x64xf32>
    %107 = vector.extract_strided_slice %99 {offsets = [0, 128], sizes = [8, 64], strides = [1, 1]} : vector<8x192xf32> to vector<8x64xf32>
    %108 = math.tanh %106 : vector<8x64xf32>
    %109 = arith.mulf %107, %108 : vector<8x64xf32>
    %110 = vector.extract_strided_slice %109 {offsets = [0, 0], sizes = [8, 32], strides = [1, 1]} : vector<8x64xf32> to vector<8x32xf32>
    %111 = vector.extract_strided_slice %109 {offsets = [0, 32], sizes = [8, 32], strides = [1, 1]} : vector<8x64xf32> to vector<8x32xf32>
    %112 = vector.extract_strided_slice %8 {offsets = [32, 0], sizes = [8, 256], strides = [1, 1]} : vector<64x256xf32> to vector<8x256xf32>
    %113 = vector.extract_strided_slice %16 {offsets = [24, 0], sizes = [8, 256], strides = [1, 1]} : vector<64x256xf32> to vector<8x256xf32>
    %114 = arith.addf %112, %113 : vector<8x256xf32>
    %115 = arith.truncf %109 : vector<8x64xf32> to vector<8x64xbf16>
    %cst_15 = arith.constant dense<0.000000e+00> : vector<8x256xf32>
    %116 = tpu.matmul %115, %17, %cst_15 {dimension_numbers = #tpu.dot_dimension_numbers<[1], [0], [0], [1], [0, 0, 1, 1], [], []>} : vector<8x64xbf16>, vector<64x256xbf16>, vector<8x256xf32> -> vector<8x256xf32>
    %117 = arith.addf %114, %116 : vector<8x256xf32>
    %118 = vector.extract_strided_slice %117 {offsets = [0, 0], sizes = [8, 192], strides = [1, 1]} : vector<8x256xf32> to vector<8x192xf32>
    %119 = arith.negf %118 : vector<8x192xf32>
    %120 = math.exp %119 : vector<8x192xf32>
    %cst_16 = arith.constant 1.000000e+00 : f32
    %121 = vector.broadcast %cst_16 : f32 to vector<8x192xf32>
    %122 = arith.addf %121, %120 : vector<8x192xf32>
    %123 = arith.divf %121, %122 : vector<8x192xf32>
    %124 = vector.extract_strided_slice %117 {offsets = [0, 192], sizes = [8, 64], strides = [1, 1]} : vector<8x256xf32> to vector<8x64xf32>
    %125 = math.tanh %124 : vector<8x64xf32>
    %126 = vector.extract_strided_slice %123 {offsets = [0, 64], sizes = [8, 64], strides = [1, 1]} : vector<8x192xf32> to vector<8x64xf32>
    %127 = arith.mulf %126, %106 : vector<8x64xf32>
    %128 = vector.extract_strided_slice %123 {offsets = [0, 0], sizes = [8, 64], strides = [1, 1]} : vector<8x192xf32> to vector<8x64xf32>
    %129 = arith.mulf %128, %125 : vector<8x64xf32>
    %130 = arith.addf %127, %129 : vector<8x64xf32>
    %131 = vector.extract_strided_slice %123 {offsets = [0, 128], sizes = [8, 64], strides = [1, 1]} : vector<8x192xf32> to vector<8x64xf32>
    %132 = math.tanh %130 : vector<8x64xf32>
    %133 = arith.mulf %131, %132 : vector<8x64xf32>
    %134 = vector.extract_strided_slice %133 {offsets = [0, 0], sizes = [8, 32], strides = [1, 1]} : vector<8x64xf32> to vector<8x32xf32>
    %135 = vector.extract_strided_slice %133 {offsets = [0, 32], sizes = [8, 32], strides = [1, 1]} : vector<8x64xf32> to vector<8x32xf32>
    %136 = vector.extract_strided_slice %8 {offsets = [40, 0], sizes = [8, 256], strides = [1, 1]} : vector<64x256xf32> to vector<8x256xf32>
    %137 = vector.extract_strided_slice %16 {offsets = [16, 0], sizes = [8, 256], strides = [1, 1]} : vector<64x256xf32> to vector<8x256xf32>
    %138 = arith.addf %136, %137 : vector<8x256xf32>
    %139 = arith.truncf %133 : vector<8x64xf32> to vector<8x64xbf16>
    %cst_17 = arith.constant dense<0.000000e+00> : vector<8x256xf32>
    %140 = tpu.matmul %139, %17, %cst_17 {dimension_numbers = #tpu.dot_dimension_numbers<[1], [0], [0], [1], [0, 0, 1, 1], [], []>} : vector<8x64xbf16>, vector<64x256xbf16>, vector<8x256xf32> -> vector<8x256xf32>
    %141 = arith.addf %138, %140 : vector<8x256xf32>
    %142 = vector.extract_strided_slice %141 {offsets = [0, 0], sizes = [8, 192], strides = [1, 1]} : vector<8x256xf32> to vector<8x192xf32>
    %143 = arith.negf %142 : vector<8x192xf32>
    %144 = math.exp %143 : vector<8x192xf32>
    %cst_18 = arith.constant 1.000000e+00 : f32
    %145 = vector.broadcast %cst_18 : f32 to vector<8x192xf32>
    %146 = arith.addf %145, %144 : vector<8x192xf32>
    %147 = arith.divf %145, %146 : vector<8x192xf32>
    %148 = vector.extract_strided_slice %141 {offsets = [0, 192], sizes = [8, 64], strides = [1, 1]} : vector<8x256xf32> to vector<8x64xf32>
    %149 = math.tanh %148 : vector<8x64xf32>
    %150 = vector.extract_strided_slice %147 {offsets = [0, 64], sizes = [8, 64], strides = [1, 1]} : vector<8x192xf32> to vector<8x64xf32>
    %151 = arith.mulf %150, %130 : vector<8x64xf32>
    %152 = vector.extract_strided_slice %147 {offsets = [0, 0], sizes = [8, 64], strides = [1, 1]} : vector<8x192xf32> to vector<8x64xf32>
    %153 = arith.mulf %152, %149 : vector<8x64xf32>
    %154 = arith.addf %151, %153 : vector<8x64xf32>
    %155 = vector.extract_strided_slice %147 {offsets = [0, 128], sizes = [8, 64], strides = [1, 1]} : vector<8x192xf32> to vector<8x64xf32>
    %156 = math.tanh %154 : vector<8x64xf32>
    %157 = arith.mulf %155, %156 : vector<8x64xf32>
    %158 = vector.extract_strided_slice %157 {offsets = [0, 0], sizes = [8, 32], strides = [1, 1]} : vector<8x64xf32> to vector<8x32xf32>
    %159 = vector.extract_strided_slice %157 {offsets = [0, 32], sizes = [8, 32], strides = [1, 1]} : vector<8x64xf32> to vector<8x32xf32>
    %160 = vector.extract_strided_slice %8 {offsets = [48, 0], sizes = [8, 256], strides = [1, 1]} : vector<64x256xf32> to vector<8x256xf32>
    %161 = vector.extract_strided_slice %16 {offsets = [8, 0], sizes = [8, 256], strides = [1, 1]} : vector<64x256xf32> to vector<8x256xf32>
    %162 = arith.addf %160, %161 : vector<8x256xf32>
    %163 = arith.truncf %157 : vector<8x64xf32> to vector<8x64xbf16>
    %cst_19 = arith.constant dense<0.000000e+00> : vector<8x256xf32>
    %164 = tpu.matmul %163, %17, %cst_19 {dimension_numbers = #tpu.dot_dimension_numbers<[1], [0], [0], [1], [0, 0, 1, 1], [], []>} : vector<8x64xbf16>, vector<64x256xbf16>, vector<8x256xf32> -> vector<8x256xf32>
    %165 = arith.addf %162, %164 : vector<8x256xf32>
    %166 = vector.extract_strided_slice %165 {offsets = [0, 0], sizes = [8, 192], strides = [1, 1]} : vector<8x256xf32> to vector<8x192xf32>
    %167 = arith.negf %166 : vector<8x192xf32>
    %168 = math.exp %167 : vector<8x192xf32>
    %cst_20 = arith.constant 1.000000e+00 : f32
    %169 = vector.broadcast %cst_20 : f32 to vector<8x192xf32>
    %170 = arith.addf %169, %168 : vector<8x192xf32>
    %171 = arith.divf %169, %170 : vector<8x192xf32>
    %172 = vector.extract_strided_slice %165 {offsets = [0, 192], sizes = [8, 64], strides = [1, 1]} : vector<8x256xf32> to vector<8x64xf32>
    %173 = math.tanh %172 : vector<8x64xf32>
    %174 = vector.extract_strided_slice %171 {offsets = [0, 64], sizes = [8, 64], strides = [1, 1]} : vector<8x192xf32> to vector<8x64xf32>
    %175 = arith.mulf %174, %154 : vector<8x64xf32>
    %176 = vector.extract_strided_slice %171 {offsets = [0, 0], sizes = [8, 64], strides = [1, 1]} : vector<8x192xf32> to vector<8x64xf32>
    %177 = arith.mulf %176, %173 : vector<8x64xf32>
    %178 = arith.addf %175, %177 : vector<8x64xf32>
    %179 = vector.extract_strided_slice %171 {offsets = [0, 128], sizes = [8, 64], strides = [1, 1]} : vector<8x192xf32> to vector<8x64xf32>
    %180 = math.tanh %178 : vector<8x64xf32>
    %181 = arith.mulf %179, %180 : vector<8x64xf32>
    %182 = vector.extract_strided_slice %181 {offsets = [0, 0], sizes = [8, 32], strides = [1, 1]} : vector<8x64xf32> to vector<8x32xf32>
    %183 = vector.extract_strided_slice %181 {offsets = [0, 32], sizes = [8, 32], strides = [1, 1]} : vector<8x64xf32> to vector<8x32xf32>
    %184 = vector.extract_strided_slice %8 {offsets = [56, 0], sizes = [8, 256], strides = [1, 1]} : vector<64x256xf32> to vector<8x256xf32>
    %185 = vector.extract_strided_slice %16 {offsets = [0, 0], sizes = [8, 256], strides = [1, 1]} : vector<64x256xf32> to vector<8x256xf32>
    %186 = arith.addf %184, %185 : vector<8x256xf32>
    %187 = arith.truncf %181 : vector<8x64xf32> to vector<8x64xbf16>
    %cst_21 = arith.constant dense<0.000000e+00> : vector<8x256xf32>
    %188 = tpu.matmul %187, %17, %cst_21 {dimension_numbers = #tpu.dot_dimension_numbers<[1], [0], [0], [1], [0, 0, 1, 1], [], []>} : vector<8x64xbf16>, vector<64x256xbf16>, vector<8x256xf32> -> vector<8x256xf32>
    %189 = arith.addf %186, %188 : vector<8x256xf32>
    %190 = vector.extract_strided_slice %189 {offsets = [0, 0], sizes = [8, 192], strides = [1, 1]} : vector<8x256xf32> to vector<8x192xf32>
    %191 = arith.negf %190 : vector<8x192xf32>
    %192 = math.exp %191 : vector<8x192xf32>
    %cst_22 = arith.constant 1.000000e+00 : f32
    %193 = vector.broadcast %cst_22 : f32 to vector<8x192xf32>
    %194 = arith.addf %193, %192 : vector<8x192xf32>
    %195 = arith.divf %193, %194 : vector<8x192xf32>
    %196 = vector.extract_strided_slice %189 {offsets = [0, 192], sizes = [8, 64], strides = [1, 1]} : vector<8x256xf32> to vector<8x64xf32>
    %197 = math.tanh %196 : vector<8x64xf32>
    %198 = vector.extract_strided_slice %195 {offsets = [0, 64], sizes = [8, 64], strides = [1, 1]} : vector<8x192xf32> to vector<8x64xf32>
    %199 = arith.mulf %198, %178 : vector<8x64xf32>
    %200 = vector.extract_strided_slice %195 {offsets = [0, 0], sizes = [8, 64], strides = [1, 1]} : vector<8x192xf32> to vector<8x64xf32>
    %201 = arith.mulf %200, %197 : vector<8x64xf32>
    %202 = arith.addf %199, %201 : vector<8x64xf32>
    %203 = vector.extract_strided_slice %195 {offsets = [0, 128], sizes = [8, 64], strides = [1, 1]} : vector<8x192xf32> to vector<8x64xf32>
    %204 = math.tanh %202 : vector<8x64xf32>
    %205 = arith.mulf %203, %204 : vector<8x64xf32>
    %206 = vector.extract_strided_slice %205 {offsets = [0, 0], sizes = [8, 32], strides = [1, 1]} : vector<8x64xf32> to vector<8x32xf32>
    %207 = vector.extract_strided_slice %205 {offsets = [0, 32], sizes = [8, 32], strides = [1, 1]} : vector<8x64xf32> to vector<8x32xf32>
    %208 = tpu.concatenate %38, %62, %86, %110, %134, %158, %182, %206 in 0 : vector<8x32xf32>, vector<8x32xf32>, vector<8x32xf32>, vector<8x32xf32>, vector<8x32xf32>, vector<8x32xf32>, vector<8x32xf32>, vector<8x32xf32> -> vector<64x32xf32>
    %209 = tpu.concatenate %207, %183, %159, %135, %111, %87, %63, %39 in 0 : vector<8x32xf32>, vector<8x32xf32>, vector<8x32xf32>, vector<8x32xf32>, vector<8x32xf32>, vector<8x32xf32>, vector<8x32xf32>, vector<8x32xf32> -> vector<64x32xf32>
    %210 = tpu.concatenate %208, %209 in 1 : vector<64x32xf32>, vector<64x32xf32> -> vector<64x64xf32>
    %c96 = arith.constant 96 : index
    %c0_23 = arith.constant 0 : index
    %211 = vector.load %arg1[%c96, %c0_23] : memref<288x256xbf16, #tpu.memory_space<vmem>>, vector<64x256xbf16>
    %212 = arith.truncf %210 : vector<64x64xf32> to vector<64x64xbf16>
    %cst_24 = arith.constant dense<0.000000e+00> : vector<64x256xf32>
    %213 = tpu.matmul %212, %211, %cst_24 {dimension_numbers = #tpu.dot_dimension_numbers<[1], [0], [0], [1], [0, 0, 1, 1], [], []>} : vector<64x64xbf16>, vector<64x256xbf16>, vector<64x256xf32> -> vector<64x256xf32>
    %c0_25 = arith.constant 0 : index
    %c512 = arith.constant 512 : index
    %214 = vector.load %arg2[%c0_25, %c512] : memref<1x2944xf32, #tpu.memory_space<vmem>>, vector<1x256xf32>
    %215 = vector.broadcast %214 : vector<1x256xf32> to vector<64x256xf32>
    %216 = arith.addf %213, %215 : vector<64x256xf32>
    %c160 = arith.constant 160 : index
    %c0_26 = arith.constant 0 : index
    %217 = vector.load %arg1[%c160, %c0_26] : memref<288x256xbf16, #tpu.memory_space<vmem>>, vector<64x256xbf16>
    %218 = arith.truncf %210 : vector<64x64xf32> to vector<64x64xbf16>
    %cst_27 = arith.constant dense<0.000000e+00> : vector<64x256xf32>
    %219 = tpu.matmul %218, %217, %cst_27 {dimension_numbers = #tpu.dot_dimension_numbers<[1], [0], [0], [1], [0, 0, 1, 1], [], []>} : vector<64x64xbf16>, vector<64x256xbf16>, vector<64x256xf32> -> vector<64x256xf32>
    %c0_28 = arith.constant 0 : index
    %c768 = arith.constant 768 : index
    %220 = vector.load %arg2[%c0_28, %c768] : memref<1x2944xf32, #tpu.memory_space<vmem>>, vector<1x256xf32>
    %221 = vector.broadcast %220 : vector<1x256xf32> to vector<64x256xf32>
    %222 = arith.addf %219, %221 : vector<64x256xf32>
    %c224 = arith.constant 224 : index
    %c0_29 = arith.constant 0 : index
    %223 = vector.load %arg1[%c224, %c0_29] : memref<288x256xbf16, #tpu.memory_space<vmem>>, vector<64x256xbf16>
    %cst_30 = arith.constant 0.000000e+00 : f32
    %224 = vector.broadcast %cst_30 : f32 to vector<8x64xf32>
    %225 = vector.extract_strided_slice %216 {offsets = [0, 0], sizes = [8, 256], strides = [1, 1]} : vector<64x256xf32> to vector<8x256xf32>
    %226 = vector.extract_strided_slice %222 {offsets = [56, 0], sizes = [8, 256], strides = [1, 1]} : vector<64x256xf32> to vector<8x256xf32>
    %227 = arith.addf %225, %226 : vector<8x256xf32>
    %228 = vector.extract_strided_slice %227 {offsets = [0, 0], sizes = [8, 192], strides = [1, 1]} : vector<8x256xf32> to vector<8x192xf32>
    %229 = arith.negf %228 : vector<8x192xf32>
    %230 = math.exp %229 : vector<8x192xf32>
    %cst_31 = arith.constant 1.000000e+00 : f32
    %231 = vector.broadcast %cst_31 : f32 to vector<8x192xf32>
    %232 = arith.addf %231, %230 : vector<8x192xf32>
    %233 = arith.divf %231, %232 : vector<8x192xf32>
    %234 = vector.extract_strided_slice %227 {offsets = [0, 192], sizes = [8, 64], strides = [1, 1]} : vector<8x256xf32> to vector<8x64xf32>
    %235 = math.tanh %234 : vector<8x64xf32>
    %236 = vector.extract_strided_slice %233 {offsets = [0, 64], sizes = [8, 64], strides = [1, 1]} : vector<8x192xf32> to vector<8x64xf32>
    %237 = arith.mulf %236, %224 : vector<8x64xf32>
    %238 = vector.extract_strided_slice %233 {offsets = [0, 0], sizes = [8, 64], strides = [1, 1]} : vector<8x192xf32> to vector<8x64xf32>
    %239 = arith.mulf %238, %235 : vector<8x64xf32>
    %240 = arith.addf %237, %239 : vector<8x64xf32>
    %241 = vector.extract_strided_slice %233 {offsets = [0, 128], sizes = [8, 64], strides = [1, 1]} : vector<8x192xf32> to vector<8x64xf32>
    %242 = math.tanh %240 : vector<8x64xf32>
    %243 = arith.mulf %241, %242 : vector<8x64xf32>
    %244 = vector.extract_strided_slice %243 {offsets = [0, 0], sizes = [8, 32], strides = [1, 1]} : vector<8x64xf32> to vector<8x32xf32>
    %245 = vector.extract_strided_slice %243 {offsets = [0, 32], sizes = [8, 32], strides = [1, 1]} : vector<8x64xf32> to vector<8x32xf32>
    %246 = vector.extract_strided_slice %216 {offsets = [8, 0], sizes = [8, 256], strides = [1, 1]} : vector<64x256xf32> to vector<8x256xf32>
    %247 = vector.extract_strided_slice %222 {offsets = [48, 0], sizes = [8, 256], strides = [1, 1]} : vector<64x256xf32> to vector<8x256xf32>
    %248 = arith.addf %246, %247 : vector<8x256xf32>
    %249 = arith.truncf %243 : vector<8x64xf32> to vector<8x64xbf16>
    %cst_32 = arith.constant dense<0.000000e+00> : vector<8x256xf32>
    %250 = tpu.matmul %249, %223, %cst_32 {dimension_numbers = #tpu.dot_dimension_numbers<[1], [0], [0], [1], [0, 0, 1, 1], [], []>} : vector<8x64xbf16>, vector<64x256xbf16>, vector<8x256xf32> -> vector<8x256xf32>
    %251 = arith.addf %248, %250 : vector<8x256xf32>
    %252 = vector.extract_strided_slice %251 {offsets = [0, 0], sizes = [8, 192], strides = [1, 1]} : vector<8x256xf32> to vector<8x192xf32>
    %253 = arith.negf %252 : vector<8x192xf32>
    %254 = math.exp %253 : vector<8x192xf32>
    %cst_33 = arith.constant 1.000000e+00 : f32
    %255 = vector.broadcast %cst_33 : f32 to vector<8x192xf32>
    %256 = arith.addf %255, %254 : vector<8x192xf32>
    %257 = arith.divf %255, %256 : vector<8x192xf32>
    %258 = vector.extract_strided_slice %251 {offsets = [0, 192], sizes = [8, 64], strides = [1, 1]} : vector<8x256xf32> to vector<8x64xf32>
    %259 = math.tanh %258 : vector<8x64xf32>
    %260 = vector.extract_strided_slice %257 {offsets = [0, 64], sizes = [8, 64], strides = [1, 1]} : vector<8x192xf32> to vector<8x64xf32>
    %261 = arith.mulf %260, %240 : vector<8x64xf32>
    %262 = vector.extract_strided_slice %257 {offsets = [0, 0], sizes = [8, 64], strides = [1, 1]} : vector<8x192xf32> to vector<8x64xf32>
    %263 = arith.mulf %262, %259 : vector<8x64xf32>
    %264 = arith.addf %261, %263 : vector<8x64xf32>
    %265 = vector.extract_strided_slice %257 {offsets = [0, 128], sizes = [8, 64], strides = [1, 1]} : vector<8x192xf32> to vector<8x64xf32>
    %266 = math.tanh %264 : vector<8x64xf32>
    %267 = arith.mulf %265, %266 : vector<8x64xf32>
    %268 = vector.extract_strided_slice %267 {offsets = [0, 0], sizes = [8, 32], strides = [1, 1]} : vector<8x64xf32> to vector<8x32xf32>
    %269 = vector.extract_strided_slice %267 {offsets = [0, 32], sizes = [8, 32], strides = [1, 1]} : vector<8x64xf32> to vector<8x32xf32>
    %270 = vector.extract_strided_slice %216 {offsets = [16, 0], sizes = [8, 256], strides = [1, 1]} : vector<64x256xf32> to vector<8x256xf32>
    %271 = vector.extract_strided_slice %222 {offsets = [40, 0], sizes = [8, 256], strides = [1, 1]} : vector<64x256xf32> to vector<8x256xf32>
    %272 = arith.addf %270, %271 : vector<8x256xf32>
    %273 = arith.truncf %267 : vector<8x64xf32> to vector<8x64xbf16>
    %cst_34 = arith.constant dense<0.000000e+00> : vector<8x256xf32>
    %274 = tpu.matmul %273, %223, %cst_34 {dimension_numbers = #tpu.dot_dimension_numbers<[1], [0], [0], [1], [0, 0, 1, 1], [], []>} : vector<8x64xbf16>, vector<64x256xbf16>, vector<8x256xf32> -> vector<8x256xf32>
    %275 = arith.addf %272, %274 : vector<8x256xf32>
    %276 = vector.extract_strided_slice %275 {offsets = [0, 0], sizes = [8, 192], strides = [1, 1]} : vector<8x256xf32> to vector<8x192xf32>
    %277 = arith.negf %276 : vector<8x192xf32>
    %278 = math.exp %277 : vector<8x192xf32>
    %cst_35 = arith.constant 1.000000e+00 : f32
    %279 = vector.broadcast %cst_35 : f32 to vector<8x192xf32>
    %280 = arith.addf %279, %278 : vector<8x192xf32>
    %281 = arith.divf %279, %280 : vector<8x192xf32>
    %282 = vector.extract_strided_slice %275 {offsets = [0, 192], sizes = [8, 64], strides = [1, 1]} : vector<8x256xf32> to vector<8x64xf32>
    %283 = math.tanh %282 : vector<8x64xf32>
    %284 = vector.extract_strided_slice %281 {offsets = [0, 64], sizes = [8, 64], strides = [1, 1]} : vector<8x192xf32> to vector<8x64xf32>
    %285 = arith.mulf %284, %264 : vector<8x64xf32>
    %286 = vector.extract_strided_slice %281 {offsets = [0, 0], sizes = [8, 64], strides = [1, 1]} : vector<8x192xf32> to vector<8x64xf32>
    %287 = arith.mulf %286, %283 : vector<8x64xf32>
    %288 = arith.addf %285, %287 : vector<8x64xf32>
    %289 = vector.extract_strided_slice %281 {offsets = [0, 128], sizes = [8, 64], strides = [1, 1]} : vector<8x192xf32> to vector<8x64xf32>
    %290 = math.tanh %288 : vector<8x64xf32>
    %291 = arith.mulf %289, %290 : vector<8x64xf32>
    %292 = vector.extract_strided_slice %291 {offsets = [0, 0], sizes = [8, 32], strides = [1, 1]} : vector<8x64xf32> to vector<8x32xf32>
    %293 = vector.extract_strided_slice %291 {offsets = [0, 32], sizes = [8, 32], strides = [1, 1]} : vector<8x64xf32> to vector<8x32xf32>
    %294 = vector.extract_strided_slice %216 {offsets = [24, 0], sizes = [8, 256], strides = [1, 1]} : vector<64x256xf32> to vector<8x256xf32>
    %295 = vector.extract_strided_slice %222 {offsets = [32, 0], sizes = [8, 256], strides = [1, 1]} : vector<64x256xf32> to vector<8x256xf32>
    %296 = arith.addf %294, %295 : vector<8x256xf32>
    %297 = arith.truncf %291 : vector<8x64xf32> to vector<8x64xbf16>
    %cst_36 = arith.constant dense<0.000000e+00> : vector<8x256xf32>
    %298 = tpu.matmul %297, %223, %cst_36 {dimension_numbers = #tpu.dot_dimension_numbers<[1], [0], [0], [1], [0, 0, 1, 1], [], []>} : vector<8x64xbf16>, vector<64x256xbf16>, vector<8x256xf32> -> vector<8x256xf32>
    %299 = arith.addf %296, %298 : vector<8x256xf32>
    %300 = vector.extract_strided_slice %299 {offsets = [0, 0], sizes = [8, 192], strides = [1, 1]} : vector<8x256xf32> to vector<8x192xf32>
    %301 = arith.negf %300 : vector<8x192xf32>
    %302 = math.exp %301 : vector<8x192xf32>
    %cst_37 = arith.constant 1.000000e+00 : f32
    %303 = vector.broadcast %cst_37 : f32 to vector<8x192xf32>
    %304 = arith.addf %303, %302 : vector<8x192xf32>
    %305 = arith.divf %303, %304 : vector<8x192xf32>
    %306 = vector.extract_strided_slice %299 {offsets = [0, 192], sizes = [8, 64], strides = [1, 1]} : vector<8x256xf32> to vector<8x64xf32>
    %307 = math.tanh %306 : vector<8x64xf32>
    %308 = vector.extract_strided_slice %305 {offsets = [0, 64], sizes = [8, 64], strides = [1, 1]} : vector<8x192xf32> to vector<8x64xf32>
    %309 = arith.mulf %308, %288 : vector<8x64xf32>
    %310 = vector.extract_strided_slice %305 {offsets = [0, 0], sizes = [8, 64], strides = [1, 1]} : vector<8x192xf32> to vector<8x64xf32>
    %311 = arith.mulf %310, %307 : vector<8x64xf32>
    %312 = arith.addf %309, %311 : vector<8x64xf32>
    %313 = vector.extract_strided_slice %305 {offsets = [0, 128], sizes = [8, 64], strides = [1, 1]} : vector<8x192xf32> to vector<8x64xf32>
    %314 = math.tanh %312 : vector<8x64xf32>
    %315 = arith.mulf %313, %314 : vector<8x64xf32>
    %316 = vector.extract_strided_slice %315 {offsets = [0, 0], sizes = [8, 32], strides = [1, 1]} : vector<8x64xf32> to vector<8x32xf32>
    %317 = vector.extract_strided_slice %315 {offsets = [0, 32], sizes = [8, 32], strides = [1, 1]} : vector<8x64xf32> to vector<8x32xf32>
    %318 = vector.extract_strided_slice %216 {offsets = [32, 0], sizes = [8, 256], strides = [1, 1]} : vector<64x256xf32> to vector<8x256xf32>
    %319 = vector.extract_strided_slice %222 {offsets = [24, 0], sizes = [8, 256], strides = [1, 1]} : vector<64x256xf32> to vector<8x256xf32>
    %320 = arith.addf %318, %319 : vector<8x256xf32>
    %321 = arith.truncf %315 : vector<8x64xf32> to vector<8x64xbf16>
    %cst_38 = arith.constant dense<0.000000e+00> : vector<8x256xf32>
    %322 = tpu.matmul %321, %223, %cst_38 {dimension_numbers = #tpu.dot_dimension_numbers<[1], [0], [0], [1], [0, 0, 1, 1], [], []>} : vector<8x64xbf16>, vector<64x256xbf16>, vector<8x256xf32> -> vector<8x256xf32>
    %323 = arith.addf %320, %322 : vector<8x256xf32>
    %324 = vector.extract_strided_slice %323 {offsets = [0, 0], sizes = [8, 192], strides = [1, 1]} : vector<8x256xf32> to vector<8x192xf32>
    %325 = arith.negf %324 : vector<8x192xf32>
    %326 = math.exp %325 : vector<8x192xf32>
    %cst_39 = arith.constant 1.000000e+00 : f32
    %327 = vector.broadcast %cst_39 : f32 to vector<8x192xf32>
    %328 = arith.addf %327, %326 : vector<8x192xf32>
    %329 = arith.divf %327, %328 : vector<8x192xf32>
    %330 = vector.extract_strided_slice %323 {offsets = [0, 192], sizes = [8, 64], strides = [1, 1]} : vector<8x256xf32> to vector<8x64xf32>
    %331 = math.tanh %330 : vector<8x64xf32>
    %332 = vector.extract_strided_slice %329 {offsets = [0, 64], sizes = [8, 64], strides = [1, 1]} : vector<8x192xf32> to vector<8x64xf32>
    %333 = arith.mulf %332, %312 : vector<8x64xf32>
    %334 = vector.extract_strided_slice %329 {offsets = [0, 0], sizes = [8, 64], strides = [1, 1]} : vector<8x192xf32> to vector<8x64xf32>
    %335 = arith.mulf %334, %331 : vector<8x64xf32>
    %336 = arith.addf %333, %335 : vector<8x64xf32>
    %337 = vector.extract_strided_slice %329 {offsets = [0, 128], sizes = [8, 64], strides = [1, 1]} : vector<8x192xf32> to vector<8x64xf32>
    %338 = math.tanh %336 : vector<8x64xf32>
    %339 = arith.mulf %337, %338 : vector<8x64xf32>
    %340 = vector.extract_strided_slice %339 {offsets = [0, 0], sizes = [8, 32], strides = [1, 1]} : vector<8x64xf32> to vector<8x32xf32>
    %341 = vector.extract_strided_slice %339 {offsets = [0, 32], sizes = [8, 32], strides = [1, 1]} : vector<8x64xf32> to vector<8x32xf32>
    %342 = vector.extract_strided_slice %216 {offsets = [40, 0], sizes = [8, 256], strides = [1, 1]} : vector<64x256xf32> to vector<8x256xf32>
    %343 = vector.extract_strided_slice %222 {offsets = [16, 0], sizes = [8, 256], strides = [1, 1]} : vector<64x256xf32> to vector<8x256xf32>
    %344 = arith.addf %342, %343 : vector<8x256xf32>
    %345 = arith.truncf %339 : vector<8x64xf32> to vector<8x64xbf16>
    %cst_40 = arith.constant dense<0.000000e+00> : vector<8x256xf32>
    %346 = tpu.matmul %345, %223, %cst_40 {dimension_numbers = #tpu.dot_dimension_numbers<[1], [0], [0], [1], [0, 0, 1, 1], [], []>} : vector<8x64xbf16>, vector<64x256xbf16>, vector<8x256xf32> -> vector<8x256xf32>
    %347 = arith.addf %344, %346 : vector<8x256xf32>
    %348 = vector.extract_strided_slice %347 {offsets = [0, 0], sizes = [8, 192], strides = [1, 1]} : vector<8x256xf32> to vector<8x192xf32>
    %349 = arith.negf %348 : vector<8x192xf32>
    %350 = math.exp %349 : vector<8x192xf32>
    %cst_41 = arith.constant 1.000000e+00 : f32
    %351 = vector.broadcast %cst_41 : f32 to vector<8x192xf32>
    %352 = arith.addf %351, %350 : vector<8x192xf32>
    %353 = arith.divf %351, %352 : vector<8x192xf32>
    %354 = vector.extract_strided_slice %347 {offsets = [0, 192], sizes = [8, 64], strides = [1, 1]} : vector<8x256xf32> to vector<8x64xf32>
    %355 = math.tanh %354 : vector<8x64xf32>
    %356 = vector.extract_strided_slice %353 {offsets = [0, 64], sizes = [8, 64], strides = [1, 1]} : vector<8x192xf32> to vector<8x64xf32>
    %357 = arith.mulf %356, %336 : vector<8x64xf32>
    %358 = vector.extract_strided_slice %353 {offsets = [0, 0], sizes = [8, 64], strides = [1, 1]} : vector<8x192xf32> to vector<8x64xf32>
    %359 = arith.mulf %358, %355 : vector<8x64xf32>
    %360 = arith.addf %357, %359 : vector<8x64xf32>
    %361 = vector.extract_strided_slice %353 {offsets = [0, 128], sizes = [8, 64], strides = [1, 1]} : vector<8x192xf32> to vector<8x64xf32>
    %362 = math.tanh %360 : vector<8x64xf32>
    %363 = arith.mulf %361, %362 : vector<8x64xf32>
    %364 = vector.extract_strided_slice %363 {offsets = [0, 0], sizes = [8, 32], strides = [1, 1]} : vector<8x64xf32> to vector<8x32xf32>
    %365 = vector.extract_strided_slice %363 {offsets = [0, 32], sizes = [8, 32], strides = [1, 1]} : vector<8x64xf32> to vector<8x32xf32>
    %366 = vector.extract_strided_slice %216 {offsets = [48, 0], sizes = [8, 256], strides = [1, 1]} : vector<64x256xf32> to vector<8x256xf32>
    %367 = vector.extract_strided_slice %222 {offsets = [8, 0], sizes = [8, 256], strides = [1, 1]} : vector<64x256xf32> to vector<8x256xf32>
    %368 = arith.addf %366, %367 : vector<8x256xf32>
    %369 = arith.truncf %363 : vector<8x64xf32> to vector<8x64xbf16>
    %cst_42 = arith.constant dense<0.000000e+00> : vector<8x256xf32>
    %370 = tpu.matmul %369, %223, %cst_42 {dimension_numbers = #tpu.dot_dimension_numbers<[1], [0], [0], [1], [0, 0, 1, 1], [], []>} : vector<8x64xbf16>, vector<64x256xbf16>, vector<8x256xf32> -> vector<8x256xf32>
    %371 = arith.addf %368, %370 : vector<8x256xf32>
    %372 = vector.extract_strided_slice %371 {offsets = [0, 0], sizes = [8, 192], strides = [1, 1]} : vector<8x256xf32> to vector<8x192xf32>
    %373 = arith.negf %372 : vector<8x192xf32>
    %374 = math.exp %373 : vector<8x192xf32>
    %cst_43 = arith.constant 1.000000e+00 : f32
    %375 = vector.broadcast %cst_43 : f32 to vector<8x192xf32>
    %376 = arith.addf %375, %374 : vector<8x192xf32>
    %377 = arith.divf %375, %376 : vector<8x192xf32>
    %378 = vector.extract_strided_slice %371 {offsets = [0, 192], sizes = [8, 64], strides = [1, 1]} : vector<8x256xf32> to vector<8x64xf32>
    %379 = math.tanh %378 : vector<8x64xf32>
    %380 = vector.extract_strided_slice %377 {offsets = [0, 64], sizes = [8, 64], strides = [1, 1]} : vector<8x192xf32> to vector<8x64xf32>
    %381 = arith.mulf %380, %360 : vector<8x64xf32>
    %382 = vector.extract_strided_slice %377 {offsets = [0, 0], sizes = [8, 64], strides = [1, 1]} : vector<8x192xf32> to vector<8x64xf32>
    %383 = arith.mulf %382, %379 : vector<8x64xf32>
    %384 = arith.addf %381, %383 : vector<8x64xf32>
    %385 = vector.extract_strided_slice %377 {offsets = [0, 128], sizes = [8, 64], strides = [1, 1]} : vector<8x192xf32> to vector<8x64xf32>
    %386 = math.tanh %384 : vector<8x64xf32>
    %387 = arith.mulf %385, %386 : vector<8x64xf32>
    %388 = vector.extract_strided_slice %387 {offsets = [0, 0], sizes = [8, 32], strides = [1, 1]} : vector<8x64xf32> to vector<8x32xf32>
    %389 = vector.extract_strided_slice %387 {offsets = [0, 32], sizes = [8, 32], strides = [1, 1]} : vector<8x64xf32> to vector<8x32xf32>
    %390 = vector.extract_strided_slice %216 {offsets = [56, 0], sizes = [8, 256], strides = [1, 1]} : vector<64x256xf32> to vector<8x256xf32>
    %391 = vector.extract_strided_slice %222 {offsets = [0, 0], sizes = [8, 256], strides = [1, 1]} : vector<64x256xf32> to vector<8x256xf32>
    %392 = arith.addf %390, %391 : vector<8x256xf32>
    %393 = arith.truncf %387 : vector<8x64xf32> to vector<8x64xbf16>
    %cst_44 = arith.constant dense<0.000000e+00> : vector<8x256xf32>
    %394 = tpu.matmul %393, %223, %cst_44 {dimension_numbers = #tpu.dot_dimension_numbers<[1], [0], [0], [1], [0, 0, 1, 1], [], []>} : vector<8x64xbf16>, vector<64x256xbf16>, vector<8x256xf32> -> vector<8x256xf32>
    %395 = arith.addf %392, %394 : vector<8x256xf32>
    %396 = vector.extract_strided_slice %395 {offsets = [0, 0], sizes = [8, 192], strides = [1, 1]} : vector<8x256xf32> to vector<8x192xf32>
    %397 = arith.negf %396 : vector<8x192xf32>
    %398 = math.exp %397 : vector<8x192xf32>
    %cst_45 = arith.constant 1.000000e+00 : f32
    %399 = vector.broadcast %cst_45 : f32 to vector<8x192xf32>
    %400 = arith.addf %399, %398 : vector<8x192xf32>
    %401 = arith.divf %399, %400 : vector<8x192xf32>
    %402 = vector.extract_strided_slice %395 {offsets = [0, 192], sizes = [8, 64], strides = [1, 1]} : vector<8x256xf32> to vector<8x64xf32>
    %403 = math.tanh %402 : vector<8x64xf32>
    %404 = vector.extract_strided_slice %401 {offsets = [0, 64], sizes = [8, 64], strides = [1, 1]} : vector<8x192xf32> to vector<8x64xf32>
    %405 = arith.mulf %404, %384 : vector<8x64xf32>
    %406 = vector.extract_strided_slice %401 {offsets = [0, 0], sizes = [8, 64], strides = [1, 1]} : vector<8x192xf32> to vector<8x64xf32>
    %407 = arith.mulf %406, %403 : vector<8x64xf32>
    %408 = arith.addf %405, %407 : vector<8x64xf32>
    %409 = vector.extract_strided_slice %401 {offsets = [0, 128], sizes = [8, 64], strides = [1, 1]} : vector<8x192xf32> to vector<8x64xf32>
    %410 = math.tanh %408 : vector<8x64xf32>
    %411 = arith.mulf %409, %410 : vector<8x64xf32>
    %412 = vector.extract_strided_slice %411 {offsets = [0, 0], sizes = [8, 32], strides = [1, 1]} : vector<8x64xf32> to vector<8x32xf32>
    %413 = vector.extract_strided_slice %411 {offsets = [0, 32], sizes = [8, 32], strides = [1, 1]} : vector<8x64xf32> to vector<8x32xf32>
    %414 = tpu.concatenate %244, %268, %292, %316, %340, %364, %388, %412 in 0 : vector<8x32xf32>, vector<8x32xf32>, vector<8x32xf32>, vector<8x32xf32>, vector<8x32xf32>, vector<8x32xf32>, vector<8x32xf32>, vector<8x32xf32> -> vector<64x32xf32>
    %415 = tpu.concatenate %413, %389, %365, %341, %317, %293, %269, %245 in 0 : vector<8x32xf32>, vector<8x32xf32>, vector<8x32xf32>, vector<8x32xf32>, vector<8x32xf32>, vector<8x32xf32>, vector<8x32xf32>, vector<8x32xf32> -> vector<64x32xf32>
    %416 = tpu.concatenate %414, %415 in 1 : vector<64x32xf32>, vector<64x32xf32> -> vector<64x64xf32>
    %c0_46 = arith.constant 0 : index
    %c0_47 = arith.constant 0 : index
    %417 = vector.load %arg3[%c0_46, %c0_47] : memref<448x128xbf16, #tpu.memory_space<vmem>>, vector<64x64xbf16>
    %418 = arith.truncf %416 : vector<64x64xf32> to vector<64x64xbf16>
    %cst_48 = arith.constant dense<0.000000e+00> : vector<64x64xf32>
    %419 = tpu.matmul %418, %417, %cst_48 {dimension_numbers = #tpu.dot_dimension_numbers<[1], [0], [0], [1], [0, 0, 1, 1], [], []>} : vector<64x64xbf16>, vector<64x64xbf16>, vector<64x64xf32> -> vector<64x64xf32>
    %c0_49 = arith.constant 0 : index
    %c1024 = arith.constant 1024 : index
    %420 = vector.load %arg2[%c0_49, %c1024] : memref<1x2944xf32, #tpu.memory_space<vmem>>, vector<1x64xf32>
    %421 = vector.broadcast %420 : vector<1x64xf32> to vector<64x64xf32>
    %422 = arith.addf %419, %421 : vector<64x64xf32>
    %c0_50 = arith.constant 0 : index
    %c1152 = arith.constant 1152 : index
    %423 = vector.load %arg2[%c0_50, %c1152] : memref<1x2944xf32, #tpu.memory_space<vmem>>, vector<1x64xf32>
    %c0_51 = arith.constant 0 : index
    %c1280 = arith.constant 1280 : index
    %424 = vector.load %arg2[%c0_51, %c1280] : memref<1x2944xf32, #tpu.memory_space<vmem>>, vector<1x64xf32>
    %cst_52 = arith.constant dense<0.000000e+00> : vector<64xf32>
    %425 = vector.multi_reduction <add>, %422, %cst_52 [1] : vector<64x64xf32> to vector<64xf32>
    %426 = vector.shape_cast %425 : vector<64xf32> to vector<64x1xf32>
    %cst_53 = arith.constant 6.400000e+01 : f32
    %427 = vector.broadcast %cst_53 : f32 to vector<64x1xf32>
    %428 = arith.divf %426, %427 : vector<64x1xf32>
    %429 = vector.broadcast %428 : vector<64x1xf32> to vector<64x64xf32>
    %430 = arith.subf %422, %429 : vector<64x64xf32>
    %431 = arith.mulf %430, %430 : vector<64x64xf32>
    %cst_54 = arith.constant dense<0.000000e+00> : vector<64xf32>
    %432 = vector.multi_reduction <add>, %431, %cst_54 [1] : vector<64x64xf32> to vector<64xf32>
    %433 = vector.shape_cast %432 : vector<64xf32> to vector<64x1xf32>
    %cst_55 = arith.constant 6.400000e+01 : f32
    %434 = vector.broadcast %cst_55 : f32 to vector<64x1xf32>
    %435 = arith.divf %433, %434 : vector<64x1xf32>
    %436 = vector.broadcast %428 : vector<64x1xf32> to vector<64x64xf32>
    %437 = arith.subf %422, %436 : vector<64x64xf32>
    %cst_56 = arith.constant 9.99999974E-6 : f32
    %438 = vector.broadcast %cst_56 : f32 to vector<64x1xf32>
    %439 = arith.addf %435, %438 : vector<64x1xf32>
    %440 = math.rsqrt %439 : vector<64x1xf32>
    %441 = vector.broadcast %440 : vector<64x1xf32> to vector<64x64xf32>
    %442 = arith.mulf %437, %441 : vector<64x64xf32>
    %443 = vector.broadcast %423 : vector<1x64xf32> to vector<64x64xf32>
    %444 = arith.mulf %442, %443 : vector<64x64xf32>
    %445 = vector.broadcast %424 : vector<1x64xf32> to vector<64x64xf32>
    %446 = arith.addf %444, %445 : vector<64x64xf32>
    %447 = math.tanh %446 : vector<64x64xf32>
    %c64 = arith.constant 64 : index
    %c0_57 = arith.constant 0 : index
    %448 = vector.load %arg3[%c64, %c0_57] : memref<448x128xbf16, #tpu.memory_space<vmem>>, vector<64x1xbf16>
    %449 = arith.truncf %447 : vector<64x64xf32> to vector<64x64xbf16>
    %cst_58 = arith.constant dense<0.000000e+00> : vector<64x1xf32>
    %450 = tpu.matmul %449, %448, %cst_58 {dimension_numbers = #tpu.dot_dimension_numbers<[1], [0], [0], [1], [0, 0, 1, 1], [], []>} : vector<64x64xbf16>, vector<64x1xbf16>, vector<64x1xf32> -> vector<64x1xf32>
    %c0_59 = arith.constant 0 : index
    %c1408 = arith.constant 1408 : index
    %451 = vector.load %arg2[%c0_59, %c1408] : memref<1x2944xf32, #tpu.memory_space<vmem>>, vector<1x1xf32>
    %452 = vector.broadcast %451 : vector<1x1xf32> to vector<64x1xf32>
    %453 = arith.addf %450, %452 : vector<64x1xf32>
    %454 = vector.shape_cast %453 : vector<64x1xf32> to vector<8x8x1xf32>
    %cst_60 = arith.constant dense<0xFF800000> : vector<8x1xf32>
    %455 = vector.multi_reduction <maximumf>, %454, %cst_60 [0] : vector<8x8x1xf32> to vector<8x1xf32>
    %456 = vector.shape_cast %455 : vector<8x1xf32> to vector<1x8x1xf32>
    %457 = vector.broadcast %456 : vector<1x8x1xf32> to vector<8x8x1xf32>
    %458 = arith.subf %454, %457 : vector<8x8x1xf32>
    %459 = math.exp %458 : vector<8x8x1xf32>
    %cst_61 = arith.constant dense<0.000000e+00> : vector<8x1xf32>
    %460 = vector.multi_reduction <add>, %459, %cst_61 [0] : vector<8x8x1xf32> to vector<8x1xf32>
    %461 = vector.shape_cast %460 : vector<8x1xf32> to vector<1x8x1xf32>
    %462 = tpu.reciprocal %461 {approx = true} : vector<1x8x1xf32> -> vector<1x8x1xf32>
    %463 = vector.broadcast %462 : vector<1x8x1xf32> to vector<8x8x1xf32>
    %464 = arith.mulf %459, %463 : vector<8x8x1xf32>
    %465 = vector.shape_cast %416 : vector<64x64xf32> to vector<8x8x64xf32>
    %466 = vector.broadcast %464 : vector<8x8x1xf32> to vector<8x8x64xf32>
    %467 = arith.mulf %466, %465 : vector<8x8x64xf32>
    %cst_62 = arith.constant dense<0.000000e+00> : vector<8x64xf32>
    %468 = vector.multi_reduction <add>, %467, %cst_62 [0] : vector<8x8x64xf32> to vector<8x64xf32>
    %c128 = arith.constant 128 : index
    %c0_63 = arith.constant 0 : index
    %469 = vector.load %arg3[%c128, %c0_63] : memref<448x128xbf16, #tpu.memory_space<vmem>>, vector<64x96xbf16>
    %470 = arith.truncf %468 : vector<8x64xf32> to vector<8x64xbf16>
    %cst_64 = arith.constant dense<0.000000e+00> : vector<8x96xf32>
    %471 = tpu.matmul %470, %469, %cst_64 {dimension_numbers = #tpu.dot_dimension_numbers<[1], [0], [0], [1], [0, 0, 1, 1], [], []>} : vector<8x64xbf16>, vector<64x96xbf16>, vector<8x96xf32> -> vector<8x96xf32>
    %472 = vector.extract_strided_slice %471 {offsets = [0, 0], sizes = [8, 64], strides = [1, 1]} : vector<8x96xf32> to vector<8x64xf32>
    %c0_65 = arith.constant 0 : index
    %c1536 = arith.constant 1536 : index
    %473 = vector.load %arg2[%c0_65, %c1536] : memref<1x2944xf32, #tpu.memory_space<vmem>>, vector<1x64xf32>
    %474 = vector.broadcast %473 : vector<1x64xf32> to vector<8x64xf32>
    %475 = arith.addf %472, %474 : vector<8x64xf32>
    %c0_66 = arith.constant 0 : index
    %c1664 = arith.constant 1664 : index
    %476 = vector.load %arg2[%c0_66, %c1664] : memref<1x2944xf32, #tpu.memory_space<vmem>>, vector<1x64xf32>
    %c0_67 = arith.constant 0 : index
    %c1792 = arith.constant 1792 : index
    %477 = vector.load %arg2[%c0_67, %c1792] : memref<1x2944xf32, #tpu.memory_space<vmem>>, vector<1x64xf32>
    %cst_68 = arith.constant dense<0.000000e+00> : vector<8xf32>
    %478 = vector.multi_reduction <add>, %475, %cst_68 [1] : vector<8x64xf32> to vector<8xf32>
    %479 = vector.shape_cast %478 : vector<8xf32> to vector<8x1xf32>
    %cst_69 = arith.constant 6.400000e+01 : f32
    %480 = vector.broadcast %cst_69 : f32 to vector<8x1xf32>
    %481 = arith.divf %479, %480 : vector<8x1xf32>
    %482 = vector.broadcast %481 : vector<8x1xf32> to vector<8x64xf32>
    %483 = arith.subf %475, %482 : vector<8x64xf32>
    %484 = arith.mulf %483, %483 : vector<8x64xf32>
    %cst_70 = arith.constant dense<0.000000e+00> : vector<8xf32>
    %485 = vector.multi_reduction <add>, %484, %cst_70 [1] : vector<8x64xf32> to vector<8xf32>
    %486 = vector.shape_cast %485 : vector<8xf32> to vector<8x1xf32>
    %cst_71 = arith.constant 6.400000e+01 : f32
    %487 = vector.broadcast %cst_71 : f32 to vector<8x1xf32>
    %488 = arith.divf %486, %487 : vector<8x1xf32>
    %489 = vector.broadcast %481 : vector<8x1xf32> to vector<8x64xf32>
    %490 = arith.subf %475, %489 : vector<8x64xf32>
    %cst_72 = arith.constant 9.99999974E-6 : f32
    %491 = vector.broadcast %cst_72 : f32 to vector<8x1xf32>
    %492 = arith.addf %488, %491 : vector<8x1xf32>
    %493 = math.rsqrt %492 : vector<8x1xf32>
    %494 = vector.broadcast %493 : vector<8x1xf32> to vector<8x64xf32>
    %495 = arith.mulf %490, %494 : vector<8x64xf32>
    %496 = vector.broadcast %476 : vector<1x64xf32> to vector<8x64xf32>
    %497 = arith.mulf %495, %496 : vector<8x64xf32>
    %498 = vector.broadcast %477 : vector<1x64xf32> to vector<8x64xf32>
    %499 = arith.addf %497, %498 : vector<8x64xf32>
    %cst_73 = arith.constant 0.000000e+00 : f32
    %500 = vector.broadcast %cst_73 : f32 to vector<8x64xf32>
    %501 = arith.maximumf %499, %500 : vector<8x64xf32>
    %502 = vector.extract_strided_slice %471 {offsets = [0, 64], sizes = [8, 32], strides = [1, 1]} : vector<8x96xf32> to vector<8x32xf32>
    %c0_74 = arith.constant 0 : index
    %c1920 = arith.constant 1920 : index
    %503 = vector.load %arg2[%c0_74, %c1920] : memref<1x2944xf32, #tpu.memory_space<vmem>>, vector<1x32xf32>
    %504 = vector.broadcast %503 : vector<1x32xf32> to vector<8x32xf32>
    %505 = arith.addf %502, %504 : vector<8x32xf32>
    %c0_75 = arith.constant 0 : index
    %c2048 = arith.constant 2048 : index
    %506 = vector.load %arg2[%c0_75, %c2048] : memref<1x2944xf32, #tpu.memory_space<vmem>>, vector<1x32xf32>
    %c0_76 = arith.constant 0 : index
    %c2176 = arith.constant 2176 : index
    %507 = vector.load %arg2[%c0_76, %c2176] : memref<1x2944xf32, #tpu.memory_space<vmem>>, vector<1x32xf32>
    %cst_77 = arith.constant dense<0.000000e+00> : vector<8xf32>
    %508 = vector.multi_reduction <add>, %505, %cst_77 [1] : vector<8x32xf32> to vector<8xf32>
    %509 = vector.shape_cast %508 : vector<8xf32> to vector<8x1xf32>
    %cst_78 = arith.constant 3.200000e+01 : f32
    %510 = vector.broadcast %cst_78 : f32 to vector<8x1xf32>
    %511 = arith.divf %509, %510 : vector<8x1xf32>
    %512 = vector.broadcast %511 : vector<8x1xf32> to vector<8x32xf32>
    %513 = arith.subf %505, %512 : vector<8x32xf32>
    %514 = arith.mulf %513, %513 : vector<8x32xf32>
    %cst_79 = arith.constant dense<0.000000e+00> : vector<8xf32>
    %515 = vector.multi_reduction <add>, %514, %cst_79 [1] : vector<8x32xf32> to vector<8xf32>
    %516 = vector.shape_cast %515 : vector<8xf32> to vector<8x1xf32>
    %cst_80 = arith.constant 3.200000e+01 : f32
    %517 = vector.broadcast %cst_80 : f32 to vector<8x1xf32>
    %518 = arith.divf %516, %517 : vector<8x1xf32>
    %519 = vector.broadcast %511 : vector<8x1xf32> to vector<8x32xf32>
    %520 = arith.subf %505, %519 : vector<8x32xf32>
    %cst_81 = arith.constant 9.99999974E-6 : f32
    %521 = vector.broadcast %cst_81 : f32 to vector<8x1xf32>
    %522 = arith.addf %518, %521 : vector<8x1xf32>
    %523 = math.rsqrt %522 : vector<8x1xf32>
    %524 = vector.broadcast %523 : vector<8x1xf32> to vector<8x32xf32>
    %525 = arith.mulf %520, %524 : vector<8x32xf32>
    %526 = vector.broadcast %506 : vector<1x32xf32> to vector<8x32xf32>
    %527 = arith.mulf %525, %526 : vector<8x32xf32>
    %528 = vector.broadcast %507 : vector<1x32xf32> to vector<8x32xf32>
    %529 = arith.addf %527, %528 : vector<8x32xf32>
    %cst_82 = arith.constant 0.000000e+00 : f32
    %530 = vector.broadcast %cst_82 : f32 to vector<8x32xf32>
    %531 = arith.maximumf %529, %530 : vector<8x32xf32>
    %c192 = arith.constant 192 : index
    %c0_83 = arith.constant 0 : index
    %532 = vector.load %arg3[%c192, %c0_83] : memref<448x128xbf16, #tpu.memory_space<vmem>>, vector<64x32xbf16>
    %533 = arith.truncf %501 : vector<8x64xf32> to vector<8x64xbf16>
    %cst_84 = arith.constant dense<0.000000e+00> : vector<8x32xf32>
    %534 = tpu.matmul %533, %532, %cst_84 {dimension_numbers = #tpu.dot_dimension_numbers<[1], [0], [0], [1], [0, 0, 1, 1], [], []>} : vector<8x64xbf16>, vector<64x32xbf16>, vector<8x32xf32> -> vector<8x32xf32>
    %c0_85 = arith.constant 0 : index
    %c2304 = arith.constant 2304 : index
    %535 = vector.load %arg2[%c0_85, %c2304] : memref<1x2944xf32, #tpu.memory_space<vmem>>, vector<1x32xf32>
    %536 = vector.broadcast %535 : vector<1x32xf32> to vector<8x32xf32>
    %537 = arith.addf %534, %536 : vector<8x32xf32>
    %c0_86 = arith.constant 0 : index
    %c2432 = arith.constant 2432 : index
    %538 = vector.load %arg2[%c0_86, %c2432] : memref<1x2944xf32, #tpu.memory_space<vmem>>, vector<1x32xf32>
    %c0_87 = arith.constant 0 : index
    %c2560 = arith.constant 2560 : index
    %539 = vector.load %arg2[%c0_87, %c2560] : memref<1x2944xf32, #tpu.memory_space<vmem>>, vector<1x32xf32>
    %cst_88 = arith.constant dense<0.000000e+00> : vector<8xf32>
    %540 = vector.multi_reduction <add>, %537, %cst_88 [1] : vector<8x32xf32> to vector<8xf32>
    %541 = vector.shape_cast %540 : vector<8xf32> to vector<8x1xf32>
    %cst_89 = arith.constant 3.200000e+01 : f32
    %542 = vector.broadcast %cst_89 : f32 to vector<8x1xf32>
    %543 = arith.divf %541, %542 : vector<8x1xf32>
    %544 = vector.broadcast %543 : vector<8x1xf32> to vector<8x32xf32>
    %545 = arith.subf %537, %544 : vector<8x32xf32>
    %546 = arith.mulf %545, %545 : vector<8x32xf32>
    %cst_90 = arith.constant dense<0.000000e+00> : vector<8xf32>
    %547 = vector.multi_reduction <add>, %546, %cst_90 [1] : vector<8x32xf32> to vector<8xf32>
    %548 = vector.shape_cast %547 : vector<8xf32> to vector<8x1xf32>
    %cst_91 = arith.constant 3.200000e+01 : f32
    %549 = vector.broadcast %cst_91 : f32 to vector<8x1xf32>
    %550 = arith.divf %548, %549 : vector<8x1xf32>
    %551 = vector.broadcast %543 : vector<8x1xf32> to vector<8x32xf32>
    %552 = arith.subf %537, %551 : vector<8x32xf32>
    %cst_92 = arith.constant 9.99999974E-6 : f32
    %553 = vector.broadcast %cst_92 : f32 to vector<8x1xf32>
    %554 = arith.addf %550, %553 : vector<8x1xf32>
    %555 = math.rsqrt %554 : vector<8x1xf32>
    %556 = vector.broadcast %555 : vector<8x1xf32> to vector<8x32xf32>
    %557 = arith.mulf %552, %556 : vector<8x32xf32>
    %558 = vector.broadcast %538 : vector<1x32xf32> to vector<8x32xf32>
    %559 = arith.mulf %557, %558 : vector<8x32xf32>
    %560 = vector.broadcast %539 : vector<1x32xf32> to vector<8x32xf32>
    %561 = arith.addf %559, %560 : vector<8x32xf32>
    %cst_93 = arith.constant 0.000000e+00 : f32
    %562 = vector.broadcast %cst_93 : f32 to vector<8x32xf32>
    %563 = arith.maximumf %561, %562 : vector<8x32xf32>
    %564 = tpu.concatenate %563, %531 in 1 : vector<8x32xf32>, vector<8x32xf32> -> vector<8x64xf32>
    %c256_94 = arith.constant 256 : index
    %c0_95 = arith.constant 0 : index
    %565 = vector.load %arg3[%c256_94, %c0_95] : memref<448x128xbf16, #tpu.memory_space<vmem>>, vector<64x128xbf16>
    %566 = arith.truncf %564 : vector<8x64xf32> to vector<8x64xbf16>
    %cst_96 = arith.constant dense<0.000000e+00> : vector<8x128xf32>
    %567 = tpu.matmul %566, %565, %cst_96 {dimension_numbers = #tpu.dot_dimension_numbers<[1], [0], [0], [1], [0, 0, 1, 1], [], []>} : vector<8x64xbf16>, vector<64x128xbf16>, vector<8x128xf32> -> vector<8x128xf32>
    %c0_97 = arith.constant 0 : index
    %c2688 = arith.constant 2688 : index
    %568 = vector.load %arg2[%c0_97, %c2688] : memref<1x2944xf32, #tpu.memory_space<vmem>>, vector<1x128xf32>
    %569 = vector.broadcast %568 : vector<1x128xf32> to vector<8x128xf32>
    %570 = arith.addf %567, %569 : vector<8x128xf32>
    %cst_98 = arith.constant 0.000000e+00 : f32
    %571 = vector.broadcast %cst_98 : f32 to vector<8x128xf32>
    %572 = arith.maximumf %570, %571 : vector<8x128xf32>
    %c320 = arith.constant 320 : index
    %c0_99 = arith.constant 0 : index
    %573 = vector.load %arg3[%c320, %c0_99] : memref<448x128xbf16, #tpu.memory_space<vmem>>, vector<128x6xbf16>
    %574 = arith.truncf %572 : vector<8x128xf32> to vector<8x128xbf16>
    %cst_100 = arith.constant dense<0.000000e+00> : vector<8x6xf32>
    %575 = tpu.matmul %574, %573, %cst_100 {dimension_numbers = #tpu.dot_dimension_numbers<[1], [0], [0], [1], [0, 0, 1, 1], [], []>} : vector<8x128xbf16>, vector<128x6xbf16>, vector<8x6xf32> -> vector<8x6xf32>
    %c0_101 = arith.constant 0 : index
    %c2816 = arith.constant 2816 : index
    %576 = vector.load %arg2[%c0_101, %c2816] : memref<1x2944xf32, #tpu.memory_space<vmem>>, vector<1x6xf32>
    %577 = vector.broadcast %576 : vector<1x6xf32> to vector<8x6xf32>
    %578 = arith.addf %575, %577 : vector<8x6xf32>
    %c0_102 = arith.constant 0 : index
    %c0_103 = arith.constant 0 : index
    %579 = vector.load %arg4[%c0_102, %c0_103] : memref<8x6xf32, #tpu.memory_space<vmem>>, vector<8x6xf32>
    tpu.vector_store %arg4[%c0_102, %c0_103], %578 {strides = array<i32>} : memref<8x6xf32, #tpu.memory_space<vmem>>, vector<8x6xf32>,
    return
  }
}

</mosaic_0001>

<llo_original>
// kernel: specialized_model_forward.1
$region0: #{specialized_model_forward.1}
  #allocation0 [shape = 'u32[]', space=smem, size = 0x4, offset = 0x4, fixed_abs, tag = 'smem constant byte address 0x4 - core index']
  #allocation1 [shape = 'u32[144,128]{1,0:T(1,128)}', space=vmem, size = 0x12000, scoped, tag = 'internal scratch']
  %s0 = inlined_call_operand.vmem [shape: f32[64,1], index: 0, kind: input, shape index: {}]
  %s1 = inlined_call_operand.hbm [shape: bf16[288,256], index: 1, kind: input, shape index: {}]
  %s2 = inlined_call_operand.vmem [shape: f32[1,2944], index: 2, kind: input, shape index: {}]
  %s3 = inlined_call_operand.hbm [shape: bf16[448,128], index: 3, kind: input, shape index: {}]
  %s4 = inlined_call_operand.hbm [shape: f32[8,6], index: 4, kind: output, shape index: {}]
  %s5 = sld [smem:[#allocation0]]
  $region34: #{specialized_model_forward.1} parent=0
    _
  %s7 = ssub.s32 1, %s5
  %s8 = scalar_select 0, %s7, %s5
  $region1: #{specialized_model_forward.1} parent=0
    #allocation2 [shape = 'u8[147456]{0}', space=vmem, size = 0x24000, scoped, tag = 'input window, operand 1, single buffered']
    #allocation3 [shape = 's32[1]{0}', space=sflag, size = 0x4, scoped, tag = 'scoped memory for specialized_model_forward.1']
    #allocation4 [shape = 's32[1]{0}', space=sflag, size = 0x4, scoped, tag = 'scoped memory for specialized_model_forward.1']
    #allocation5 [shape = 'u8[114688]{0}', space=vmem, size = 0x1c000, scoped, tag = 'input window, operand 3, single buffered']
    #allocation6 [shape = 's32[1]{0}', space=sflag, size = 0x4, scoped, tag = 'scoped memory for specialized_model_forward.1']
    #allocation7 [shape = 'u8[4096]{0}', space=vmem, size = 0x1000, scoped, tag = 'output window, operand 0, single buffered']
    %9 = vsyncpa [#allocation3], 0
    %10 = vsyncpa [#allocation6], 0
    %11 = vsyncpa [#allocation4], 0
    // Predicated region
    $region2: #{specialized_model_forward.1} parent=1 // pred_check
      _
    $region3: #{specialized_model_forward.1} parent=1 // pred_check_branch
      %13 = sbr.rel (0) target = $region5
    $region4: #{specialized_model_forward.1} parent=1 // pred_region
      _
    $region5: #{specialized_model_forward.1} parent=1 // pred_fallthru
      _
    // Predicated region
    $region6: #{specialized_model_forward.1} parent=1 // pred_check
      _
    $region7: #{specialized_model_forward.1} parent=1 // pred_check_branch
      %15 = sbr.rel (0) target = $region9
    $region8: #{specialized_model_forward.1} parent=1 // pred_region
      %s17 = ssub.s32 4608, 4608
      %18 = vsyncadd [#allocation3], %s17
      %s19 = sshll.u32 [#allocation2], 4
      %s20 = int_to_ptr.vmem [resolvable:$true] %s19
      %25 = dma.hbm_to_vmem [thread:$0]  %s1, 4608, %s20, [#allocation3], 128, 128, 8
    $region9: #{specialized_model_forward.1} parent=1 // pred_fallthru
      _
    // Predicated region
    $region10: #{specialized_model_forward.1} parent=1 // pred_check
      _
    $region11: #{specialized_model_forward.1} parent=1 // pred_check_branch
      %27 = sbr.rel (0) target = $region13
    $region12: #{specialized_model_forward.1} parent=1 // pred_region
      _
    $region13: #{specialized_model_forward.1} parent=1 // pred_fallthru
      _
    // Predicated region
    $region14: #{specialized_model_forward.1} parent=1 // pred_check
      _
    $region15: #{specialized_model_forward.1} parent=1 // pred_check_branch
      %29 = sbr.rel (0) target = $region17
    $region16: #{specialized_model_forward.1} parent=1 // pred_region
      %s31 = ssub.s32 3584, 3584
      %32 = vsyncadd [#allocation6], %s31
      %s33 = sshll.u32 [#allocation5], 4
      %s34 = int_to_ptr.vmem [resolvable:$true] %s33
      %39 = dma.hbm_to_vmem [thread:$0]  %s3, 3584, %s34, [#allocation6], 64, 64, 4
    $region17: #{specialized_model_forward.1} parent=1 // pred_fallthru
      _
    // Predicated region
    $region18: #{specialized_model_forward.1} parent=1 // pred_check
      _
    $region19: #{specialized_model_forward.1} parent=1 // pred_check_branch
      %41 = sbr.rel (0) target = $region21
    $region20: #{specialized_model_forward.1} parent=1 // pred_region
      %42 = dma.done [#allocation3], 4608
    $region21: #{specialized_model_forward.1} parent=1 // pred_fallthru
      _
    // Predicated region
    $region22: #{specialized_model_forward.1} parent=1 // pred_check
      _
    $region23: #{specialized_model_forward.1} parent=1 // pred_check_branch
      %44 = sbr.rel (0) target = $region25
    $region24: #{specialized_model_forward.1} parent=1 // pred_region
      %45 = dma.done [#allocation6], 3584
    $region25: #{specialized_model_forward.1} parent=1 // pred_fallthru
      _
    %v47 = vld [vmem:[%s0] sm:$0xff]
    %v48 = vld [vmem:[%s0 + $0x8] sm:$0xff]
    %v49 = vld [vmem:[%s0 + $0x10] sm:$0xff]
    %v50 = vld [vmem:[%s0 + $0x18] sm:$0xff]
    %v51 = vld [vmem:[%s0 + $0x20] sm:$0xff]
    %v52 = vld [vmem:[%s0 + $0x28] sm:$0xff]
    %v53 = vld [vmem:[%s0 + $0x30] sm:$0xff]
    %v54 = vld [vmem:[%s0 + $0x38] sm:$0xff]
    %v55 = vld [vmem:[#allocation2] sm:$0x11]
    %v56 = vunpack.c.l.bf16 %v55
    %v57 = vunpack.c.h.bf16 %v55
    %59 = vset.pattern.permute.xlu0 0
    %60 = vperm.xlu0 %59, %v47
    %v61 = vpop.permute.xlu0 %60
    %64 = vset.pattern.permute.xlu0 0
    %65 = vperm.xlu0 %64, %v48
    %v66 = vpop.permute.xlu0 %65
    %69 = vset.pattern.permute.xlu0 0
    %70 = vperm.xlu0 %69, %v49
    %v71 = vpop.permute.xlu0 %70
    %74 = vset.pattern.permute.xlu0 0
    %75 = vperm.xlu0 %74, %v50
    %v76 = vpop.permute.xlu0 %75
    %79 = vset.pattern.permute.xlu0 0
    %80 = vperm.xlu0 %79, %v51
    %v81 = vpop.permute.xlu0 %80
    %84 = vset.pattern.permute.xlu0 0
    %85 = vperm.xlu0 %84, %v52
    %v86 = vpop.permute.xlu0 %85
    %89 = vset.pattern.permute.xlu0 0
    %90 = vperm.xlu0 %89, %v53
    %v91 = vpop.permute.xlu0 %90
    %94 = vset.pattern.permute.xlu0 0
    %95 = vperm.xlu0 %94, %v54
    %v96 = vpop.permute.xlu0 %95
    %v98 = vlaneseq
    %v99 = vshrl.u32 %v98, 7
    %v100 = vsub.s32 0, %v99
    %v101 = vrot.slane %v56, %v100
    %v102 = vlaneseq
    %v103 = vshrl.u32 %v102, 7
    %v104 = vsub.s32 0, %v103
    %v105 = vrot.slane %v57, %v104
    %v106 = vmul.f32 %v61, %v101
    %v107 = vmul.f32 %v61, %v105
    %v108 = vmul.f32 %v66, %v101
    %v109 = vmul.f32 %v66, %v105
    %v110 = vmul.f32 %v71, %v101
    %v111 = vmul.f32 %v71, %v105
    %v112 = vmul.f32 %v76, %v101
    %v113 = vmul.f32 %v76, %v105
    %v114 = vmul.f32 %v81, %v101
    %v115 = vmul.f32 %v81, %v105
    %v116 = vmul.f32 %v86, %v101
    %v117 = vmul.f32 %v86, %v105
    %v118 = vmul.f32 %v91, %v101
    %v119 = vmul.f32 %v91, %v105
    %v120 = vmul.f32 %v96, %v101
    %v121 = vmul.f32 %v96, %v105
    %v122 = vld [vmem:[%s2] sm:$0x3]
    %v124 = vlaneseq
    %v125 = vshrl.u32 %v124, 7
    %v126 = vsub.s32 0, %v125
    %v127 = vrot.slane %v122, %v126
    %v128 = vlaneseq
    %v129 = vshrl.u32 %v128, 7
    %v130 = vsub.s32 1, %v129
    %v131 = vrot.slane %v122, %v130
    %v134 = vadd.f32 %v106, %v127
    %v135 = vadd.f32 %v107, %v131
    %v136 = vadd.f32 %v108, %v127
    %v137 = vadd.f32 %v109, %v131
    %v138 = vadd.f32 %v110, %v127
    %v139 = vadd.f32 %v111, %v131
    %v140 = vadd.f32 %v112, %v127
    %v141 = vadd.f32 %v113, %v131
    %v142 = vadd.f32 %v114, %v127
    %v143 = vadd.f32 %v115, %v131
    %v144 = vadd.f32 %v116, %v127
    %v145 = vadd.f32 %v117, %v131
    %v146 = vadd.f32 %v118, %v127
    %v147 = vadd.f32 %v119, %v131
    %v148 = vadd.f32 %v120, %v127
    %v149 = vadd.f32 %v121, %v131
    %v150 = vld [vmem:[#allocation2 + $0x10] sm:$0x11]
    %v151 = vunpack.c.l.bf16 %v150
    %v152 = vunpack.c.h.bf16 %v150
    %v153 = vlaneseq
    %v154 = vshrl.u32 %v153, 7
    %v155 = vsub.s32 0, %v154
    %v156 = vrot.slane %v151, %v155
    %v157 = vlaneseq
    %v158 = vshrl.u32 %v157, 7
    %v159 = vsub.s32 0, %v158
    %v160 = vrot.slane %v152, %v159
    %v161 = vmul.f32 %v61, %v156
    %v162 = vmul.f32 %v61, %v160
    %v163 = vmul.f32 %v66, %v156
    %v164 = vmul.f32 %v66, %v160
    %v165 = vmul.f32 %v71, %v156
    %v166 = vmul.f32 %v71, %v160
    %v167 = vmul.f32 %v76, %v156
    %v168 = vmul.f32 %v76, %v160
    %v169 = vmul.f32 %v81, %v156
    %v170 = vmul.f32 %v81, %v160
    %v171 = vmul.f32 %v86, %v156
    %v172 = vmul.f32 %v86, %v160
    %v173 = vmul.f32 %v91, %v156
    %v174 = vmul.f32 %v91, %v160
    %v175 = vmul.f32 %v96, %v156
    %v176 = vmul.f32 %v96, %v160
    %v177 = vld [vmem:[%s2 + $0x2] sm:$0x3]
    %v179 = vlaneseq
    %v180 = vshrl.u32 %v179, 7
    %v181 = vsub.s32 0, %v180
    %v182 = vrot.slane %v177, %v181
    %v183 = vlaneseq
    %v184 = vshrl.u32 %v183, 7
    %v185 = vsub.s32 1, %v184
    %v186 = vrot.slane %v177, %v185
    %v189 = vadd.f32 %v161, %v182
    %v190 = vadd.f32 %v162, %v186
    %v191 = vadd.f32 %v163, %v182
    %v192 = vadd.f32 %v164, %v186
    %v193 = vadd.f32 %v165, %v182
    %v194 = vadd.f32 %v166, %v186
    %v195 = vadd.f32 %v167, %v182
    %v196 = vadd.f32 %v168, %v186
    %v197 = vadd.f32 %v169, %v182
    %v198 = vadd.f32 %v170, %v186
    %v199 = vadd.f32 %v171, %v182
    %v200 = vadd.f32 %v172, %v186
    %v201 = vadd.f32 %v173, %v182
    %v202 = vadd.f32 %v174, %v186
    %v203 = vadd.f32 %v175, %v182
    %v204 = vadd.f32 %v176, %v186
    %v205 = vld [vmem:[#allocation2 + $0x20] sm:$0xff]
    %v206 = vld [vmem:[#allocation2 + $0x28] sm:$0xff]
    %v207 = vld [vmem:[#allocation2 + $0x30] sm:$0xff]
    %v208 = vld [vmem:[#allocation2 + $0x38] sm:$0xff]
    %v209 = vld [vmem:[#allocation2 + $0x40] sm:$0xff]
    %v210 = vld [vmem:[#allocation2 + $0x48] sm:$0xff]
    %v211 = vld [vmem:[#allocation2 + $0x50] sm:$0xff]
    %v212 = vld [vmem:[#allocation2 + $0x58] sm:$0xff]
    %v213 = vadd.f32 %v134, %v203
    %v214 = vadd.f32 %v135, %v204
    %v215 = vxor.u32 %v213, 2147483648
    %v216 = vxor.u32 %v214, 2147483648
    %v217 = vmul.f32 %v215, 1.442695
    %v218 = vpow.pop %v217
    %v219 = vmul.f32 %v216, 1.442695
    %v220 = vpow.pop %v219
    %v221 = vadd.f32 %v218, 1.0
    %v222 = vadd.f32 %v220, 1.0
    %v223 = vrcp.pop %v221
    %v224 = vmul.f32 1.0, %v223
    %v225 = vrcp.pop %v222
    %v226 = vmul.f32 1.0, %v225
    %v227 = vtanh.pop %v214
    %v228 = vmul.f32 %v224, 0.0
    %230 = vrot.lane.b32.xlu0 %v227, 64
    %v231 = vpop.permute.xlu0 %230
    %v233 = vmul.f32 %v224, %v231
    %235 = vrot.lane.b32.xlu0 %v233, 64
    %v236 = vpop.permute.xlu0 %235
    %v238 = vadd.f32 %v228, %v236
    %v239 = vtanh.pop %v238
    %241 = vrot.lane.b32.xlu0 %v239, 64
    %v242 = vpop.permute.xlu0 %241
    %v244 = vmul.f32 %v226, %v242
    %v245 = vadd.f32 %v136, %v201
    %v246 = vadd.f32 %v137, %v202
    %v247 = vpack.c.bf16 %v244, %v244
    %v256 = vunpack.c.l.b16 %v205
    %v257 = vunpack.c.h.b16 %v205
    %v258 = vunpack.c.l.b16 %v206
    %v259 = vunpack.c.h.b16 %v206
    %v260 = vunpack.c.l.b16 %v207
    %v261 = vunpack.c.h.b16 %v207
    %v262 = vunpack.c.l.b16 %v208
    %v263 = vunpack.c.h.b16 %v208
    %v264 = vunpack.c.l.b16 %v209
    %v265 = vunpack.c.h.b16 %v209
    %v266 = vunpack.c.l.b16 %v210
    %v267 = vunpack.c.h.b16 %v210
    %v268 = vunpack.c.l.b16 %v211
    %v269 = vunpack.c.h.b16 %v211
    %v270 = vunpack.c.l.b16 %v212
    %v271 = vunpack.c.h.b16 %v212
    %v272 = vpack.c.b16 %v258, %v256
    %v273 = vpack.c.b16 %v259, %v257
    %v274 = vpack.c.b16 %v262, %v260
    %v275 = vpack.c.b16 %v263, %v261
    %v276 = vpack.c.b16 %v266, %v264
    %v277 = vpack.c.b16 %v267, %v265
    %v278 = vpack.c.b16 %v270, %v268
    %v279 = vpack.c.b16 %v271, %v269
    %vm288 = vcmask 523264
    %v290 = vsel %vm288, %v247, 0
    %292 = vmatprep.subr.bf16.mxu0 %v273
    %293 = vmatpush1.bf16.msra.mxu0 %v272
    %294 = vmatprep.subr.bf16.mxu0 %v275
    %295 = vmatpush1.bf16.msra.mxu0 %v274
    %296 = vmatprep.subr.bf16.mxu0 %v277
    %297 = vmatpush1.bf16.msra.mxu0 %v276
    %298 = vmatprep.subr.bf16.mxu0 %v279
    %299 = vmatpush1.bf16.msra.mxu0 %v278
    %300 = vmatprep.subr.bf16.mxu0 0
    %301 = vmatpush1.bf16.msra.mxu0 0
    %302 = vmatprep.subr.bf16.mxu0 0
    %303 = vmatpush1.bf16.msra.mxu0 0
    %304 = vmatprep.subr.bf16.mxu0 0
    %305 = vmatpush1.bf16.msra.mxu0 0
    %306 = vmatprep.subr.bf16.mxu0 0
    %307 = vmatpush1.bf16.msra.mxu0 0
    %308 = vmatprep.subr.bf16.mxu0 0
    %309 = vmatpush1.bf16.msra.mxu0 0
    %310 = vmatprep.subr.bf16.mxu0 0
    %311 = vmatpush1.bf16.msra.mxu0 0
    %312 = vmatprep.subr.bf16.mxu0 0
    %313 = vmatpush1.bf16.msra.mxu0 0
    %314 = vmatprep.subr.bf16.mxu0 0
    %315 = vmatpush1.bf16.msra.mxu0 0
    %316 = vmatprep.subr.bf16.mxu0 0
    %317 = vmatpush1.bf16.msra.mxu0 0
    %318 = vmatprep.subr.bf16.mxu0 0
    %319 = vmatpush1.bf16.msra.mxu0 0
    %320 = vmatprep.subr.bf16.mxu0 0
    %321 = vmatpush1.bf16.msra.mxu0 0
    %322 = vmatprep.subr.bf16.mxu0 0
    %323 = vmatpush1.bf16.msra.mxu0 0
    %324 = vmatprep.mubr.bf16.mxu0 0
    %325 = vmatmul.mubr.bf16.gmra.mrb[0].mxu0 %v290
    %v326 = vpop.f32.mrb[0].mxu0
    %v327 = vadd.f32 0.0, %v326
    %v328 = vpop.f32.mrb[0].mxu0
    %v329 = vadd.f32 0.0, %v328
    %v330 = vpop.f32.mrb[0].mxu0
    %v331 = vpop.f32.mrb[0].mxu0
    %332 = vdwg.mxu0
    %v333 = vadd.f32 %v245, %v327
    %v334 = vadd.f32 %v246, %v329
    %v335 = vxor.u32 %v333, 2147483648
    %v336 = vxor.u32 %v334, 2147483648
    %v337 = vmul.f32 %v335, 1.442695
    %v338 = vpow.pop %v337
    %v339 = vmul.f32 %v336, 1.442695
    %v340 = vpow.pop %v339
    %v341 = vadd.f32 %v338, 1.0
    %v342 = vadd.f32 %v340, 1.0
    %v343 = vrcp.pop %v341
    %v344 = vmul.f32 1.0, %v343
    %v345 = vrcp.pop %v342
    %v346 = vmul.f32 1.0, %v345
    %v347 = vtanh.pop %v334
    %v348 = vmul.f32 %v344, %v238
    %350 = vrot.lane.b32.xlu0 %v347, 64
    %v351 = vpop.permute.xlu0 %350
    %v353 = vmul.f32 %v344, %v351
    %355 = vrot.lane.b32.xlu0 %v353, 64
    %v356 = vpop.permute.xlu0 %355
    %v358 = vadd.f32 %v348, %v356
    %v359 = vtanh.pop %v358
    %361 = vrot.lane.b32.xlu0 %v359, 64
    %v362 = vpop.permute.xlu0 %361
    %v364 = vmul.f32 %v346, %v362
    %v365 = vadd.f32 %v138, %v199
    %v366 = vadd.f32 %v139, %v200
    %v367 = vpack.c.bf16 %v364, %v364
    %v369 = vsel %vm288, %v367, 0
    %371 = vmatprep.subr.bf16.mxu0 %v273
    %372 = vmatpush1.bf16.msra.mxu0 %v272
    %373 = vmatprep.subr.bf16.mxu0 %v275
    %374 = vmatpush1.bf16.msra.mxu0 %v274
    %375 = vmatprep.subr.bf16.mxu0 %v277
    %376 = vmatpush1.bf16.msra.mxu0 %v276
    %377 = vmatprep.subr.bf16.mxu0 %v279
    %378 = vmatpush1.bf16.msra.mxu0 %v278
    %379 = vmatprep.subr.bf16.mxu0 0
    %380 = vmatpush1.bf16.msra.mxu0 0
    %381 = vmatprep.subr.bf16.mxu0 0
    %382 = vmatpush1.bf16.msra.mxu0 0
    %383 = vmatprep.subr.bf16.mxu0 0
    %384 = vmatpush1.bf16.msra.mxu0 0
    %385 = vmatprep.subr.bf16.mxu0 0
    %386 = vmatpush1.bf16.msra.mxu0 0
    %387 = vmatprep.subr.bf16.mxu0 0
    %388 = vmatpush1.bf16.msra.mxu0 0
    %389 = vmatprep.subr.bf16.mxu0 0
    %390 = vmatpush1.bf16.msra.mxu0 0
    %391 = vmatprep.subr.bf16.mxu0 0
    %392 = vmatpush1.bf16.msra.mxu0 0
    %393 = vmatprep.subr.bf16.mxu0 0
    %394 = vmatpush1.bf16.msra.mxu0 0
    %395 = vmatprep.subr.bf16.mxu0 0
    %396 = vmatpush1.bf16.msra.mxu0 0
    %397 = vmatprep.subr.bf16.mxu0 0
    %398 = vmatpush1.bf16.msra.mxu0 0
    %399 = vmatprep.subr.bf16.mxu0 0
    %400 = vmatpush1.bf16.msra.mxu0 0
    %401 = vmatprep.subr.bf16.mxu0 0
    %402 = vmatpush1.bf16.msra.mxu0 0
    %403 = vmatprep.mubr.bf16.mxu0 0
    %404 = vmatmul.mubr.bf16.gmra.mrb[0].mxu0 %v369
    %v405 = vpop.f32.mrb[0].mxu0
    %v406 = vadd.f32 0.0, %v405
    %v407 = vpop.f32.mrb[0].mxu0
    %v408 = vadd.f32 0.0, %v407
    %v409 = vpop.f32.mrb[0].mxu0
    %v410 = vpop.f32.mrb[0].mxu0
    %411 = vdwg.mxu0
    %v412 = vadd.f32 %v365, %v406
    %v413 = vadd.f32 %v366, %v408
    %v414 = vxor.u32 %v412, 2147483648
    %v415 = vxor.u32 %v413, 2147483648
    %v416 = vmul.f32 %v414, 1.442695
    %v417 = vpow.pop %v416
    %v418 = vmul.f32 %v415, 1.442695
    %v419 = vpow.pop %v418
    %v420 = vadd.f32 %v417, 1.0
    %v421 = vadd.f32 %v419, 1.0
    %v422 = vrcp.pop %v420
    %v423 = vmul.f32 1.0, %v422
    %v424 = vrcp.pop %v421
    %v425 = vmul.f32 1.0, %v424
    %v426 = vtanh.pop %v413
    %v427 = vmul.f32 %v423, %v358
    %429 = vrot.lane.b32.xlu0 %v426, 64
    %v430 = vpop.permute.xlu0 %429
    %v432 = vmul.f32 %v423, %v430
    %434 = vrot.lane.b32.xlu0 %v432, 64
    %v435 = vpop.permute.xlu0 %434
    %v437 = vadd.f32 %v427, %v435
    %v438 = vtanh.pop %v437
    %440 = vrot.lane.b32.xlu0 %v438, 64
    %v441 = vpop.permute.xlu0 %440
    %v443 = vmul.f32 %v425, %v441
    %v444 = vadd.f32 %v140, %v197
    %v445 = vadd.f32 %v141, %v198
    %v446 = vpack.c.bf16 %v443, %v443
    %v448 = vsel %vm288, %v446, 0
    %450 = vmatprep.subr.bf16.mxu0 %v273
    %451 = vmatpush1.bf16.msra.mxu0 %v272
    %452 = vmatprep.subr.bf16.mxu0 %v275
    %453 = vmatpush1.bf16.msra.mxu0 %v274
    %454 = vmatprep.subr.bf16.mxu0 %v277
    %455 = vmatpush1.bf16.msra.mxu0 %v276
    %456 = vmatprep.subr.bf16.mxu0 %v279
    %457 = vmatpush1.bf16.msra.mxu0 %v278
    %458 = vmatprep.subr.bf16.mxu0 0
    %459 = vmatpush1.bf16.msra.mxu0 0
    %460 = vmatprep.subr.bf16.mxu0 0
    %461 = vmatpush1.bf16.msra.mxu0 0
    %462 = vmatprep.subr.bf16.mxu0 0
    %463 = vmatpush1.bf16.msra.mxu0 0
    %464 = vmatprep.subr.bf16.mxu0 0
    %465 = vmatpush1.bf16.msra.mxu0 0
    %466 = vmatprep.subr.bf16.mxu0 0
    %467 = vmatpush1.bf16.msra.mxu0 0
    %468 = vmatprep.subr.bf16.mxu0 0
    %469 = vmatpush1.bf16.msra.mxu0 0
    %470 = vmatprep.subr.bf16.mxu0 0
    %471 = vmatpush1.bf16.msra.mxu0 0
    %472 = vmatprep.subr.bf16.mxu0 0
    %473 = vmatpush1.bf16.msra.mxu0 0
    %474 = vmatprep.subr.bf16.mxu0 0
    %475 = vmatpush1.bf16.msra.mxu0 0
    %476 = vmatprep.subr.bf16.mxu0 0
    %477 = vmatpush1.bf16.msra.mxu0 0
    %478 = vmatprep.subr.bf16.mxu0 0
    %479 = vmatpush1.bf16.msra.mxu0 0
    %480 = vmatprep.subr.bf16.mxu0 0
    %481 = vmatpush1.bf16.msra.mxu0 0
    %482 = vmatprep.mubr.bf16.mxu0 0
    %483 = vmatmul.mubr.bf16.gmra.mrb[0].mxu0 %v448
    %v484 = vpop.f32.mrb[0].mxu0
    %v485 = vadd.f32 0.0, %v484
    %v486 = vpop.f32.mrb[0].mxu0
    %v487 = vadd.f32 0.0, %v486
    %v488 = vpop.f32.mrb[0].mxu0
    %v489 = vpop.f32.mrb[0].mxu0
    %490 = vdwg.mxu0
    %v491 = vadd.f32 %v444, %v485
    %v492 = vadd.f32 %v445, %v487
    %v493 = vxor.u32 %v491, 2147483648
    %v494 = vxor.u32 %v492, 2147483648
    %v495 = vmul.f32 %v493, 1.442695
    %v496 = vpow.pop %v495
    %v497 = vmul.f32 %v494, 1.442695
    %v498 = vpow.pop %v497
    %v499 = vadd.f32 %v496, 1.0
    %v500 = vadd.f32 %v498, 1.0
    %v501 = vrcp.pop %v499
    %v502 = vmul.f32 1.0, %v501
    %v503 = vrcp.pop %v500
    %v504 = vmul.f32 1.0, %v503
    %v505 = vtanh.pop %v492
    %v506 = vmul.f32 %v502, %v437
    %508 = vrot.lane.b32.xlu0 %v505, 64
    %v509 = vpop.permute.xlu0 %508
    %v511 = vmul.f32 %v502, %v509
    %513 = vrot.lane.b32.xlu0 %v511, 64
    %v514 = vpop.permute.xlu0 %513
    %v516 = vadd.f32 %v506, %v514
    %v517 = vtanh.pop %v516
    %519 = vrot.lane.b32.xlu0 %v517, 64
    %v520 = vpop.permute.xlu0 %519
    %v522 = vmul.f32 %v504, %v520
    %v523 = vadd.f32 %v142, %v195
    %v524 = vadd.f32 %v143, %v196
    %v525 = vpack.c.bf16 %v522, %v522
    %v527 = vsel %vm288, %v525, 0
    %529 = vmatprep.subr.bf16.mxu0 %v273
    %530 = vmatpush1.bf16.msra.mxu0 %v272
    %531 = vmatprep.subr.bf16.mxu0 %v275
    %532 = vmatpush1.bf16.msra.mxu0 %v274
    %533 = vmatprep.subr.bf16.mxu0 %v277
    %534 = vmatpush1.bf16.msra.mxu0 %v276
    %535 = vmatprep.subr.bf16.mxu0 %v279
    %536 = vmatpush1.bf16.msra.mxu0 %v278
    %537 = vmatprep.subr.bf16.mxu0 0
    %538 = vmatpush1.bf16.msra.mxu0 0
    %539 = vmatprep.subr.bf16.mxu0 0
    %540 = vmatpush1.bf16.msra.mxu0 0
    %541 = vmatprep.subr.bf16.mxu0 0
    %542 = vmatpush1.bf16.msra.mxu0 0
    %543 = vmatprep.subr.bf16.mxu0 0
    %544 = vmatpush1.bf16.msra.mxu0 0
    %545 = vmatprep.subr.bf16.mxu0 0
    %546 = vmatpush1.bf16.msra.mxu0 0
    %547 = vmatprep.subr.bf16.mxu0 0
    %548 = vmatpush1.bf16.msra.mxu0 0
    %549 = vmatprep.subr.bf16.mxu0 0
    %550 = vmatpush1.bf16.msra.mxu0 0
    %551 = vmatprep.subr.bf16.mxu0 0
    %552 = vmatpush1.bf16.msra.mxu0 0
    %553 = vmatprep.subr.bf16.mxu0 0
    %554 = vmatpush1.bf16.msra.mxu0 0
    %555 = vmatprep.subr.bf16.mxu0 0
    %556 = vmatpush1.bf16.msra.mxu0 0
    %557 = vmatprep.subr.bf16.mxu0 0
    %558 = vmatpush1.bf16.msra.mxu0 0
    %559 = vmatprep.subr.bf16.mxu0 0
    %560 = vmatpush1.bf16.msra.mxu0 0
    %561 = vmatprep.mubr.bf16.mxu0 0
    %562 = vmatmul.mubr.bf16.gmra.mrb[0].mxu0 %v527
    %v563 = vpop.f32.mrb[0].mxu0
    %v564 = vadd.f32 0.0, %v563
    %v565 = vpop.f32.mrb[0].mxu0
    %v566 = vadd.f32 0.0, %v565
    %v567 = vpop.f32.mrb[0].mxu0
    %v568 = vpop.f32.mrb[0].mxu0
    %569 = vdwg.mxu0
    %v570 = vadd.f32 %v523, %v564
    %v571 = vadd.f32 %v524, %v566
    %v572 = vxor.u32 %v570, 2147483648
    %v573 = vxor.u32 %v571, 2147483648
    %v574 = vmul.f32 %v572, 1.442695
    %v575 = vpow.pop %v574
    %v576 = vmul.f32 %v573, 1.442695
    %v577 = vpow.pop %v576
    %v578 = vadd.f32 %v575, 1.0
    %v579 = vadd.f32 %v577, 1.0
    %v580 = vrcp.pop %v578
    %v581 = vmul.f32 1.0, %v580
    %v582 = vrcp.pop %v579
    %v583 = vmul.f32 1.0, %v582
    %v584 = vtanh.pop %v571
    %v585 = vmul.f32 %v581, %v516
    %587 = vrot.lane.b32.xlu0 %v584, 64
    %v588 = vpop.permute.xlu0 %587
    %v590 = vmul.f32 %v581, %v588
    %592 = vrot.lane.b32.xlu0 %v590, 64
    %v593 = vpop.permute.xlu0 %592
    %v595 = vadd.f32 %v585, %v593
    %v596 = vtanh.pop %v595
    %598 = vrot.lane.b32.xlu0 %v596, 64
    %v599 = vpop.permute.xlu0 %598
    %v601 = vmul.f32 %v583, %v599
    %v602 = vadd.f32 %v144, %v193
    %v603 = vadd.f32 %v145, %v194
    %v604 = vpack.c.bf16 %v601, %v601
    %v606 = vsel %vm288, %v604, 0
    %608 = vmatprep.subr.bf16.mxu0 %v273
    %609 = vmatpush1.bf16.msra.mxu0 %v272
    %610 = vmatprep.subr.bf16.mxu0 %v275
    %611 = vmatpush1.bf16.msra.mxu0 %v274
    %612 = vmatprep.subr.bf16.mxu0 %v277
    %613 = vmatpush1.bf16.msra.mxu0 %v276
    %614 = vmatprep.subr.bf16.mxu0 %v279
    %615 = vmatpush1.bf16.msra.mxu0 %v278
    %616 = vmatprep.subr.bf16.mxu0 0
    %617 = vmatpush1.bf16.msra.mxu0 0
    %618 = vmatprep.subr.bf16.mxu0 0
    %619 = vmatpush1.bf16.msra.mxu0 0
    %620 = vmatprep.subr.bf16.mxu0 0
    %621 = vmatpush1.bf16.msra.mxu0 0
    %622 = vmatprep.subr.bf16.mxu0 0
    %623 = vmatpush1.bf16.msra.mxu0 0
    %624 = vmatprep.subr.bf16.mxu0 0
    %625 = vmatpush1.bf16.msra.mxu0 0
    %626 = vmatprep.subr.bf16.mxu0 0
    %627 = vmatpush1.bf16.msra.mxu0 0
    %628 = vmatprep.subr.bf16.mxu0 0
    %629 = vmatpush1.bf16.msra.mxu0 0
    %630 = vmatprep.subr.bf16.mxu0 0
    %631 = vmatpush1.bf16.msra.mxu0 0
    %632 = vmatprep.subr.bf16.mxu0 0
    %633 = vmatpush1.bf16.msra.mxu0 0
    %634 = vmatprep.subr.bf16.mxu0 0
    %635 = vmatpush1.bf16.msra.mxu0 0
    %636 = vmatprep.subr.bf16.mxu0 0
    %637 = vmatpush1.bf16.msra.mxu0 0
    %638 = vmatprep.subr.bf16.mxu0 0
    %639 = vmatpush1.bf16.msra.mxu0 0
    %640 = vmatprep.mubr.bf16.mxu0 0
    %641 = vmatmul.mubr.bf16.gmra.mrb[0].mxu0 %v606
    %v642 = vpop.f32.mrb[0].mxu0
    %v643 = vadd.f32 0.0, %v642
    %v644 = vpop.f32.mrb[0].mxu0
    %v645 = vadd.f32 0.0, %v644
    %v646 = vpop.f32.mrb[0].mxu0
    %v647 = vpop.f32.mrb[0].mxu0
    %648 = vdwg.mxu0
    %v649 = vadd.f32 %v602, %v643
    %v650 = vadd.f32 %v603, %v645
    %v651 = vxor.u32 %v649, 2147483648
    %v652 = vxor.u32 %v650, 2147483648
    %v653 = vmul.f32 %v651, 1.442695
    %v654 = vpow.pop %v653
    %v655 = vmul.f32 %v652, 1.442695
    %v656 = vpow.pop %v655
    %v657 = vadd.f32 %v654, 1.0
    %v658 = vadd.f32 %v656, 1.0
    %v659 = vrcp.pop %v657
    %v660 = vmul.f32 1.0, %v659
    %v661 = vrcp.pop %v658
    %v662 = vmul.f32 1.0, %v661
    %v663 = vtanh.pop %v650
    %v664 = vmul.f32 %v660, %v595
    %666 = vrot.lane.b32.xlu0 %v663, 64
    %v667 = vpop.permute.xlu0 %666
    %v669 = vmul.f32 %v660, %v667
    %671 = vrot.lane.b32.xlu0 %v669, 64
    %v672 = vpop.permute.xlu0 %671
    %v674 = vadd.f32 %v664, %v672
    %v675 = vtanh.pop %v674
    %677 = vrot.lane.b32.xlu0 %v675, 64
    %v678 = vpop.permute.xlu0 %677
    %v680 = vmul.f32 %v662, %v678
    %v681 = vadd.f32 %v146, %v191
    %v682 = vadd.f32 %v147, %v192
    %v683 = vpack.c.bf16 %v680, %v680
    %v685 = vsel %vm288, %v683, 0
    %687 = vmatprep.subr.bf16.mxu0 %v273
    %688 = vmatpush1.bf16.msra.mxu0 %v272
    %689 = vmatprep.subr.bf16.mxu0 %v275
    %690 = vmatpush1.bf16.msra.mxu0 %v274
    %691 = vmatprep.subr.bf16.mxu0 %v277
    %692 = vmatpush1.bf16.msra.mxu0 %v276
    %693 = vmatprep.subr.bf16.mxu0 %v279
    %694 = vmatpush1.bf16.msra.mxu0 %v278
    %695 = vmatprep.subr.bf16.mxu0 0
    %696 = vmatpush1.bf16.msra.mxu0 0
    %697 = vmatprep.subr.bf16.mxu0 0
    %698 = vmatpush1.bf16.msra.mxu0 0
    %699 = vmatprep.subr.bf16.mxu0 0
    %700 = vmatpush1.bf16.msra.mxu0 0
    %701 = vmatprep.subr.bf16.mxu0 0
    %702 = vmatpush1.bf16.msra.mxu0 0
    %703 = vmatprep.subr.bf16.mxu0 0
    %704 = vmatpush1.bf16.msra.mxu0 0
    %705 = vmatprep.subr.bf16.mxu0 0
    %706 = vmatpush1.bf16.msra.mxu0 0
    %707 = vmatprep.subr.bf16.mxu0 0
    %708 = vmatpush1.bf16.msra.mxu0 0
    %709 = vmatprep.subr.bf16.mxu0 0
    %710 = vmatpush1.bf16.msra.mxu0 0
    %711 = vmatprep.subr.bf16.mxu0 0
    %712 = vmatpush1.bf16.msra.mxu0 0
    %713 = vmatprep.subr.bf16.mxu0 0
    %714 = vmatpush1.bf16.msra.mxu0 0
    %715 = vmatprep.subr.bf16.mxu0 0
    %716 = vmatpush1.bf16.msra.mxu0 0
    %717 = vmatprep.subr.bf16.mxu0 0
    %718 = vmatpush1.bf16.msra.mxu0 0
    %719 = vmatprep.mubr.bf16.mxu0 0
    %720 = vmatmul.mubr.bf16.gmra.mrb[0].mxu0 %v685
    %v721 = vpop.f32.mrb[0].mxu0
    %v722 = vadd.f32 0.0, %v721
    %v723 = vpop.f32.mrb[0].mxu0
    %v724 = vadd.f32 0.0, %v723
    %v725 = vpop.f32.mrb[0].mxu0
    %v726 = vpop.f32.mrb[0].mxu0
    %727 = vdwg.mxu0
    %v728 = vadd.f32 %v681, %v722
    %v729 = vadd.f32 %v682, %v724
    %v730 = vxor.u32 %v728, 2147483648
    %v731 = vxor.u32 %v729, 2147483648
    %v732 = vmul.f32 %v730, 1.442695
    %v733 = vpow.pop %v732
    %v734 = vmul.f32 %v731, 1.442695
    %v735 = vpow.pop %v734
    %v736 = vadd.f32 %v733, 1.0
    %v737 = vadd.f32 %v735, 1.0
    %v738 = vrcp.pop %v736
    %v739 = vmul.f32 1.0, %v738
    %v740 = vrcp.pop %v737
    %v741 = vmul.f32 1.0, %v740
    %v742 = vtanh.pop %v729
    %v743 = vmul.f32 %v739, %v674
    %745 = vrot.lane.b32.xlu0 %v742, 64
    %v746 = vpop.permute.xlu0 %745
    %v748 = vmul.f32 %v739, %v746
    %750 = vrot.lane.b32.xlu0 %v748, 64
    %v751 = vpop.permute.xlu0 %750
    %v753 = vadd.f32 %v743, %v751
    %v754 = vtanh.pop %v753
    %756 = vrot.lane.b32.xlu0 %v754, 64
    %v757 = vpop.permute.xlu0 %756
    %v759 = vmul.f32 %v741, %v757
    %v760 = vadd.f32 %v148, %v189
    %v761 = vadd.f32 %v149, %v190
    %v762 = vpack.c.bf16 %v759, %v759
    %v764 = vsel %vm288, %v762, 0
    %766 = vmatprep.subr.bf16.mxu0 %v273
    %767 = vmatpush1.bf16.msra.mxu0 %v272
    %768 = vmatprep.subr.bf16.mxu0 %v275
    %769 = vmatpush1.bf16.msra.mxu0 %v274
    %770 = vmatprep.subr.bf16.mxu0 %v277
    %771 = vmatpush1.bf16.msra.mxu0 %v276
    %772 = vmatprep.subr.bf16.mxu0 %v279
    %773 = vmatpush1.bf16.msra.mxu0 %v278
    %774 = vmatprep.subr.bf16.mxu0 0
    %775 = vmatpush1.bf16.msra.mxu0 0
    %776 = vmatprep.subr.bf16.mxu0 0
    %777 = vmatpush1.bf16.msra.mxu0 0
    %778 = vmatprep.subr.bf16.mxu0 0
    %779 = vmatpush1.bf16.msra.mxu0 0
    %780 = vmatprep.subr.bf16.mxu0 0
    %781 = vmatpush1.bf16.msra.mxu0 0
    %782 = vmatprep.subr.bf16.mxu0 0
    %783 = vmatpush1.bf16.msra.mxu0 0
    %784 = vmatprep.subr.bf16.mxu0 0
    %785 = vmatpush1.bf16.msra.mxu0 0
    %786 = vmatprep.subr.bf16.mxu0 0
    %787 = vmatpush1.bf16.msra.mxu0 0
    %788 = vmatprep.subr.bf16.mxu0 0
    %789 = vmatpush1.bf16.msra.mxu0 0
    %790 = vmatprep.subr.bf16.mxu0 0
    %791 = vmatpush1.bf16.msra.mxu0 0
    %792 = vmatprep.subr.bf16.mxu0 0
    %793 = vmatpush1.bf16.msra.mxu0 0
    %794 = vmatprep.subr.bf16.mxu0 0
    %795 = vmatpush1.bf16.msra.mxu0 0
    %796 = vmatprep.subr.bf16.mxu0 0
    %797 = vmatpush1.bf16.msra.mxu0 0
    %798 = vmatprep.mubr.bf16.mxu0 0
    %799 = vmatmul.mubr.bf16.gmra.mrb[0].mxu0 %v764
    %v800 = vpop.f32.mrb[0].mxu0
    %v801 = vadd.f32 0.0, %v800
    %v802 = vpop.f32.mrb[0].mxu0
    %v803 = vadd.f32 0.0, %v802
    %v804 = vpop.f32.mrb[0].mxu0
    %v805 = vpop.f32.mrb[0].mxu0
    %806 = vdwg.mxu0
    %v807 = vadd.f32 %v760, %v801
    %v808 = vadd.f32 %v761, %v803
    %v809 = vxor.u32 %v807, 2147483648
    %v810 = vxor.u32 %v808, 2147483648
    %v811 = vmul.f32 %v809, 1.442695
    %v812 = vpow.pop %v811
    %v813 = vmul.f32 %v810, 1.442695
    %v814 = vpow.pop %v813
    %v815 = vadd.f32 %v812, 1.0
    %v816 = vadd.f32 %v814, 1.0
    %v817 = vrcp.pop %v815
    %v818 = vmul.f32 1.0, %v817
    %v819 = vrcp.pop %v816
    %v820 = vmul.f32 1.0, %v819
    %v821 = vtanh.pop %v808
    %v822 = vmul.f32 %v818, %v753
    %824 = vrot.lane.b32.xlu0 %v821, 64
    %v825 = vpop.permute.xlu0 %824
    %v827 = vmul.f32 %v818, %v825
    %829 = vrot.lane.b32.xlu0 %v827, 64
    %v830 = vpop.permute.xlu0 %829
    %v832 = vadd.f32 %v822, %v830
    %v833 = vtanh.pop %v832
    %835 = vrot.lane.b32.xlu0 %v833, 64
    %v836 = vpop.permute.xlu0 %835
    %v838 = vmul.f32 %v820, %v836
    %vm839 = vcmask 261120
    %v840 = vsel %vm839, %v244, %v838
    %v841 = vsel %vm839, %v364, %v759
    %v842 = vsel %vm839, %v443, %v680
    %v843 = vsel %vm839, %v522, %v601
    %v844 = vsel %vm839, %v601, %v522
    %v845 = vsel %vm839, %v680, %v443
    %v846 = vsel %vm839, %v759, %v364
    %v847 = vsel %vm839, %v838, %v244
    %v848 = vld [vmem:[#allocation2 + $0x60] sm:$0xff]
    %v849 = vld [vmem:[#allocation2 + $0x68] sm:$0xff]
    %v850 = vld [vmem:[#allocation2 + $0x70] sm:$0xff]
    %v851 = vld [vmem:[#allocation2 + $0x78] sm:$0xff]
    %v852 = vld [vmem:[#allocation2 + $0x80] sm:$0xff]
    %v853 = vld [vmem:[#allocation2 + $0x88] sm:$0xff]
    %v854 = vld [vmem:[#allocation2 + $0x90] sm:$0xff]
    %v855 = vld [vmem:[#allocation2 + $0x98] sm:$0xff]
    %v856 = vpack.c.bf16 %v841, %v840
    %v857 = vpack.c.bf16 %v843, %v842
    %v858 = vpack.c.bf16 %v845, %v844
    %v859 = vpack.c.bf16 %v847, %v846
    %v860 = vld [vmem:[%s2 + $0x4] sm:$0x3]
    %v862 = vlaneseq
    %v863 = vshrl.u32 %v862, 7
    %v864 = vsub.s32 0, %v863
    %v865 = vrot.slane %v860, %v864
    %v866 = vlaneseq
    %v867 = vshrl.u32 %v866, 7
    %v868 = vsub.s32 1, %v867
    %v869 = vrot.slane %v860, %v868
    %v880 = vunpack.c.l.b16 %v848
    %v881 = vunpack.c.h.b16 %v848
    %v882 = vunpack.c.l.b16 %v849
    %v883 = vunpack.c.h.b16 %v849
    %v884 = vunpack.c.l.b16 %v850
    %v885 = vunpack.c.h.b16 %v850
    %v886 = vunpack.c.l.b16 %v851
    %v887 = vunpack.c.h.b16 %v851
    %v888 = vunpack.c.l.b16 %v852
    %v889 = vunpack.c.h.b16 %v852
    %v890 = vunpack.c.l.b16 %v853
    %v891 = vunpack.c.h.b16 %v853
    %v892 = vunpack.c.l.b16 %v854
    %v893 = vunpack.c.h.b16 %v854
    %v894 = vunpack.c.l.b16 %v855
    %v895 = vunpack.c.h.b16 %v855
    %v896 = vpack.c.b16 %v882, %v880
    %v897 = vpack.c.b16 %v883, %v881
    %v898 = vpack.c.b16 %v886, %v884
    %v899 = vpack.c.b16 %v887, %v885
    %v900 = vpack.c.b16 %v890, %v888
    %v901 = vpack.c.b16 %v891, %v889
    %v902 = vpack.c.b16 %v894, %v892
    %v903 = vpack.c.b16 %v895, %v893
    %v913 = vsel %vm288, %v856, 0
    %v916 = vsel %vm288, %v857, 0
    %v919 = vsel %vm288, %v858, 0
    %v922 = vsel %vm288, %v859, 0
    %924 = vmatprep.subr.bf16.mxu0 %v897
    %925 = vmatpush1.bf16.msra.mxu0 %v896
    %926 = vmatprep.subr.bf16.mxu0 %v899
    %927 = vmatpush1.bf16.msra.mxu0 %v898
    %928 = vmatprep.subr.bf16.mxu0 %v901
    %929 = vmatpush1.bf16.msra.mxu0 %v900
    %930 = vmatprep.subr.bf16.mxu0 %v903
    %931 = vmatpush1.bf16.msra.mxu0 %v902
    %932 = vmatprep.subr.bf16.mxu0 0
    %933 = vmatpush1.bf16.msra.mxu0 0
    %934 = vmatprep.subr.bf16.mxu0 0
    %935 = vmatpush1.bf16.msra.mxu0 0
    %936 = vmatprep.subr.bf16.mxu0 0
    %937 = vmatpush1.bf16.msra.mxu0 0
    %938 = vmatprep.subr.bf16.mxu0 0
    %939 = vmatpush1.bf16.msra.mxu0 0
    %940 = vmatprep.subr.bf16.mxu0 0
    %941 = vmatpush1.bf16.msra.mxu0 0
    %942 = vmatprep.subr.bf16.mxu0 0
    %943 = vmatpush1.bf16.msra.mxu0 0
    %944 = vmatprep.subr.bf16.mxu0 0
    %945 = vmatpush1.bf16.msra.mxu0 0
    %946 = vmatprep.subr.bf16.mxu0 0
    %947 = vmatpush1.bf16.msra.mxu0 0
    %948 = vmatprep.subr.bf16.mxu0 0
    %949 = vmatpush1.bf16.msra.mxu0 0
    %950 = vmatprep.subr.bf16.mxu0 0
    %951 = vmatpush1.bf16.msra.mxu0 0
    %952 = vmatprep.subr.bf16.mxu0 0
    %953 = vmatpush1.bf16.msra.mxu0 0
    %954 = vmatprep.subr.bf16.mxu0 0
    %955 = vmatpush1.bf16.msra.mxu0 0
    %956 = vmatprep.mubr.bf16.mxu0 0
    %957 = vmatmul.mubr.bf16.gmra.mrb[0].mxu0 %v913
    %v958 = vpop.f32.mrb[0].mxu0
    %v959 = vadd.f32 %v865, %v958
    %v960 = vpop.f32.mrb[0].mxu0
    %v961 = vadd.f32 %v869, %v960
    %v962 = vpop.f32.mrb[0].mxu0
    %v963 = vadd.f32 %v865, %v962
    %v964 = vpop.f32.mrb[0].mxu0
    %v965 = vadd.f32 %v869, %v964
    %966 = vmatprep.mubr.bf16.mxu0 0
    %967 = vmatmul.mubr.bf16.gmra.mrb[0].mxu0 %v916
    %v968 = vpop.f32.mrb[0].mxu0
    %v969 = vadd.f32 %v865, %v968
    %v970 = vpop.f32.mrb[0].mxu0
    %v971 = vadd.f32 %v869, %v970
    %v972 = vpop.f32.mrb[0].mxu0
    %v973 = vadd.f32 %v865, %v972
    %v974 = vpop.f32.mrb[0].mxu0
    %v975 = vadd.f32 %v869, %v974
    %976 = vmatprep.mubr.bf16.mxu0 0
    %977 = vmatmul.mubr.bf16.gmra.mrb[0].mxu0 %v919
    %v978 = vpop.f32.mrb[0].mxu0
    %v979 = vadd.f32 %v865, %v978
    %v980 = vpop.f32.mrb[0].mxu0
    %v981 = vadd.f32 %v869, %v980
    %v982 = vpop.f32.mrb[0].mxu0
    %v983 = vadd.f32 %v865, %v982
    %v984 = vpop.f32.mrb[0].mxu0
    %v985 = vadd.f32 %v869, %v984
    %986 = vmatprep.mubr.bf16.mxu0 0
    %987 = vmatmul.mubr.bf16.gmra.mrb[0].mxu0 %v922
    %v988 = vpop.f32.mrb[0].mxu0
    %v989 = vadd.f32 %v865, %v988
    %v990 = vpop.f32.mrb[0].mxu0
    %v991 = vadd.f32 %v869, %v990
    %v992 = vpop.f32.mrb[0].mxu0
    %v993 = vadd.f32 %v865, %v992
    %v994 = vpop.f32.mrb[0].mxu0
    %v995 = vadd.f32 %v869, %v994
    %996 = vdwg.mxu0
    %v997 = vld [vmem:[#allocation2 + $0xa0] sm:$0xff]
    %v998 = vld [vmem:[#allocation2 + $0xa8] sm:$0xff]
    %v999 = vld [vmem:[#allocation2 + $0xb0] sm:$0xff]
    %v1000 = vld [vmem:[#allocation2 + $0xb8] sm:$0xff]
    %v1001 = vld [vmem:[#allocation2 + $0xc0] sm:$0xff]
    %v1002 = vld [vmem:[#allocation2 + $0xc8] sm:$0xff]
    %v1003 = vld [vmem:[#allocation2 + $0xd0] sm:$0xff]
    %v1004 = vld [vmem:[#allocation2 + $0xd8] sm:$0xff]
    %v1005 = vld [vmem:[%s2 + $0x6] sm:$0x3]
    %v1007 = vlaneseq
    %v1008 = vshrl.u32 %v1007, 7
    %v1009 = vsub.s32 0, %v1008
    %v1010 = vrot.slane %v1005, %v1009
    %v1011 = vlaneseq
    %v1012 = vshrl.u32 %v1011, 7
    %v1013 = vsub.s32 1, %v1012
    %v1014 = vrot.slane %v1005, %v1013
    %v1025 = vunpack.c.l.b16 %v997
    %v1026 = vunpack.c.h.b16 %v997
    %v1027 = vunpack.c.l.b16 %v998
    %v1028 = vunpack.c.h.b16 %v998
    %v1029 = vunpack.c.l.b16 %v999
    %v1030 = vunpack.c.h.b16 %v999
    %v1031 = vunpack.c.l.b16 %v1000
    %v1032 = vunpack.c.h.b16 %v1000
    %v1033 = vunpack.c.l.b16 %v1001
    %v1034 = vunpack.c.h.b16 %v1001
    %v1035 = vunpack.c.l.b16 %v1002
    %v1036 = vunpack.c.h.b16 %v1002
    %v1037 = vunpack.c.l.b16 %v1003
    %v1038 = vunpack.c.h.b16 %v1003
    %v1039 = vunpack.c.l.b16 %v1004
    %v1040 = vunpack.c.h.b16 %v1004
    %v1041 = vpack.c.b16 %v1027, %v1025
    %v1042 = vpack.c.b16 %v1028, %v1026
    %v1043 = vpack.c.b16 %v1031, %v1029
    %v1044 = vpack.c.b16 %v1032, %v1030
    %v1045 = vpack.c.b16 %v1035, %v1033
    %v1046 = vpack.c.b16 %v1036, %v1034
    %v1047 = vpack.c.b16 %v1039, %v1037
    %v1048 = vpack.c.b16 %v1040, %v1038
    %1057 = vmatprep.subr.bf16.mxu0 %v1042
    %1058 = vmatpush1.bf16.msra.mxu0 %v1041
    %1059 = vmatprep.subr.bf16.mxu0 %v1044
    %1060 = vmatpush1.bf16.msra.mxu0 %v1043
    %1061 = vmatprep.subr.bf16.mxu0 %v1046
    %1062 = vmatpush1.bf16.msra.mxu0 %v1045
    %1063 = vmatprep.subr.bf16.mxu0 %v1048
    %1064 = vmatpush1.bf16.msra.mxu0 %v1047
    %1065 = vmatprep.subr.bf16.mxu0 0
    %1066 = vmatpush1.bf16.msra.mxu0 0
    %1067 = vmatprep.subr.bf16.mxu0 0
    %1068 = vmatpush1.bf16.msra.mxu0 0
    %1069 = vmatprep.subr.bf16.mxu0 0
    %1070 = vmatpush1.bf16.msra.mxu0 0
    %1071 = vmatprep.subr.bf16.mxu0 0
    %1072 = vmatpush1.bf16.msra.mxu0 0
    %1073 = vmatprep.subr.bf16.mxu0 0
    %1074 = vmatpush1.bf16.msra.mxu0 0
    %1075 = vmatprep.subr.bf16.mxu0 0
    %1076 = vmatpush1.bf16.msra.mxu0 0
    %1077 = vmatprep.subr.bf16.mxu0 0
    %1078 = vmatpush1.bf16.msra.mxu0 0
    %1079 = vmatprep.subr.bf16.mxu0 0
    %1080 = vmatpush1.bf16.msra.mxu0 0
    %1081 = vmatprep.subr.bf16.mxu0 0
    %1082 = vmatpush1.bf16.msra.mxu0 0
    %1083 = vmatprep.subr.bf16.mxu0 0
    %1084 = vmatpush1.bf16.msra.mxu0 0
    %1085 = vmatprep.subr.bf16.mxu0 0
    %1086 = vmatpush1.bf16.msra.mxu0 0
    %1087 = vmatprep.subr.bf16.mxu0 0
    %1088 = vmatpush1.bf16.msra.mxu0 0
    %1089 = vmatprep.mubr.bf16.mxu0 0
    %1090 = vmatmul.mubr.bf16.gmra.mrb[0].mxu0 %v913
    %v1091 = vpop.f32.mrb[0].mxu0
    %v1092 = vadd.f32 %v1010, %v1091
    %v1093 = vpop.f32.mrb[0].mxu0
    %v1094 = vadd.f32 %v1014, %v1093
    %v1095 = vpop.f32.mrb[0].mxu0
    %v1096 = vadd.f32 %v1010, %v1095
    %v1097 = vpop.f32.mrb[0].mxu0
    %v1098 = vadd.f32 %v1014, %v1097
    %1099 = vmatprep.mubr.bf16.mxu0 0
    %1100 = vmatmul.mubr.bf16.gmra.mrb[0].mxu0 %v916
    %v1101 = vpop.f32.mrb[0].mxu0
    %v1102 = vadd.f32 %v1010, %v1101
    %v1103 = vpop.f32.mrb[0].mxu0
    %v1104 = vadd.f32 %v1014, %v1103
    %v1105 = vpop.f32.mrb[0].mxu0
    %v1106 = vadd.f32 %v1010, %v1105
    %v1107 = vpop.f32.mrb[0].mxu0
    %v1108 = vadd.f32 %v1014, %v1107
    %1109 = vmatprep.mubr.bf16.mxu0 0
    %1110 = vmatmul.mubr.bf16.gmra.mrb[0].mxu0 %v919
    %v1111 = vpop.f32.mrb[0].mxu0
    %v1112 = vadd.f32 %v1010, %v1111
    %v1113 = vpop.f32.mrb[0].mxu0
    %v1114 = vadd.f32 %v1014, %v1113
    %v1115 = vpop.f32.mrb[0].mxu0
    %v1116 = vadd.f32 %v1010, %v1115
    %v1117 = vpop.f32.mrb[0].mxu0
    %v1118 = vadd.f32 %v1014, %v1117
    %1119 = vmatprep.mubr.bf16.mxu0 0
    %1120 = vmatmul.mubr.bf16.gmra.mrb[0].mxu0 %v922
    %v1121 = vpop.f32.mrb[0].mxu0
    %v1122 = vadd.f32 %v1010, %v1121
    %v1123 = vpop.f32.mrb[0].mxu0
    %v1124 = vadd.f32 %v1014, %v1123
    %v1125 = vpop.f32.mrb[0].mxu0
    %v1126 = vadd.f32 %v1010, %v1125
    %v1127 = vpop.f32.mrb[0].mxu0
    %v1128 = vadd.f32 %v1014, %v1127
    %1129 = vdwg.mxu0
    %v1130 = vld [vmem:[#allocation2 + $0xe0] sm:$0xff]
    %v1131 = vld [vmem:[#allocation2 + $0xe8] sm:$0xff]
    %v1132 = vld [vmem:[#allocation2 + $0xf0] sm:$0xff]
    %v1133 = vld [vmem:[#allocation2 + $0xf8] sm:$0xff]
    %v1134 = vld [vmem:[#allocation2 + $0x100] sm:$0xff]
    %v1135 = vld [vmem:[#allocation2 + $0x108] sm:$0xff]
    %v1136 = vld [vmem:[#allocation2 + $0x110] sm:$0xff]
    %v1137 = vld [vmem:[#allocation2 + $0x118] sm:$0xff]
    %v1138 = vadd.f32 %v959, %v1126
    %v1139 = vadd.f32 %v961, %v1128
    %v1140 = vxor.u32 %v1138, 2147483648
    %v1141 = vxor.u32 %v1139, 2147483648
    %v1142 = vmul.f32 %v1140, 1.442695
    %v1143 = vpow.pop %v1142
    %v1144 = vmul.f32 %v1141, 1.442695
    %v1145 = vpow.pop %v1144
    %v1146 = vadd.f32 %v1143, 1.0
    %v1147 = vadd.f32 %v1145, 1.0
    %v1148 = vrcp.pop %v1146
    %v1149 = vmul.f32 1.0, %v1148
    %v1150 = vrcp.pop %v1147
    %v1151 = vmul.f32 1.0, %v1150
    %v1152 = vtanh.pop %v1139
    %v1153 = vmul.f32 %v1149, 0.0
    %1155 = vrot.lane.b32.xlu0 %v1152, 64
    %v1156 = vpop.permute.xlu0 %1155
    %v1158 = vmul.f32 %v1149, %v1156
    %1160 = vrot.lane.b32.xlu0 %v1158, 64
    %v1161 = vpop.permute.xlu0 %1160
    %v1163 = vadd.f32 %v1153, %v1161
    %v1164 = vtanh.pop %v1163
    %1166 = vrot.lane.b32.xlu0 %v1164, 64
    %v1167 = vpop.permute.xlu0 %1166
    %v1169 = vmul.f32 %v1151, %v1167
    %v1170 = vadd.f32 %v963, %v1122
    %v1171 = vadd.f32 %v965, %v1124
    %v1172 = vpack.c.bf16 %v1169, %v1169
    %v1181 = vunpack.c.l.b16 %v1130
    %v1182 = vunpack.c.h.b16 %v1130
    %v1183 = vunpack.c.l.b16 %v1131
    %v1184 = vunpack.c.h.b16 %v1131
    %v1185 = vunpack.c.l.b16 %v1132
    %v1186 = vunpack.c.h.b16 %v1132
    %v1187 = vunpack.c.l.b16 %v1133
    %v1188 = vunpack.c.h.b16 %v1133
    %v1189 = vunpack.c.l.b16 %v1134
    %v1190 = vunpack.c.h.b16 %v1134
    %v1191 = vunpack.c.l.b16 %v1135
    %v1192 = vunpack.c.h.b16 %v1135
    %v1193 = vunpack.c.l.b16 %v1136
    %v1194 = vunpack.c.h.b16 %v1136
    %v1195 = vunpack.c.l.b16 %v1137
    %v1196 = vunpack.c.h.b16 %v1137
    %v1197 = vpack.c.b16 %v1183, %v1181
    %v1198 = vpack.c.b16 %v1184, %v1182
    %v1199 = vpack.c.b16 %v1187, %v1185
    %v1200 = vpack.c.b16 %v1188, %v1186
    %v1201 = vpack.c.b16 %v1191, %v1189
    %v1202 = vpack.c.b16 %v1192, %v1190
    %v1203 = vpack.c.b16 %v1195, %v1193
    %v1204 = vpack.c.b16 %v1196, %v1194
    %v1214 = vsel %vm288, %v1172, 0
    %1216 = vmatprep.subr.bf16.mxu0 %v1198
    %1217 = vmatpush1.bf16.msra.mxu0 %v1197
    %1218 = vmatprep.subr.bf16.mxu0 %v1200
    %1219 = vmatpush1.bf16.msra.mxu0 %v1199
    %1220 = vmatprep.subr.bf16.mxu0 %v1202
    %1221 = vmatpush1.bf16.msra.mxu0 %v1201
    %1222 = vmatprep.subr.bf16.mxu0 %v1204
    %1223 = vmatpush1.bf16.msra.mxu0 %v1203
    %1224 = vmatprep.subr.bf16.mxu0 0
    %1225 = vmatpush1.bf16.msra.mxu0 0
    %1226 = vmatprep.subr.bf16.mxu0 0
    %1227 = vmatpush1.bf16.msra.mxu0 0
    %1228 = vmatprep.subr.bf16.mxu0 0
    %1229 = vmatpush1.bf16.msra.mxu0 0
    %1230 = vmatprep.subr.bf16.mxu0 0
    %1231 = vmatpush1.bf16.msra.mxu0 0
    %1232 = vmatprep.subr.bf16.mxu0 0
    %1233 = vmatpush1.bf16.msra.mxu0 0
    %1234 = vmatprep.subr.bf16.mxu0 0
    %1235 = vmatpush1.bf16.msra.mxu0 0
    %1236 = vmatprep.subr.bf16.mxu0 0
    %1237 = vmatpush1.bf16.msra.mxu0 0
    %1238 = vmatprep.subr.bf16.mxu0 0
    %1239 = vmatpush1.bf16.msra.mxu0 0
    %1240 = vmatprep.subr.bf16.mxu0 0
    %1241 = vmatpush1.bf16.msra.mxu0 0
    %1242 = vmatprep.subr.bf16.mxu0 0
    %1243 = vmatpush1.bf16.msra.mxu0 0
    %1244 = vmatprep.subr.bf16.mxu0 0
    %1245 = vmatpush1.bf16.msra.mxu0 0
    %1246 = vmatprep.subr.bf16.mxu0 0
    %1247 = vmatpush1.bf16.msra.mxu0 0
    %1248 = vmatprep.mubr.bf16.mxu0 0
    %1249 = vmatmul.mubr.bf16.gmra.mrb[0].mxu0 %v1214
    %v1250 = vpop.f32.mrb[0].mxu0
    %v1251 = vadd.f32 0.0, %v1250
    %v1252 = vpop.f32.mrb[0].mxu0
    %v1253 = vadd.f32 0.0, %v1252
    %v1254 = vpop.f32.mrb[0].mxu0
    %v1255 = vpop.f32.mrb[0].mxu0
    %1256 = vdwg.mxu0
    %v1257 = vadd.f32 %v1170, %v1251
    %v1258 = vadd.f32 %v1171, %v1253
    %v1259 = vxor.u32 %v1257, 2147483648
    %v1260 = vxor.u32 %v1258, 2147483648
    %v1261 = vmul.f32 %v1259, 1.442695
    %v1262 = vpow.pop %v1261
    %v1263 = vmul.f32 %v1260, 1.442695
    %v1264 = vpow.pop %v1263
    %v1265 = vadd.f32 %v1262, 1.0
    %v1266 = vadd.f32 %v1264, 1.0
    %v1267 = vrcp.pop %v1265
    %v1268 = vmul.f32 1.0, %v1267
    %v1269 = vrcp.pop %v1266
    %v1270 = vmul.f32 1.0, %v1269
    %v1271 = vtanh.pop %v1258
    %v1272 = vmul.f32 %v1268, %v1163
    %1274 = vrot.lane.b32.xlu0 %v1271, 64
    %v1275 = vpop.permute.xlu0 %1274
    %v1277 = vmul.f32 %v1268, %v1275
    %1279 = vrot.lane.b32.xlu0 %v1277, 64
    %v1280 = vpop.permute.xlu0 %1279
    %v1282 = vadd.f32 %v1272, %v1280
    %v1283 = vtanh.pop %v1282
    %1285 = vrot.lane.b32.xlu0 %v1283, 64
    %v1286 = vpop.permute.xlu0 %1285
    %v1288 = vmul.f32 %v1270, %v1286
    %v1289 = vadd.f32 %v969, %v1116
    %v1290 = vadd.f32 %v971, %v1118
    %v1291 = vpack.c.bf16 %v1288, %v1288
    %v1293 = vsel %vm288, %v1291, 0
    %1295 = vmatprep.subr.bf16.mxu0 %v1198
    %1296 = vmatpush1.bf16.msra.mxu0 %v1197
    %1297 = vmatprep.subr.bf16.mxu0 %v1200
    %1298 = vmatpush1.bf16.msra.mxu0 %v1199
    %1299 = vmatprep.subr.bf16.mxu0 %v1202
    %1300 = vmatpush1.bf16.msra.mxu0 %v1201
    %1301 = vmatprep.subr.bf16.mxu0 %v1204
    %1302 = vmatpush1.bf16.msra.mxu0 %v1203
    %1303 = vmatprep.subr.bf16.mxu0 0
    %1304 = vmatpush1.bf16.msra.mxu0 0
    %1305 = vmatprep.subr.bf16.mxu0 0
    %1306 = vmatpush1.bf16.msra.mxu0 0
    %1307 = vmatprep.subr.bf16.mxu0 0
    %1308 = vmatpush1.bf16.msra.mxu0 0
    %1309 = vmatprep.subr.bf16.mxu0 0
    %1310 = vmatpush1.bf16.msra.mxu0 0
    %1311 = vmatprep.subr.bf16.mxu0 0
    %1312 = vmatpush1.bf16.msra.mxu0 0
    %1313 = vmatprep.subr.bf16.mxu0 0
    %1314 = vmatpush1.bf16.msra.mxu0 0
    %1315 = vmatprep.subr.bf16.mxu0 0
    %1316 = vmatpush1.bf16.msra.mxu0 0
    %1317 = vmatprep.subr.bf16.mxu0 0
    %1318 = vmatpush1.bf16.msra.mxu0 0
    %1319 = vmatprep.subr.bf16.mxu0 0
    %1320 = vmatpush1.bf16.msra.mxu0 0
    %1321 = vmatprep.subr.bf16.mxu0 0
    %1322 = vmatpush1.bf16.msra.mxu0 0
    %1323 = vmatprep.subr.bf16.mxu0 0
    %1324 = vmatpush1.bf16.msra.mxu0 0
    %1325 = vmatprep.subr.bf16.mxu0 0
    %1326 = vmatpush1.bf16.msra.mxu0 0
    %1327 = vmatprep.mubr.bf16.mxu0 0
    %1328 = vmatmul.mubr.bf16.gmra.mrb[0].mxu0 %v1293
    %v1329 = vpop.f32.mrb[0].mxu0
    %v1330 = vadd.f32 0.0, %v1329
    %v1331 = vpop.f32.mrb[0].mxu0
    %v1332 = vadd.f32 0.0, %v1331
    %v1333 = vpop.f32.mrb[0].mxu0
    %v1334 = vpop.f32.mrb[0].mxu0
    %1335 = vdwg.mxu0
    %v1336 = vadd.f32 %v1289, %v1330
    %v1337 = vadd.f32 %v1290, %v1332
    %v1338 = vxor.u32 %v1336, 2147483648
    %v1339 = vxor.u32 %v1337, 2147483648
    %v1340 = vmul.f32 %v1338, 1.442695
    %v1341 = vpow.pop %v1340
    %v1342 = vmul.f32 %v1339, 1.442695
    %v1343 = vpow.pop %v1342
    %v1344 = vadd.f32 %v1341, 1.0
    %v1345 = vadd.f32 %v1343, 1.0
    %v1346 = vrcp.pop %v1344
    %v1347 = vmul.f32 1.0, %v1346
    %v1348 = vrcp.pop %v1345
    %v1349 = vmul.f32 1.0, %v1348
    %v1350 = vtanh.pop %v1337
    %v1351 = vmul.f32 %v1347, %v1282
    %1353 = vrot.lane.b32.xlu0 %v1350, 64
    %v1354 = vpop.permute.xlu0 %1353
    %v1356 = vmul.f32 %v1347, %v1354
    %1358 = vrot.lane.b32.xlu0 %v1356, 64
    %v1359 = vpop.permute.xlu0 %1358
    %v1361 = vadd.f32 %v1351, %v1359
    %v1362 = vtanh.pop %v1361
    %1364 = vrot.lane.b32.xlu0 %v1362, 64
    %v1365 = vpop.permute.xlu0 %1364
    %v1367 = vmul.f32 %v1349, %v1365
    %v1368 = vadd.f32 %v973, %v1112
    %v1369 = vadd.f32 %v975, %v1114
    %v1370 = vpack.c.bf16 %v1367, %v1367
    %v1372 = vsel %vm288, %v1370, 0
    %1374 = vmatprep.subr.bf16.mxu0 %v1198
    %1375 = vmatpush1.bf16.msra.mxu0 %v1197
    %1376 = vmatprep.subr.bf16.mxu0 %v1200
    %1377 = vmatpush1.bf16.msra.mxu0 %v1199
    %1378 = vmatprep.subr.bf16.mxu0 %v1202
    %1379 = vmatpush1.bf16.msra.mxu0 %v1201
    %1380 = vmatprep.subr.bf16.mxu0 %v1204
    %1381 = vmatpush1.bf16.msra.mxu0 %v1203
    %1382 = vmatprep.subr.bf16.mxu0 0
    %1383 = vmatpush1.bf16.msra.mxu0 0
    %1384 = vmatprep.subr.bf16.mxu0 0
    %1385 = vmatpush1.bf16.msra.mxu0 0
    %1386 = vmatprep.subr.bf16.mxu0 0
    %1387 = vmatpush1.bf16.msra.mxu0 0
    %1388 = vmatprep.subr.bf16.mxu0 0
    %1389 = vmatpush1.bf16.msra.mxu0 0
    %1390 = vmatprep.subr.bf16.mxu0 0
    %1391 = vmatpush1.bf16.msra.mxu0 0
    %1392 = vmatprep.subr.bf16.mxu0 0
    %1393 = vmatpush1.bf16.msra.mxu0 0
    %1394 = vmatprep.subr.bf16.mxu0 0
    %1395 = vmatpush1.bf16.msra.mxu0 0
    %1396 = vmatprep.subr.bf16.mxu0 0
    %1397 = vmatpush1.bf16.msra.mxu0 0
    %1398 = vmatprep.subr.bf16.mxu0 0
    %1399 = vmatpush1.bf16.msra.mxu0 0
    %1400 = vmatprep.subr.bf16.mxu0 0
    %1401 = vmatpush1.bf16.msra.mxu0 0
    %1402 = vmatprep.subr.bf16.mxu0 0
    %1403 = vmatpush1.bf16.msra.mxu0 0
    %1404 = vmatprep.subr.bf16.mxu0 0
    %1405 = vmatpush1.bf16.msra.mxu0 0
    %1406 = vmatprep.mubr.bf16.mxu0 0
    %1407 = vmatmul.mubr.bf16.gmra.mrb[0].mxu0 %v1372
    %v1408 = vpop.f32.mrb[0].mxu0
    %v1409 = vadd.f32 0.0, %v1408
    %v1410 = vpop.f32.mrb[0].mxu0
    %v1411 = vadd.f32 0.0, %v1410
    %v1412 = vpop.f32.mrb[0].mxu0
    %v1413 = vpop.f32.mrb[0].mxu0
    %1414 = vdwg.mxu0
    %v1415 = vadd.f32 %v1368, %v1409
    %v1416 = vadd.f32 %v1369, %v1411
    %v1417 = vxor.u32 %v1415, 2147483648
    %v1418 = vxor.u32 %v1416, 2147483648
    %v1419 = vmul.f32 %v1417, 1.442695
    %v1420 = vpow.pop %v1419
    %v1421 = vmul.f32 %v1418, 1.442695
    %v1422 = vpow.pop %v1421
    %v1423 = vadd.f32 %v1420, 1.0
    %v1424 = vadd.f32 %v1422, 1.0
    %v1425 = vrcp.pop %v1423
    %v1426 = vmul.f32 1.0, %v1425
    %v1427 = vrcp.pop %v1424
    %v1428 = vmul.f32 1.0, %v1427
    %v1429 = vtanh.pop %v1416
    %v1430 = vmul.f32 %v1426, %v1361
    %1432 = vrot.lane.b32.xlu0 %v1429, 64
    %v1433 = vpop.permute.xlu0 %1432
    %v1435 = vmul.f32 %v1426, %v1433
    %1437 = vrot.lane.b32.xlu0 %v1435, 64
    %v1438 = vpop.permute.xlu0 %1437
    %v1440 = vadd.f32 %v1430, %v1438
    %v1441 = vtanh.pop %v1440
    %1443 = vrot.lane.b32.xlu0 %v1441, 64
    %v1444 = vpop.permute.xlu0 %1443
    %v1446 = vmul.f32 %v1428, %v1444
    %v1447 = vadd.f32 %v979, %v1106
    %v1448 = vadd.f32 %v981, %v1108
    %v1449 = vpack.c.bf16 %v1446, %v1446
    %v1451 = vsel %vm288, %v1449, 0
    %1453 = vmatprep.subr.bf16.mxu0 %v1198
    %1454 = vmatpush1.bf16.msra.mxu0 %v1197
    %1455 = vmatprep.subr.bf16.mxu0 %v1200
    %1456 = vmatpush1.bf16.msra.mxu0 %v1199
    %1457 = vmatprep.subr.bf16.mxu0 %v1202
    %1458 = vmatpush1.bf16.msra.mxu0 %v1201
    %1459 = vmatprep.subr.bf16.mxu0 %v1204
    %1460 = vmatpush1.bf16.msra.mxu0 %v1203
    %1461 = vmatprep.subr.bf16.mxu0 0
    %1462 = vmatpush1.bf16.msra.mxu0 0
    %1463 = vmatprep.subr.bf16.mxu0 0
    %1464 = vmatpush1.bf16.msra.mxu0 0
    %1465 = vmatprep.subr.bf16.mxu0 0
    %1466 = vmatpush1.bf16.msra.mxu0 0
    %1467 = vmatprep.subr.bf16.mxu0 0
    %1468 = vmatpush1.bf16.msra.mxu0 0
    %1469 = vmatprep.subr.bf16.mxu0 0
    %1470 = vmatpush1.bf16.msra.mxu0 0
    %1471 = vmatprep.subr.bf16.mxu0 0
    %1472 = vmatpush1.bf16.msra.mxu0 0
    %1473 = vmatprep.subr.bf16.mxu0 0
    %1474 = vmatpush1.bf16.msra.mxu0 0
    %1475 = vmatprep.subr.bf16.mxu0 0
    %1476 = vmatpush1.bf16.msra.mxu0 0
    %1477 = vmatprep.subr.bf16.mxu0 0
    %1478 = vmatpush1.bf16.msra.mxu0 0
    %1479 = vmatprep.subr.bf16.mxu0 0
    %1480 = vmatpush1.bf16.msra.mxu0 0
    %1481 = vmatprep.subr.bf16.mxu0 0
    %1482 = vmatpush1.bf16.msra.mxu0 0
    %1483 = vmatprep.subr.bf16.mxu0 0
    %1484 = vmatpush1.bf16.msra.mxu0 0
    %1485 = vmatprep.mubr.bf16.mxu0 0
    %1486 = vmatmul.mubr.bf16.gmra.mrb[0].mxu0 %v1451
    %v1487 = vpop.f32.mrb[0].mxu0
    %v1488 = vadd.f32 0.0, %v1487
    %v1489 = vpop.f32.mrb[0].mxu0
    %v1490 = vadd.f32 0.0, %v1489
    %v1491 = vpop.f32.mrb[0].mxu0
    %v1492 = vpop.f32.mrb[0].mxu0
    %1493 = vdwg.mxu0
    %v1494 = vadd.f32 %v1447, %v1488
    %v1495 = vadd.f32 %v1448, %v1490
    %v1496 = vxor.u32 %v1494, 2147483648
    %v1497 = vxor.u32 %v1495, 2147483648
    %v1498 = vmul.f32 %v1496, 1.442695
    %v1499 = vpow.pop %v1498
    %v1500 = vmul.f32 %v1497, 1.442695
    %v1501 = vpow.pop %v1500
    %v1502 = vadd.f32 %v1499, 1.0
    %v1503 = vadd.f32 %v1501, 1.0
    %v1504 = vrcp.pop %v1502
    %v1505 = vmul.f32 1.0, %v1504
    %v1506 = vrcp.pop %v1503
    %v1507 = vmul.f32 1.0, %v1506
    %v1508 = vtanh.pop %v1495
    %v1509 = vmul.f32 %v1505, %v1440
    %1511 = vrot.lane.b32.xlu0 %v1508, 64
    %v1512 = vpop.permute.xlu0 %1511
    %v1514 = vmul.f32 %v1505, %v1512
    %1516 = vrot.lane.b32.xlu0 %v1514, 64
    %v1517 = vpop.permute.xlu0 %1516
    %v1519 = vadd.f32 %v1509, %v1517
    %v1520 = vtanh.pop %v1519
    %1522 = vrot.lane.b32.xlu0 %v1520, 64
    %v1523 = vpop.permute.xlu0 %1522
    %v1525 = vmul.f32 %v1507, %v1523
    %v1526 = vadd.f32 %v983, %v1102
    %v1527 = vadd.f32 %v985, %v1104
    %v1528 = vpack.c.bf16 %v1525, %v1525
    %v1530 = vsel %vm288, %v1528, 0
    %1532 = vmatprep.subr.bf16.mxu0 %v1198
    %1533 = vmatpush1.bf16.msra.mxu0 %v1197
    %1534 = vmatprep.subr.bf16.mxu0 %v1200
    %1535 = vmatpush1.bf16.msra.mxu0 %v1199
    %1536 = vmatprep.subr.bf16.mxu0 %v1202
    %1537 = vmatpush1.bf16.msra.mxu0 %v1201
    %1538 = vmatprep.subr.bf16.mxu0 %v1204
    %1539 = vmatpush1.bf16.msra.mxu0 %v1203
    %1540 = vmatprep.subr.bf16.mxu0 0
    %1541 = vmatpush1.bf16.msra.mxu0 0
    %1542 = vmatprep.subr.bf16.mxu0 0
    %1543 = vmatpush1.bf16.msra.mxu0 0
    %1544 = vmatprep.subr.bf16.mxu0 0
    %1545 = vmatpush1.bf16.msra.mxu0 0
    %1546 = vmatprep.subr.bf16.mxu0 0
    %1547 = vmatpush1.bf16.msra.mxu0 0
    %1548 = vmatprep.subr.bf16.mxu0 0
    %1549 = vmatpush1.bf16.msra.mxu0 0
    %1550 = vmatprep.subr.bf16.mxu0 0
    %1551 = vmatpush1.bf16.msra.mxu0 0
    %1552 = vmatprep.subr.bf16.mxu0 0
    %1553 = vmatpush1.bf16.msra.mxu0 0
    %1554 = vmatprep.subr.bf16.mxu0 0
    %1555 = vmatpush1.bf16.msra.mxu0 0
    %1556 = vmatprep.subr.bf16.mxu0 0
    %1557 = vmatpush1.bf16.msra.mxu0 0
    %1558 = vmatprep.subr.bf16.mxu0 0
    %1559 = vmatpush1.bf16.msra.mxu0 0
    %1560 = vmatprep.subr.bf16.mxu0 0
    %1561 = vmatpush1.bf16.msra.mxu0 0
    %1562 = vmatprep.subr.bf16.mxu0 0
    %1563 = vmatpush1.bf16.msra.mxu0 0
    %1564 = vmatprep.mubr.bf16.mxu0 0
    %1565 = vmatmul.mubr.bf16.gmra.mrb[0].mxu0 %v1530
    %v1566 = vpop.f32.mrb[0].mxu0
    %v1567 = vadd.f32 0.0, %v1566
    %v1568 = vpop.f32.mrb[0].mxu0
    %v1569 = vadd.f32 0.0, %v1568
    %v1570 = vpop.f32.mrb[0].mxu0
    %v1571 = vpop.f32.mrb[0].mxu0
    %1572 = vdwg.mxu0
    %v1573 = vadd.f32 %v1526, %v1567
    %v1574 = vadd.f32 %v1527, %v1569
    %v1575 = vxor.u32 %v1573, 2147483648
    %v1576 = vxor.u32 %v1574, 2147483648
    %v1577 = vmul.f32 %v1575, 1.442695
    %v1578 = vpow.pop %v1577
    %v1579 = vmul.f32 %v1576, 1.442695
    %v1580 = vpow.pop %v1579
    %v1581 = vadd.f32 %v1578, 1.0
    %v1582 = vadd.f32 %v1580, 1.0
    %v1583 = vrcp.pop %v1581
    %v1584 = vmul.f32 1.0, %v1583
    %v1585 = vrcp.pop %v1582
    %v1586 = vmul.f32 1.0, %v1585
    %v1587 = vtanh.pop %v1574
    %v1588 = vmul.f32 %v1584, %v1519
    %1590 = vrot.lane.b32.xlu0 %v1587, 64
    %v1591 = vpop.permute.xlu0 %1590
    %v1593 = vmul.f32 %v1584, %v1591
    %1595 = vrot.lane.b32.xlu0 %v1593, 64
    %v1596 = vpop.permute.xlu0 %1595
    %v1598 = vadd.f32 %v1588, %v1596
    %v1599 = vtanh.pop %v1598
    %1601 = vrot.lane.b32.xlu0 %v1599, 64
    %v1602 = vpop.permute.xlu0 %1601
    %v1604 = vmul.f32 %v1586, %v1602
    %v1605 = vadd.f32 %v989, %v1096
    %v1606 = vadd.f32 %v991, %v1098
    %v1607 = vpack.c.bf16 %v1604, %v1604
    %v1609 = vsel %vm288, %v1607, 0
    %1611 = vmatprep.subr.bf16.mxu0 %v1198
    %1612 = vmatpush1.bf16.msra.mxu0 %v1197
    %1613 = vmatprep.subr.bf16.mxu0 %v1200
    %1614 = vmatpush1.bf16.msra.mxu0 %v1199
    %1615 = vmatprep.subr.bf16.mxu0 %v1202
    %1616 = vmatpush1.bf16.msra.mxu0 %v1201
    %1617 = vmatprep.subr.bf16.mxu0 %v1204
    %1618 = vmatpush1.bf16.msra.mxu0 %v1203
    %1619 = vmatprep.subr.bf16.mxu0 0
    %1620 = vmatpush1.bf16.msra.mxu0 0
    %1621 = vmatprep.subr.bf16.mxu0 0
    %1622 = vmatpush1.bf16.msra.mxu0 0
    %1623 = vmatprep.subr.bf16.mxu0 0
    %1624 = vmatpush1.bf16.msra.mxu0 0
    %1625 = vmatprep.subr.bf16.mxu0 0
    %1626 = vmatpush1.bf16.msra.mxu0 0
    %1627 = vmatprep.subr.bf16.mxu0 0
    %1628 = vmatpush1.bf16.msra.mxu0 0
    %1629 = vmatprep.subr.bf16.mxu0 0
    %1630 = vmatpush1.bf16.msra.mxu0 0
    %1631 = vmatprep.subr.bf16.mxu0 0
    %1632 = vmatpush1.bf16.msra.mxu0 0
    %1633 = vmatprep.subr.bf16.mxu0 0
    %1634 = vmatpush1.bf16.msra.mxu0 0
    %1635 = vmatprep.subr.bf16.mxu0 0
    %1636 = vmatpush1.bf16.msra.mxu0 0
    %1637 = vmatprep.subr.bf16.mxu0 0
    %1638 = vmatpush1.bf16.msra.mxu0 0
    %1639 = vmatprep.subr.bf16.mxu0 0
    %1640 = vmatpush1.bf16.msra.mxu0 0
    %1641 = vmatprep.subr.bf16.mxu0 0
    %1642 = vmatpush1.bf16.msra.mxu0 0
    %1643 = vmatprep.mubr.bf16.mxu0 0
    %1644 = vmatmul.mubr.bf16.gmra.mrb[0].mxu0 %v1609
    %v1645 = vpop.f32.mrb[0].mxu0
    %v1646 = vadd.f32 0.0, %v1645
    %v1647 = vpop.f32.mrb[0].mxu0
    %v1648 = vadd.f32 0.0, %v1647
    %v1649 = vpop.f32.mrb[0].mxu0
    %v1650 = vpop.f32.mrb[0].mxu0
    %1651 = vdwg.mxu0
    %v1652 = vadd.f32 %v1605, %v1646
    %v1653 = vadd.f32 %v1606, %v1648
    %v1654 = vxor.u32 %v1652, 2147483648
    %v1655 = vxor.u32 %v1653, 2147483648
    %v1656 = vmul.f32 %v1654, 1.442695
    %v1657 = vpow.pop %v1656
    %v1658 = vmul.f32 %v1655, 1.442695
    %v1659 = vpow.pop %v1658
    %v1660 = vadd.f32 %v1657, 1.0
    %v1661 = vadd.f32 %v1659, 1.0
    %v1662 = vrcp.pop %v1660
    %v1663 = vmul.f32 1.0, %v1662
    %v1664 = vrcp.pop %v1661
    %v1665 = vmul.f32 1.0, %v1664
    %v1666 = vtanh.pop %v1653
    %v1667 = vmul.f32 %v1663, %v1598
    %1669 = vrot.lane.b32.xlu0 %v1666, 64
    %v1670 = vpop.permute.xlu0 %1669
    %v1672 = vmul.f32 %v1663, %v1670
    %1674 = vrot.lane.b32.xlu0 %v1672, 64
    %v1675 = vpop.permute.xlu0 %1674
    %v1677 = vadd.f32 %v1667, %v1675
    %v1678 = vtanh.pop %v1677
    %1680 = vrot.lane.b32.xlu0 %v1678, 64
    %v1681 = vpop.permute.xlu0 %1680
    %v1683 = vmul.f32 %v1665, %v1681
    %v1684 = vadd.f32 %v993, %v1092
    %v1685 = vadd.f32 %v995, %v1094
    %v1686 = vpack.c.bf16 %v1683, %v1683
    %v1688 = vsel %vm288, %v1686, 0
    %1690 = vmatprep.subr.bf16.mxu0 %v1198
    %1691 = vmatpush1.bf16.msra.mxu0 %v1197
    %1692 = vmatprep.subr.bf16.mxu0 %v1200
    %1693 = vmatpush1.bf16.msra.mxu0 %v1199
    %1694 = vmatprep.subr.bf16.mxu0 %v1202
    %1695 = vmatpush1.bf16.msra.mxu0 %v1201
    %1696 = vmatprep.subr.bf16.mxu0 %v1204
    %1697 = vmatpush1.bf16.msra.mxu0 %v1203
    %1698 = vmatprep.subr.bf16.mxu0 0
    %1699 = vmatpush1.bf16.msra.mxu0 0
    %1700 = vmatprep.subr.bf16.mxu0 0
    %1701 = vmatpush1.bf16.msra.mxu0 0
    %1702 = vmatprep.subr.bf16.mxu0 0
    %1703 = vmatpush1.bf16.msra.mxu0 0
    %1704 = vmatprep.subr.bf16.mxu0 0
    %1705 = vmatpush1.bf16.msra.mxu0 0
    %1706 = vmatprep.subr.bf16.mxu0 0
    %1707 = vmatpush1.bf16.msra.mxu0 0
    %1708 = vmatprep.subr.bf16.mxu0 0
    %1709 = vmatpush1.bf16.msra.mxu0 0
    %1710 = vmatprep.subr.bf16.mxu0 0
    %1711 = vmatpush1.bf16.msra.mxu0 0
    %1712 = vmatprep.subr.bf16.mxu0 0
    %1713 = vmatpush1.bf16.msra.mxu0 0
    %1714 = vmatprep.subr.bf16.mxu0 0
    %1715 = vmatpush1.bf16.msra.mxu0 0
    %1716 = vmatprep.subr.bf16.mxu0 0
    %1717 = vmatpush1.bf16.msra.mxu0 0
    %1718 = vmatprep.subr.bf16.mxu0 0
    %1719 = vmatpush1.bf16.msra.mxu0 0
    %1720 = vmatprep.subr.bf16.mxu0 0
    %1721 = vmatpush1.bf16.msra.mxu0 0
    %1722 = vmatprep.mubr.bf16.mxu0 0
    %1723 = vmatmul.mubr.bf16.gmra.mrb[0].mxu0 %v1688
    %v1724 = vpop.f32.mrb[0].mxu0
    %v1725 = vadd.f32 0.0, %v1724
    %v1726 = vpop.f32.mrb[0].mxu0
    %v1727 = vadd.f32 0.0, %v1726
    %v1728 = vpop.f32.mrb[0].mxu0
    %v1729 = vpop.f32.mrb[0].mxu0
    %1730 = vdwg.mxu0
    %v1731 = vadd.f32 %v1684, %v1725
    %v1732 = vadd.f32 %v1685, %v1727
    %v1733 = vxor.u32 %v1731, 2147483648
    %v1734 = vxor.u32 %v1732, 2147483648
    %v1735 = vmul.f32 %v1733, 1.442695
    %v1736 = vpow.pop %v1735
    %v1737 = vmul.f32 %v1734, 1.442695
    %v1738 = vpow.pop %v1737
    %v1739 = vadd.f32 %v1736, 1.0
    %v1740 = vadd.f32 %v1738, 1.0
    %v1741 = vrcp.pop %v1739
    %v1742 = vmul.f32 1.0, %v1741
    %v1743 = vrcp.pop %v1740
    %v1744 = vmul.f32 1.0, %v1743
    %v1745 = vtanh.pop %v1732
    %v1746 = vmul.f32 %v1742, %v1677
    %1748 = vrot.lane.b32.xlu0 %v1745, 64
    %v1749 = vpop.permute.xlu0 %1748
    %v1751 = vmul.f32 %v1742, %v1749
    %1753 = vrot.lane.b32.xlu0 %v1751, 64
    %v1754 = vpop.permute.xlu0 %1753
    %v1756 = vadd.f32 %v1746, %v1754
    %v1757 = vtanh.pop %v1756
    %1759 = vrot.lane.b32.xlu0 %v1757, 64
    %v1760 = vpop.permute.xlu0 %1759
    %v1762 = vmul.f32 %v1744, %v1760
    %v1763 = vsel %vm839, %v1169, %v1762
    %v1764 = vsel %vm839, %v1288, %v1683
    %v1765 = vsel %vm839, %v1367, %v1604
    %v1766 = vsel %vm839, %v1446, %v1525
    %v1767 = vsel %vm839, %v1525, %v1446
    %v1768 = vsel %vm839, %v1604, %v1367
    %v1769 = vsel %vm839, %v1683, %v1288
    %v1770 = vsel %vm839, %v1762, %v1169
    %v1771 = vld [vmem:[#allocation5] sm:$0xf]
    %v1772 = vld [vmem:[#allocation5 + $0x4] sm:$0xf]
    %v1773 = vld [vmem:[#allocation5 + $0x8] sm:$0xf]
    %v1774 = vld [vmem:[#allocation5 + $0xc] sm:$0xf]
    %v1775 = vld [vmem:[#allocation5 + $0x10] sm:$0xf]
    %v1776 = vld [vmem:[#allocation5 + $0x14] sm:$0xf]
    %v1777 = vld [vmem:[#allocation5 + $0x18] sm:$0xf]
    %v1778 = vld [vmem:[#allocation5 + $0x1c] sm:$0xf]
    %v1779 = vpack.c.bf16 %v1764, %v1763
    %v1780 = vpack.c.bf16 %v1766, %v1765
    %v1781 = vpack.c.bf16 %v1768, %v1767
    %v1782 = vpack.c.bf16 %v1770, %v1769
    %v1783 = vld [vmem:[%s2 + $0x8] sm:$0x1]
    %v1785 = vlaneseq
    %v1786 = vshrl.u32 %v1785, 7
    %v1787 = vsub.s32 0, %v1786
    %v1788 = vrot.slane %v1783, %v1787
    %v1798 = vunpack.c.l.b16 %v1771
    %v1799 = vunpack.c.l.b16 %v1772
    %v1800 = vunpack.c.l.b16 %v1773
    %v1801 = vunpack.c.l.b16 %v1774
    %v1802 = vunpack.c.l.b16 %v1775
    %v1803 = vunpack.c.l.b16 %v1776
    %v1804 = vunpack.c.l.b16 %v1777
    %v1805 = vunpack.c.l.b16 %v1778
    %v1806 = vpack.c.b16 %v1799, %v1798
    %v1807 = vpack.c.b16 %v1801, %v1800
    %v1808 = vpack.c.b16 %v1803, %v1802
    %v1809 = vpack.c.b16 %v1805, %v1804
    %v1815 = vsel %vm288, %v1779, 0
    %v1818 = vsel %vm288, %v1780, 0
    %v1821 = vsel %vm288, %v1781, 0
    %v1824 = vsel %vm288, %v1782, 0
    %1826 = vmatprep.subr.bf16.mxu0 0
    %1827 = vmatpush1.bf16.msra.mxu0 %v1806
    %1828 = vmatprep.subr.bf16.mxu0 0
    %1829 = vmatpush1.bf16.msra.mxu0 %v1807
    %1830 = vmatprep.subr.bf16.mxu0 0
    %1831 = vmatpush1.bf16.msra.mxu0 %v1808
    %1832 = vmatprep.subr.bf16.mxu0 0
    %1833 = vmatpush1.bf16.msra.mxu0 %v1809
    %1834 = vmatprep.subr.bf16.mxu0 0
    %1835 = vmatpush1.bf16.msra.mxu0 0
    %1836 = vmatprep.subr.bf16.mxu0 0
    %1837 = vmatpush1.bf16.msra.mxu0 0
    %1838 = vmatprep.subr.bf16.mxu0 0
    %1839 = vmatpush1.bf16.msra.mxu0 0
    %1840 = vmatprep.subr.bf16.mxu0 0
    %1841 = vmatpush1.bf16.msra.mxu0 0
    %1842 = vmatprep.subr.bf16.mxu0 0
    %1843 = vmatpush1.bf16.msra.mxu0 0
    %1844 = vmatprep.subr.bf16.mxu0 0
    %1845 = vmatpush1.bf16.msra.mxu0 0
    %1846 = vmatprep.subr.bf16.mxu0 0
    %1847 = vmatpush1.bf16.msra.mxu0 0
    %1848 = vmatprep.subr.bf16.mxu0 0
    %1849 = vmatpush1.bf16.msra.mxu0 0
    %1850 = vmatprep.subr.bf16.mxu0 0
    %1851 = vmatpush1.bf16.msra.mxu0 0
    %1852 = vmatprep.subr.bf16.mxu0 0
    %1853 = vmatpush1.bf16.msra.mxu0 0
    %1854 = vmatprep.subr.bf16.mxu0 0
    %1855 = vmatpush1.bf16.msra.mxu0 0
    %1856 = vmatprep.subr.bf16.mxu0 0
    %1857 = vmatpush1.bf16.msra.mxu0 0
    %1858 = vmatprep.mubr.bf16.mxu0 0
    %1859 = vmatmul.mubr.bf16.gmra.mrb[0].mxu0 %v1815
    %v1860 = vpop.f32.mrb[0].mxu0
    %v1861 = vadd.f32 %v1788, %v1860
    %v1862 = vpop.f32.mrb[0].mxu0
    %v1863 = vpop.f32.mrb[0].mxu0
    %v1864 = vadd.f32 %v1788, %v1863
    %v1865 = vpop.f32.mrb[0].mxu0
    %1866 = vmatprep.mubr.bf16.mxu0 0
    %1867 = vmatmul.mubr.bf16.gmra.mrb[0].mxu0 %v1818
    %v1868 = vpop.f32.mrb[0].mxu0
    %v1869 = vadd.f32 %v1788, %v1868
    %v1870 = vpop.f32.mrb[0].mxu0
    %v1871 = vpop.f32.mrb[0].mxu0
    %v1872 = vadd.f32 %v1788, %v1871
    %v1873 = vpop.f32.mrb[0].mxu0
    %1874 = vmatprep.mubr.bf16.mxu0 0
    %1875 = vmatmul.mubr.bf16.gmra.mrb[0].mxu0 %v1821
    %v1876 = vpop.f32.mrb[0].mxu0
    %v1877 = vadd.f32 %v1788, %v1876
    %v1878 = vpop.f32.mrb[0].mxu0
    %v1879 = vpop.f32.mrb[0].mxu0
    %v1880 = vadd.f32 %v1788, %v1879
    %v1881 = vpop.f32.mrb[0].mxu0
    %1882 = vmatprep.mubr.bf16.mxu0 0
    %1883 = vmatmul.mubr.bf16.gmra.mrb[0].mxu0 %v1824
    %v1884 = vpop.f32.mrb[0].mxu0
    %v1885 = vadd.f32 %v1788, %v1884
    %v1886 = vpop.f32.mrb[0].mxu0
    %v1887 = vpop.f32.mrb[0].mxu0
    %v1888 = vadd.f32 %v1788, %v1887
    %v1889 = vpop.f32.mrb[0].mxu0
    %1890 = vdwg.mxu0
    %v1891 = vld [vmem:[%s2 + $0x9] sm:$0x1]
    %v1892 = vld [vmem:[%s2 + $0xa] sm:$0x1]
    %v1893 = vsel %vm288, %v1861, 0.0
    %1894 = vadd.xlane.f32.xlu0 %v1893
    %v1895 = vpop.xlane.xlu0 %1894
    %v1896 = vsel %vm288, %v1864, 0.0
    %1897 = vadd.xlane.f32.xlu0 %v1896
    %v1898 = vpop.xlane.xlu0 %1897
    %v1899 = vsel %vm288, %v1869, 0.0
    %1900 = vadd.xlane.f32.xlu0 %v1899
    %v1901 = vpop.xlane.xlu0 %1900
    %v1902 = vsel %vm288, %v1872, 0.0
    %1903 = vadd.xlane.f32.xlu0 %v1902
    %v1904 = vpop.xlane.xlu0 %1903
    %v1905 = vsel %vm288, %v1877, 0.0
    %1906 = vadd.xlane.f32.xlu0 %v1905
    %v1907 = vpop.xlane.xlu0 %1906
    %v1908 = vsel %vm288, %v1880, 0.0
    %1909 = vadd.xlane.f32.xlu0 %v1908
    %v1910 = vpop.xlane.xlu0 %1909
    %v1911 = vsel %vm288, %v1885, 0.0
    %1912 = vadd.xlane.f32.xlu0 %v1911
    %v1913 = vpop.xlane.xlu0 %1912
    %v1914 = vsel %vm288, %v1888, 0.0
    %1915 = vadd.xlane.f32.xlu0 %v1914
    %v1916 = vpop.xlane.xlu0 %1915
    %v1917 = vrcp.pop 64.0
    %v1918 = vmul.f32 %v1895, %v1917
    %v1919 = vmul.f32 %v1898, %v1917
    %v1920 = vmul.f32 %v1901, %v1917
    %v1921 = vmul.f32 %v1904, %v1917
    %v1922 = vmul.f32 %v1907, %v1917
    %v1923 = vmul.f32 %v1910, %v1917
    %v1924 = vmul.f32 %v1913, %v1917
    %v1925 = vmul.f32 %v1916, %v1917
    %v1926 = vsub.f32 %v1861, %v1918
    %v1927 = vsub.f32 %v1864, %v1919
    %v1928 = vsub.f32 %v1869, %v1920
    %v1929 = vsub.f32 %v1872, %v1921
    %v1930 = vsub.f32 %v1877, %v1922
    %v1931 = vsub.f32 %v1880, %v1923
    %v1932 = vsub.f32 %v1885, %v1924
    %v1933 = vsub.f32 %v1888, %v1925
    %v1934 = vmul.f32 %v1926, %v1926
    %v1935 = vmul.f32 %v1927, %v1927
    %v1936 = vmul.f32 %v1928, %v1928
    %v1937 = vmul.f32 %v1929, %v1929
    %v1938 = vmul.f32 %v1930, %v1930
    %v1939 = vmul.f32 %v1931, %v1931
    %v1940 = vmul.f32 %v1932, %v1932
    %v1941 = vmul.f32 %v1933, %v1933
    %v1942 = vsel %vm288, %v1934, 0.0
    %1943 = vadd.xlane.f32.xlu0 %v1942
    %v1944 = vpop.xlane.xlu0 %1943
    %v1945 = vsel %vm288, %v1935, 0.0
    %1946 = vadd.xlane.f32.xlu0 %v1945
    %v1947 = vpop.xlane.xlu0 %1946
    %v1948 = vsel %vm288, %v1936, 0.0
    %1949 = vadd.xlane.f32.xlu0 %v1948
    %v1950 = vpop.xlane.xlu0 %1949
    %v1951 = vsel %vm288, %v1937, 0.0
    %1952 = vadd.xlane.f32.xlu0 %v1951
    %v1953 = vpop.xlane.xlu0 %1952
    %v1954 = vsel %vm288, %v1938, 0.0
    %1955 = vadd.xlane.f32.xlu0 %v1954
    %v1956 = vpop.xlane.xlu0 %1955
    %v1957 = vsel %vm288, %v1939, 0.0
    %1958 = vadd.xlane.f32.xlu0 %v1957
    %v1959 = vpop.xlane.xlu0 %1958
    %v1960 = vsel %vm288, %v1940, 0.0
    %1961 = vadd.xlane.f32.xlu0 %v1960
    %v1962 = vpop.xlane.xlu0 %1961
    %v1963 = vsel %vm288, %v1941, 0.0
    %1964 = vadd.xlane.f32.xlu0 %v1963
    %v1965 = vpop.xlane.xlu0 %1964
    %v1966 = vmul.f32 %v1944, %v1917
    %v1967 = vmul.f32 %v1947, %v1917
    %v1968 = vmul.f32 %v1950, %v1917
    %v1969 = vmul.f32 %v1953, %v1917
    %v1970 = vmul.f32 %v1956, %v1917
    %v1971 = vmul.f32 %v1959, %v1917
    %v1972 = vmul.f32 %v1962, %v1917
    %v1973 = vmul.f32 %v1965, %v1917
    %v1974 = vadd.f32 %v1966, 1e-05
    %v1975 = vadd.f32 %v1967, 1e-05
    %v1976 = vadd.f32 %v1968, 1e-05
    %v1977 = vadd.f32 %v1969, 1e-05
    %v1978 = vadd.f32 %v1970, 1e-05
    %v1979 = vadd.f32 %v1971, 1e-05
    %v1980 = vadd.f32 %v1972, 1e-05
    %v1981 = vadd.f32 %v1973, 1e-05
    %v1982 = vrsqrt.pop %v1974
    %v1983 = vrsqrt.pop %v1975
    %v1984 = vrsqrt.pop %v1976
    %v1985 = vrsqrt.pop %v1977
    %v1986 = vrsqrt.pop %v1978
    %v1987 = vrsqrt.pop %v1979
    %v1988 = vrsqrt.pop %v1980
    %v1989 = vrsqrt.pop %v1981
    %v1990 = vmul.f32 %v1926, %v1982
    %v1991 = vmul.f32 %v1927, %v1983
    %v1992 = vmul.f32 %v1928, %v1984
    %v1993 = vmul.f32 %v1929, %v1985
    %v1994 = vmul.f32 %v1930, %v1986
    %v1995 = vmul.f32 %v1931, %v1987
    %v1996 = vmul.f32 %v1932, %v1988
    %v1997 = vmul.f32 %v1933, %v1989
    %v1999 = vlaneseq
    %v2000 = vshrl.u32 %v1999, 7
    %v2001 = vsub.s32 0, %v2000
    %v2002 = vrot.slane %v1891, %v2001
    %v2004 = vmul.f32 %v1990, %v2002
    %v2005 = vmul.f32 %v1991, %v2002
    %v2006 = vmul.f32 %v1992, %v2002
    %v2007 = vmul.f32 %v1993, %v2002
    %v2008 = vmul.f32 %v1994, %v2002
    %v2009 = vmul.f32 %v1995, %v2002
    %v2010 = vmul.f32 %v1996, %v2002
    %v2011 = vmul.f32 %v1997, %v2002
    %v2013 = vlaneseq
    %v2014 = vshrl.u32 %v2013, 7
    %v2015 = vsub.s32 0, %v2014
    %v2016 = vrot.slane %v1892, %v2015
    %v2018 = vadd.f32 %v2004, %v2016
    %v2019 = vadd.f32 %v2005, %v2016
    %v2020 = vadd.f32 %v2006, %v2016
    %v2021 = vadd.f32 %v2007, %v2016
    %v2022 = vadd.f32 %v2008, %v2016
    %v2023 = vadd.f32 %v2009, %v2016
    %v2024 = vadd.f32 %v2010, %v2016
    %v2025 = vadd.f32 %v2011, %v2016
    %v2026 = vtanh.pop %v2018
    %v2027 = vtanh.pop %v2019
    %v2028 = vtanh.pop %v2020
    %v2029 = vtanh.pop %v2021
    %v2030 = vtanh.pop %v2022
    %v2031 = vtanh.pop %v2023
    %v2032 = vtanh.pop %v2024
    %v2033 = vtanh.pop %v2025
    %v2034 = vld [vmem:[#allocation5 + $0x20] sm:$0xf]
    %v2035 = vld [vmem:[#allocation5 + $0x24] sm:$0xf]
    %v2036 = vld [vmem:[#allocation5 + $0x28] sm:$0xf]
    %v2037 = vld [vmem:[#allocation5 + $0x2c] sm:$0xf]
    %v2038 = vld [vmem:[#allocation5 + $0x30] sm:$0xf]
    %v2039 = vld [vmem:[#allocation5 + $0x34] sm:$0xf]
    %v2040 = vld [vmem:[#allocation5 + $0x38] sm:$0xf]
    %v2041 = vld [vmem:[#allocation5 + $0x3c] sm:$0xf]
    %v2042 = vpack.c.bf16 %v2027, %v2026
    %v2043 = vpack.c.bf16 %v2029, %v2028
    %v2044 = vpack.c.bf16 %v2031, %v2030
    %v2045 = vpack.c.bf16 %v2033, %v2032
    %v2046 = vld [vmem:[%s2 + $0xb] sm:$0x1]
    %v2048 = vlaneseq
    %v2049 = vshrl.u32 %v2048, 7
    %v2050 = vsub.s32 0, %v2049
    %v2051 = vrot.slane %v2046, %v2050
    %v2061 = vunpack.c.l.b16 %v2034
    %v2062 = vunpack.c.l.b16 %v2035
    %v2063 = vunpack.c.l.b16 %v2036
    %v2064 = vunpack.c.l.b16 %v2037
    %v2065 = vunpack.c.l.b16 %v2038
    %v2066 = vunpack.c.l.b16 %v2039
    %v2067 = vunpack.c.l.b16 %v2040
    %v2068 = vunpack.c.l.b16 %v2041
    %v2069 = vpack.c.b16 %v2062, %v2061
    %v2070 = vpack.c.b16 %v2064, %v2063
    %v2071 = vpack.c.b16 %v2066, %v2065
    %v2072 = vpack.c.b16 %v2068, %v2067
    %v2078 = vsel %vm288, %v2042, 0
    %v2081 = vsel %vm288, %v2043, 0
    %v2084 = vsel %vm288, %v2044, 0
    %v2087 = vsel %vm288, %v2045, 0
    %2089 = vmatprep.subr.bf16.mxu0 0
    %2090 = vmatpush1.bf16.msra.mxu0 %v2069
    %2091 = vmatprep.subr.bf16.mxu0 0
    %2092 = vmatpush1.bf16.msra.mxu0 %v2070
    %2093 = vmatprep.subr.bf16.mxu0 0
    %2094 = vmatpush1.bf16.msra.mxu0 %v2071
    %2095 = vmatprep.subr.bf16.mxu0 0
    %2096 = vmatpush1.bf16.msra.mxu0 %v2072
    %2097 = vmatprep.subr.bf16.mxu0 0
    %2098 = vmatpush1.bf16.msra.mxu0 0
    %2099 = vmatprep.subr.bf16.mxu0 0
    %2100 = vmatpush1.bf16.msra.mxu0 0
    %2101 = vmatprep.subr.bf16.mxu0 0
    %2102 = vmatpush1.bf16.msra.mxu0 0
    %2103 = vmatprep.subr.bf16.mxu0 0
    %2104 = vmatpush1.bf16.msra.mxu0 0
    %2105 = vmatprep.subr.bf16.mxu0 0
    %2106 = vmatpush1.bf16.msra.mxu0 0
    %2107 = vmatprep.subr.bf16.mxu0 0
    %2108 = vmatpush1.bf16.msra.mxu0 0
    %2109 = vmatprep.subr.bf16.mxu0 0
    %2110 = vmatpush1.bf16.msra.mxu0 0
    %2111 = vmatprep.subr.bf16.mxu0 0
    %2112 = vmatpush1.bf16.msra.mxu0 0
    %2113 = vmatprep.subr.bf16.mxu0 0
    %2114 = vmatpush1.bf16.msra.mxu0 0
    %2115 = vmatprep.subr.bf16.mxu0 0
    %2116 = vmatpush1.bf16.msra.mxu0 0
    %2117 = vmatprep.subr.bf16.mxu0 0
    %2118 = vmatpush1.bf16.msra.mxu0 0
    %2119 = vmatprep.subr.bf16.mxu0 0
    %2120 = vmatpush1.bf16.msra.mxu0 0
    %2121 = vmatprep.mubr.bf16.mxu0 0
    %2122 = vmatmul.mubr.bf16.gmra.mrb[0].mxu0 %v2078
    %v2123 = vpop.f32.mrb[0].mxu0
    %v2124 = vadd.f32 %v2051, %v2123
    %v2125 = vpop.f32.mrb[0].mxu0
    %v2126 = vpop.f32.mrb[0].mxu0
    %v2127 = vadd.f32 %v2051, %v2126
    %v2128 = vpop.f32.mrb[0].mxu0
    %2129 = vmatprep.mubr.bf16.mxu0 0
    %2130 = vmatmul.mubr.bf16.gmra.mrb[0].mxu0 %v2081
    %v2131 = vpop.f32.mrb[0].mxu0
    %v2132 = vadd.f32 %v2051, %v2131
    %v2133 = vpop.f32.mrb[0].mxu0
    %v2134 = vpop.f32.mrb[0].mxu0
    %v2135 = vadd.f32 %v2051, %v2134
    %v2136 = vpop.f32.mrb[0].mxu0
    %2137 = vmatprep.mubr.bf16.mxu0 0
    %2138 = vmatmul.mubr.bf16.gmra.mrb[0].mxu0 %v2084
    %v2139 = vpop.f32.mrb[0].mxu0
    %v2140 = vadd.f32 %v2051, %v2139
    %v2141 = vpop.f32.mrb[0].mxu0
    %v2142 = vpop.f32.mrb[0].mxu0
    %v2143 = vadd.f32 %v2051, %v2142
    %v2144 = vpop.f32.mrb[0].mxu0
    %2145 = vmatprep.mubr.bf16.mxu0 0
    %2146 = vmatmul.mubr.bf16.gmra.mrb[0].mxu0 %v2087
    %v2147 = vpop.f32.mrb[0].mxu0
    %v2148 = vadd.f32 %v2051, %v2147
    %v2149 = vpop.f32.mrb[0].mxu0
    %v2150 = vpop.f32.mrb[0].mxu0
    %v2151 = vadd.f32 %v2051, %v2150
    %v2152 = vpop.f32.mrb[0].mxu0
    %2153 = vdwg.mxu0
    %vm2154 = vcmask 7168
    %v2155 = vsel %vm2154, %v2124, -inf
    %v2156 = vsel %vm2154, %v2127, -inf
    %v2157 = vsel %vm2154, %v2132, -inf
    %v2158 = vsel %vm2154, %v2135, -inf
    %v2159 = vsel %vm2154, %v2140, -inf
    %v2160 = vmax.f32 %v2155, %v2159
    %v2161 = vsel %vm2154, %v2143, -inf
    %v2162 = vmax.f32 %v2156, %v2161
    %v2163 = vsel %vm2154, %v2148, -inf
    %v2164 = vmax.f32 %v2157, %v2163
    %v2165 = vsel %vm2154, %v2151, -inf
    %v2166 = vmax.f32 %v2158, %v2165
    %v2167 = vmax.f32 %v2160, %v2162
    %v2168 = vmax.f32 %v2164, %v2166
    %v2169 = vmax.f32 %v2167, %v2168
    %v2170 = vsub.f32 %v2124, %v2169
    %v2171 = vsub.f32 %v2127, %v2169
    %v2172 = vsub.f32 %v2132, %v2169
    %v2173 = vsub.f32 %v2135, %v2169
    %v2174 = vsub.f32 %v2140, %v2169
    %v2175 = vsub.f32 %v2143, %v2169
    %v2176 = vsub.f32 %v2148, %v2169
    %v2177 = vsub.f32 %v2151, %v2169
    %v2178 = vmul.f32 %v2170, 1.442695
    %v2179 = vpow.pop %v2178
    %v2180 = vmul.f32 %v2171, 1.442695
    %v2181 = vpow.pop %v2180
    %v2182 = vmul.f32 %v2172, 1.442695
    %v2183 = vpow.pop %v2182
    %v2184 = vmul.f32 %v2173, 1.442695
    %v2185 = vpow.pop %v2184
    %v2186 = vmul.f32 %v2174, 1.442695
    %v2187 = vpow.pop %v2186
    %v2188 = vmul.f32 %v2175, 1.442695
    %v2189 = vpow.pop %v2188
    %v2190 = vmul.f32 %v2176, 1.442695
    %v2191 = vpow.pop %v2190
    %v2192 = vmul.f32 %v2177, 1.442695
    %v2193 = vpow.pop %v2192
    %v2194 = vsel %vm2154, %v2179, 0.0
    %v2195 = vsel %vm2154, %v2181, 0.0
    %v2196 = vadd.f32 %v2194, %v2195
    %v2197 = vsel %vm2154, %v2183, 0.0
    %v2198 = vadd.f32 %v2196, %v2197
    %v2199 = vsel %vm2154, %v2185, 0.0
    %v2200 = vadd.f32 %v2198, %v2199
    %v2201 = vsel %vm2154, %v2187, 0.0
    %v2202 = vadd.f32 %v2200, %v2201
    %v2203 = vsel %vm2154, %v2189, 0.0
    %v2204 = vadd.f32 %v2202, %v2203
    %v2205 = vsel %vm2154, %v2191, 0.0
    %v2206 = vadd.f32 %v2204, %v2205
    %v2207 = vsel %vm2154, %v2193, 0.0
    %v2208 = vadd.f32 %v2206, %v2207
    %v2209 = vrcp.pop %v2208
    %v2210 = vmul.f32 %v2179, %v2209
    %v2211 = vmul.f32 %v2181, %v2209
    %v2212 = vmul.f32 %v2183, %v2209
    %v2213 = vmul.f32 %v2185, %v2209
    %v2214 = vmul.f32 %v2187, %v2209
    %v2215 = vmul.f32 %v2189, %v2209
    %v2216 = vmul.f32 %v2191, %v2209
    %v2217 = vmul.f32 %v2193, %v2209
    %2219 = vset.pattern.permute.xlu0 0
    %2220 = vperm.xlu0 %2219, %v2210
    %v2221 = vpop.permute.xlu0 %2220
    %2224 = vset.pattern.permute.xlu0 0
    %2225 = vperm.xlu0 %2224, %v2211
    %v2226 = vpop.permute.xlu0 %2225
    %2229 = vset.pattern.permute.xlu0 0
    %2230 = vperm.xlu0 %2229, %v2212
    %v2231 = vpop.permute.xlu0 %2230
    %2234 = vset.pattern.permute.xlu0 0
    %2235 = vperm.xlu0 %2234, %v2213
    %v2236 = vpop.permute.xlu0 %2235
    %2239 = vset.pattern.permute.xlu0 0
    %2240 = vperm.xlu0 %2239, %v2214
    %v2241 = vpop.permute.xlu0 %2240
    %2244 = vset.pattern.permute.xlu0 0
    %2245 = vperm.xlu0 %2244, %v2215
    %v2246 = vpop.permute.xlu0 %2245
    %2249 = vset.pattern.permute.xlu0 0
    %2250 = vperm.xlu0 %2249, %v2216
    %v2251 = vpop.permute.xlu0 %2250
    %2254 = vset.pattern.permute.xlu0 0
    %2255 = vperm.xlu0 %2254, %v2217
    %v2256 = vpop.permute.xlu0 %2255
    %v2258 = vmul.f32 %v2221, %v1763
    %v2259 = vmul.f32 %v2226, %v1764
    %v2260 = vmul.f32 %v2231, %v1765
    %v2261 = vmul.f32 %v2236, %v1766
    %v2262 = vmul.f32 %v2241, %v1767
    %v2263 = vmul.f32 %v2246, %v1768
    %v2264 = vmul.f32 %v2251, %v1769
    %v2265 = vmul.f32 %v2256, %v1770
    %v2266 = vsel %vm288, %v2258, 0.0
    %v2267 = vsel %vm288, %v2259, 0.0
    %v2268 = vadd.f32 %v2266, %v2267
    %v2269 = vsel %vm288, %v2260, 0.0
    %v2270 = vadd.f32 %v2268, %v2269
    %v2271 = vsel %vm288, %v2261, 0.0
    %v2272 = vadd.f32 %v2270, %v2271
    %v2273 = vsel %vm288, %v2262, 0.0
    %v2274 = vadd.f32 %v2272, %v2273
    %v2275 = vsel %vm288, %v2263, 0.0
    %v2276 = vadd.f32 %v2274, %v2275
    %v2277 = vsel %vm288, %v2264, 0.0
    %v2278 = vadd.f32 %v2276, %v2277
    %v2279 = vsel %vm288, %v2265, 0.0
    %v2280 = vadd.f32 %v2278, %v2279
    %v2281 = vld [vmem:[#allocation5 + $0x40] sm:$0xf]
    %v2282 = vld [vmem:[#allocation5 + $0x44] sm:$0xf]
    %v2283 = vld [vmem:[#allocation5 + $0x48] sm:$0xf]
    %v2284 = vld [vmem:[#allocation5 + $0x4c] sm:$0xf]
    %v2285 = vld [vmem:[#allocation5 + $0x50] sm:$0xf]
    %v2286 = vld [vmem:[#allocation5 + $0x54] sm:$0xf]
    %v2287 = vld [vmem:[#allocation5 + $0x58] sm:$0xf]
    %v2288 = vld [vmem:[#allocation5 + $0x5c] sm:$0xf]
    %v2289 = vpack.c.bf16 %v2280, %v2280
    %v2298 = vunpack.c.l.b16 %v2281
    %v2299 = vunpack.c.l.b16 %v2282
    %v2300 = vunpack.c.l.b16 %v2283
    %v2301 = vunpack.c.l.b16 %v2284
    %v2302 = vunpack.c.l.b16 %v2285
    %v2303 = vunpack.c.l.b16 %v2286
    %v2304 = vunpack.c.l.b16 %v2287
    %v2305 = vunpack.c.l.b16 %v2288
    %v2306 = vpack.c.b16 %v2299, %v2298
    %v2307 = vpack.c.b16 %v2301, %v2300
    %v2308 = vpack.c.b16 %v2303, %v2302
    %v2309 = vpack.c.b16 %v2305, %v2304
    %v2315 = vsel %vm288, %v2289, 0
    %2317 = vmatprep.subr.bf16.mxu0 0
    %2318 = vmatpush1.bf16.msra.mxu0 %v2306
    %2319 = vmatprep.subr.bf16.mxu0 0
    %2320 = vmatpush1.bf16.msra.mxu0 %v2307
    %2321 = vmatprep.subr.bf16.mxu0 0
    %2322 = vmatpush1.bf16.msra.mxu0 %v2308
    %2323 = vmatprep.subr.bf16.mxu0 0
    %2324 = vmatpush1.bf16.msra.mxu0 %v2309
    %2325 = vmatprep.subr.bf16.mxu0 0
    %2326 = vmatpush1.bf16.msra.mxu0 0
    %2327 = vmatprep.subr.bf16.mxu0 0
    %2328 = vmatpush1.bf16.msra.mxu0 0
    %2329 = vmatprep.subr.bf16.mxu0 0
    %2330 = vmatpush1.bf16.msra.mxu0 0
    %2331 = vmatprep.subr.bf16.mxu0 0
    %2332 = vmatpush1.bf16.msra.mxu0 0
    %2333 = vmatprep.subr.bf16.mxu0 0
    %2334 = vmatpush1.bf16.msra.mxu0 0
    %2335 = vmatprep.subr.bf16.mxu0 0
    %2336 = vmatpush1.bf16.msra.mxu0 0
    %2337 = vmatprep.subr.bf16.mxu0 0
    %2338 = vmatpush1.bf16.msra.mxu0 0
    %2339 = vmatprep.subr.bf16.mxu0 0
    %2340 = vmatpush1.bf16.msra.mxu0 0
    %2341 = vmatprep.subr.bf16.mxu0 0
    %2342 = vmatpush1.bf16.msra.mxu0 0
    %2343 = vmatprep.subr.bf16.mxu0 0
    %2344 = vmatpush1.bf16.msra.mxu0 0
    %2345 = vmatprep.subr.bf16.mxu0 0
    %2346 = vmatpush1.bf16.msra.mxu0 0
    %2347 = vmatprep.subr.bf16.mxu0 0
    %2348 = vmatpush1.bf16.msra.mxu0 0
    %2349 = vmatprep.mubr.bf16.mxu0 0
    %2350 = vmatmul.mubr.bf16.gmra.mrb[0].mxu0 %v2315
    %v2351 = vpop.f32.mrb[0].mxu0
    %v2352 = vadd.f32 0.0, %v2351
    %v2353 = vpop.f32.mrb[0].mxu0
    %v2354 = vpop.f32.mrb[0].mxu0
    %v2355 = vpop.f32.mrb[0].mxu0
    %2356 = vdwg.mxu0
    %v2357 = vld [vmem:[%s2 + $0xc] sm:$0x1]
    %v2359 = vlaneseq
    %v2360 = vshrl.u32 %v2359, 7
    %v2361 = vsub.s32 0, %v2360
    %v2362 = vrot.slane %v2357, %v2361
    %v2364 = vadd.f32 %v2352, %v2362
    %v2365 = vld [vmem:[%s2 + $0xd] sm:$0x1]
    %v2366 = vld [vmem:[%s2 + $0xe] sm:$0x1]
    %v2367 = vsel %vm288, %v2364, 0.0
    %2368 = vadd.xlane.f32.xlu0 %v2367
    %v2369 = vpop.xlane.xlu0 %2368
    %v2370 = vmul.f32 %v2369, %v1917
    %v2371 = vsub.f32 %v2364, %v2370
    %v2372 = vmul.f32 %v2371, %v2371
    %v2373 = vsel %vm288, %v2372, 0.0
    %2374 = vadd.xlane.f32.xlu0 %v2373
    %v2375 = vpop.xlane.xlu0 %2374
    %v2376 = vmul.f32 %v2375, %v1917
    %v2377 = vadd.f32 %v2376, 1e-05
    %v2378 = vrsqrt.pop %v2377
    %v2379 = vmul.f32 %v2371, %v2378
    %v2381 = vlaneseq
    %v2382 = vshrl.u32 %v2381, 7
    %v2383 = vsub.s32 0, %v2382
    %v2384 = vrot.slane %v2365, %v2383
    %v2386 = vmul.f32 %v2379, %v2384
    %v2388 = vlaneseq
    %v2389 = vshrl.u32 %v2388, 7
    %v2390 = vsub.s32 0, %v2389
    %v2391 = vrot.slane %v2366, %v2390
    %v2393 = vadd.f32 %v2386, %v2391
    %v2394 = vmax.f32 %v2393, 0.0
    %v2395 = vld [vmem:[%s2 + $0xf] sm:$0x1]
    %v2397 = vlaneseq
    %v2398 = vshrl.u32 %v2397, 7
    %v2399 = vsub.s32 0, %v2398
    %v2400 = vrot.slane %v2395, %v2399
    %2401 = vrot.lane.b32.xlu0 %v2400, 64
    %v2402 = vpop.permute.xlu0 %2401
    %v2404 = vadd.f32 %v2352, %v2402
    %v2405 = vld [vmem:[%s2 + $0x10] sm:$0x1]
    %v2406 = vld [vmem:[%s2 + $0x11] sm:$0x1]
    %2408 = vrot.lane.b32.xlu0 %v2404, 64
    %v2409 = vpop.permute.xlu0 %2408
    %v2411 = vsel %vm839, %v2409, 0.0
    %2412 = vadd.xlane.f32.xlu0 %v2411
    %v2413 = vpop.xlane.xlu0 %2412
    %v2414 = vrcp.pop 32.0
    %v2415 = vmul.f32 %v2413, %v2414
    %v2416 = vsub.f32 %v2404, %v2415
    %v2417 = vmul.f32 %v2416, %v2416
    %2419 = vrot.lane.b32.xlu0 %v2417, 64
    %v2420 = vpop.permute.xlu0 %2419
    %v2422 = vsel %vm839, %v2420, 0.0
    %2423 = vadd.xlane.f32.xlu0 %v2422
    %v2424 = vpop.xlane.xlu0 %2423
    %v2425 = vmul.f32 %v2424, %v2414
    %v2426 = vadd.f32 %v2425, 1e-05
    %v2427 = vrsqrt.pop %v2426
    %v2428 = vmul.f32 %v2416, %v2427
    %v2430 = vlaneseq
    %v2431 = vshrl.u32 %v2430, 7
    %v2432 = vsub.s32 0, %v2431
    %v2433 = vrot.slane %v2405, %v2432
    %2434 = vrot.lane.b32.xlu0 %v2433, 64
    %v2435 = vpop.permute.xlu0 %2434
    %v2437 = vmul.f32 %v2428, %v2435
    %v2439 = vlaneseq
    %v2440 = vshrl.u32 %v2439, 7
    %v2441 = vsub.s32 0, %v2440
    %v2442 = vrot.slane %v2406, %v2441
    %2443 = vrot.lane.b32.xlu0 %v2442, 64
    %v2444 = vpop.permute.xlu0 %2443
    %v2446 = vadd.f32 %v2437, %v2444
    %v2447 = vmax.f32 %v2446, 0.0
    %v2448 = vld [vmem:[#allocation5 + $0x60] sm:$0xf]
    %v2449 = vld [vmem:[#allocation5 + $0x64] sm:$0xf]
    %v2450 = vld [vmem:[#allocation5 + $0x68] sm:$0xf]
    %v2451 = vld [vmem:[#allocation5 + $0x6c] sm:$0xf]
    %v2452 = vld [vmem:[#allocation5 + $0x70] sm:$0xf]
    %v2453 = vld [vmem:[#allocation5 + $0x74] sm:$0xf]
    %v2454 = vld [vmem:[#allocation5 + $0x78] sm:$0xf]
    %v2455 = vld [vmem:[#allocation5 + $0x7c] sm:$0xf]
    %v2456 = vpack.c.bf16 %v2394, %v2394
    %v2457 = vld [vmem:[%s2 + $0x12] sm:$0x1]
    %v2459 = vlaneseq
    %v2460 = vshrl.u32 %v2459, 7
    %v2461 = vsub.s32 0, %v2460
    %v2462 = vrot.slane %v2457, %v2461
    %v2472 = vunpack.c.l.b16 %v2448
    %v2473 = vunpack.c.l.b16 %v2449
    %v2474 = vunpack.c.l.b16 %v2450
    %v2475 = vunpack.c.l.b16 %v2451
    %v2476 = vunpack.c.l.b16 %v2452
    %v2477 = vunpack.c.l.b16 %v2453
    %v2478 = vunpack.c.l.b16 %v2454
    %v2479 = vunpack.c.l.b16 %v2455
    %v2480 = vpack.c.b16 %v2473, %v2472
    %v2481 = vpack.c.b16 %v2475, %v2474
    %v2482 = vpack.c.b16 %v2477, %v2476
    %v2483 = vpack.c.b16 %v2479, %v2478
    %v2489 = vsel %vm288, %v2456, 0
    %2491 = vmatprep.subr.bf16.mxu0 0
    %2492 = vmatpush1.bf16.msra.mxu0 %v2480
    %2493 = vmatprep.subr.bf16.mxu0 0
    %2494 = vmatpush1.bf16.msra.mxu0 %v2481
    %2495 = vmatprep.subr.bf16.mxu0 0
    %2496 = vmatpush1.bf16.msra.mxu0 %v2482
    %2497 = vmatprep.subr.bf16.mxu0 0
    %2498 = vmatpush1.bf16.msra.mxu0 %v2483
    %2499 = vmatprep.subr.bf16.mxu0 0
    %2500 = vmatpush1.bf16.msra.mxu0 0
    %2501 = vmatprep.subr.bf16.mxu0 0
    %2502 = vmatpush1.bf16.msra.mxu0 0
    %2503 = vmatprep.subr.bf16.mxu0 0
    %2504 = vmatpush1.bf16.msra.mxu0 0
    %2505 = vmatprep.subr.bf16.mxu0 0
    %2506 = vmatpush1.bf16.msra.mxu0 0
    %2507 = vmatprep.subr.bf16.mxu0 0
    %2508 = vmatpush1.bf16.msra.mxu0 0
    %2509 = vmatprep.subr.bf16.mxu0 0
    %2510 = vmatpush1.bf16.msra.mxu0 0
    %2511 = vmatprep.subr.bf16.mxu0 0
    %2512 = vmatpush1.bf16.msra.mxu0 0
    %2513 = vmatprep.subr.bf16.mxu0 0
    %2514 = vmatpush1.bf16.msra.mxu0 0
    %2515 = vmatprep.subr.bf16.mxu0 0
    %2516 = vmatpush1.bf16.msra.mxu0 0
    %2517 = vmatprep.subr.bf16.mxu0 0
    %2518 = vmatpush1.bf16.msra.mxu0 0
    %2519 = vmatprep.subr.bf16.mxu0 0
    %2520 = vmatpush1.bf16.msra.mxu0 0
    %2521 = vmatprep.subr.bf16.mxu0 0
    %2522 = vmatpush1.bf16.msra.mxu0 0
    %2523 = vmatprep.mubr.bf16.mxu0 0
    %2524 = vmatmul.mubr.bf16.gmra.mrb[0].mxu0 %v2489
    %v2525 = vpop.f32.mrb[0].mxu0
    %v2526 = vadd.f32 %v2462, %v2525
    %v2527 = vpop.f32.mrb[0].mxu0
    %v2528 = vpop.f32.mrb[0].mxu0
    %v2529 = vpop.f32.mrb[0].mxu0
    %2530 = vdwg.mxu0
    %v2531 = vld [vmem:[%s2 + $0x13] sm:$0x1]
    %v2532 = vld [vmem:[%s2 + $0x14] sm:$0x1]
    %v2533 = vsel %vm839, %v2526, 0.0
    %2534 = vadd.xlane.f32.xlu0 %v2533
    %v2535 = vpop.xlane.xlu0 %2534
    %v2536 = vmul.f32 %v2535, %v2414
    %v2537 = vsub.f32 %v2526, %v2536
    %v2538 = vmul.f32 %v2537, %v2537
    %v2539 = vsel %vm839, %v2538, 0.0
    %2540 = vadd.xlane.f32.xlu0 %v2539
    %v2541 = vpop.xlane.xlu0 %2540
    %v2542 = vmul.f32 %v2541, %v2414
    %v2543 = vadd.f32 %v2542, 1e-05
    %v2544 = vrsqrt.pop %v2543
    %v2545 = vmul.f32 %v2537, %v2544
    %v2547 = vlaneseq
    %v2548 = vshrl.u32 %v2547, 7
    %v2549 = vsub.s32 0, %v2548
    %v2550 = vrot.slane %v2531, %v2549
    %v2552 = vmul.f32 %v2545, %v2550
    %v2554 = vlaneseq
    %v2555 = vshrl.u32 %v2554, 7
    %v2556 = vsub.s32 0, %v2555
    %v2557 = vrot.slane %v2532, %v2556
    %v2559 = vadd.f32 %v2552, %v2557
    %v2560 = vmax.f32 %v2559, 0.0
    %2562 = vrot.lane.b32.xlu0 %v2447, 96
    %v2563 = vpop.permute.xlu0 %2562
    %v2565 = vsel %vm839, %v2560, %v2563
    %v2566 = vld [vmem:[#allocation5 + $0x80] sm:$0xf]
    %v2567 = vld [vmem:[#allocation5 + $0x84] sm:$0xf]
    %v2568 = vld [vmem:[#allocation5 + $0x88] sm:$0xf]
    %v2569 = vld [vmem:[#allocation5 + $0x8c] sm:$0xf]
    %v2570 = vld [vmem:[#allocation5 + $0x90] sm:$0xf]
    %v2571 = vld [vmem:[#allocation5 + $0x94] sm:$0xf]
    %v2572 = vld [vmem:[#allocation5 + $0x98] sm:$0xf]
    %v2573 = vld [vmem:[#allocation5 + $0x9c] sm:$0xf]
    %v2574 = vpack.c.bf16 %v2565, %v2565
    %v2575 = vld [vmem:[%s2 + $0x15] sm:$0x1]
    %v2577 = vlaneseq
    %v2578 = vshrl.u32 %v2577, 7
    %v2579 = vsub.s32 0, %v2578
    %v2580 = vrot.slane %v2575, %v2579
    %v2590 = vunpack.c.l.b16 %v2566
    %v2591 = vunpack.c.l.b16 %v2567
    %v2592 = vunpack.c.l.b16 %v2568
    %v2593 = vunpack.c.l.b16 %v2569
    %v2594 = vunpack.c.l.b16 %v2570
    %v2595 = vunpack.c.l.b16 %v2571
    %v2596 = vunpack.c.l.b16 %v2572
    %v2597 = vunpack.c.l.b16 %v2573
    %v2598 = vpack.c.b16 %v2591, %v2590
    %v2599 = vpack.c.b16 %v2593, %v2592
    %v2600 = vpack.c.b16 %v2595, %v2594
    %v2601 = vpack.c.b16 %v2597, %v2596
    %v2607 = vsel %vm288, %v2574, 0
    %2609 = vmatprep.subr.bf16.mxu0 0
    %2610 = vmatpush1.bf16.msra.mxu0 %v2598
    %2611 = vmatprep.subr.bf16.mxu0 0
    %2612 = vmatpush1.bf16.msra.mxu0 %v2599
    %2613 = vmatprep.subr.bf16.mxu0 0
    %2614 = vmatpush1.bf16.msra.mxu0 %v2600
    %2615 = vmatprep.subr.bf16.mxu0 0
    %2616 = vmatpush1.bf16.msra.mxu0 %v2601
    %2617 = vmatprep.subr.bf16.mxu0 0
    %2618 = vmatpush1.bf16.msra.mxu0 0
    %2619 = vmatprep.subr.bf16.mxu0 0
    %2620 = vmatpush1.bf16.msra.mxu0 0
    %2621 = vmatprep.subr.bf16.mxu0 0
    %2622 = vmatpush1.bf16.msra.mxu0 0
    %2623 = vmatprep.subr.bf16.mxu0 0
    %2624 = vmatpush1.bf16.msra.mxu0 0
    %2625 = vmatprep.subr.bf16.mxu0 0
    %2626 = vmatpush1.bf16.msra.mxu0 0
    %2627 = vmatprep.subr.bf16.mxu0 0
    %2628 = vmatpush1.bf16.msra.mxu0 0
    %2629 = vmatprep.subr.bf16.mxu0 0
    %2630 = vmatpush1.bf16.msra.mxu0 0
    %2631 = vmatprep.subr.bf16.mxu0 0
    %2632 = vmatpush1.bf16.msra.mxu0 0
    %2633 = vmatprep.subr.bf16.mxu0 0
    %2634 = vmatpush1.bf16.msra.mxu0 0
    %2635 = vmatprep.subr.bf16.mxu0 0
    %2636 = vmatpush1.bf16.msra.mxu0 0
    %2637 = vmatprep.subr.bf16.mxu0 0
    %2638 = vmatpush1.bf16.msra.mxu0 0
    %2639 = vmatprep.subr.bf16.mxu0 0
    %2640 = vmatpush1.bf16.msra.mxu0 0
    %2641 = vmatprep.mubr.bf16.mxu0 0
    %2642 = vmatmul.mubr.bf16.gmra.mrb[0].mxu0 %v2607
    %v2643 = vpop.f32.mrb[0].mxu0
    %v2644 = vadd.f32 %v2580, %v2643
    %v2645 = vpop.f32.mrb[0].mxu0
    %v2646 = vpop.f32.mrb[0].mxu0
    %v2647 = vpop.f32.mrb[0].mxu0
    %2648 = vdwg.mxu0
    %v2649 = vmax.f32 %v2644, 0.0
    %v2650 = vld [vmem:[#allocation5 + $0xa0] sm:$0xf]
    %v2651 = vld [vmem:[#allocation5 + $0xa4] sm:$0xf]
    %v2652 = vld [vmem:[#allocation5 + $0xa8] sm:$0xf]
    %v2653 = vld [vmem:[#allocation5 + $0xac] sm:$0xf]
    %v2654 = vld [vmem:[#allocation5 + $0xb0] sm:$0xf]
    %v2655 = vld [vmem:[#allocation5 + $0xb4] sm:$0xf]
    %v2656 = vld [vmem:[#allocation5 + $0xb8] sm:$0xf]
    %v2657 = vld [vmem:[#allocation5 + $0xbc] sm:$0xf]
    %v2658 = vld [vmem:[#allocation5 + $0xc0] sm:$0xf]
    %v2659 = vld [vmem:[#allocation5 + $0xc4] sm:$0xf]
    %v2660 = vld [vmem:[#allocation5 + $0xc8] sm:$0xf]
    %v2661 = vld [vmem:[#allocation5 + $0xcc] sm:$0xf]
    %v2662 = vld [vmem:[#allocation5 + $0xd0] sm:$0xf]
    %v2663 = vld [vmem:[#allocation5 + $0xd4] sm:$0xf]
    %v2664 = vld [vmem:[#allocation5 + $0xd8] sm:$0xf]
    %v2665 = vld [vmem:[#allocation5 + $0xdc] sm:$0xf]
    %v2666 = vpack.c.bf16 %v2649, %v2649
    %v2667 = vld [vmem:[%s2 + $0x16] sm:$0x1]
    %v2669 = vlaneseq
    %v2670 = vshrl.u32 %v2669, 7
    %v2671 = vsub.s32 0, %v2670
    %v2672 = vrot.slane %v2667, %v2671
    %v2690 = vunpack.c.l.b16 %v2650
    %v2691 = vunpack.c.l.b16 %v2651
    %v2692 = vunpack.c.l.b16 %v2652
    %v2693 = vunpack.c.l.b16 %v2653
    %v2694 = vunpack.c.l.b16 %v2654
    %v2695 = vunpack.c.l.b16 %v2655
    %v2696 = vunpack.c.l.b16 %v2656
    %v2697 = vunpack.c.l.b16 %v2657
    %v2698 = vunpack.c.l.b16 %v2658
    %v2699 = vunpack.c.l.b16 %v2659
    %v2700 = vunpack.c.l.b16 %v2660
    %v2701 = vunpack.c.l.b16 %v2661
    %v2702 = vunpack.c.l.b16 %v2662
    %v2703 = vunpack.c.l.b16 %v2663
    %v2704 = vunpack.c.l.b16 %v2664
    %v2705 = vunpack.c.l.b16 %v2665
    %v2706 = vpack.c.b16 %v2691, %v2690
    %v2707 = vpack.c.b16 %v2693, %v2692
    %v2708 = vpack.c.b16 %v2695, %v2694
    %v2709 = vpack.c.b16 %v2697, %v2696
    %v2710 = vpack.c.b16 %v2699, %v2698
    %v2711 = vpack.c.b16 %v2701, %v2700
    %v2712 = vpack.c.b16 %v2703, %v2702
    %v2713 = vpack.c.b16 %v2705, %v2704
    %2722 = vmatprep.subr.bf16.mxu0 0
    %2723 = vmatpush1.bf16.msra.mxu0 %v2706
    %2724 = vmatprep.subr.bf16.mxu0 0
    %2725 = vmatpush1.bf16.msra.mxu0 %v2707
    %2726 = vmatprep.subr.bf16.mxu0 0
    %2727 = vmatpush1.bf16.msra.mxu0 %v2708
    %2728 = vmatprep.subr.bf16.mxu0 0
    %2729 = vmatpush1.bf16.msra.mxu0 %v2709
    %2730 = vmatprep.subr.bf16.mxu0 0
    %2731 = vmatpush1.bf16.msra.mxu0 %v2710
    %2732 = vmatprep.subr.bf16.mxu0 0
    %2733 = vmatpush1.bf16.msra.mxu0 %v2711
    %2734 = vmatprep.subr.bf16.mxu0 0
    %2735 = vmatpush1.bf16.msra.mxu0 %v2712
    %2736 = vmatprep.subr.bf16.mxu0 0
    %2737 = vmatpush1.bf16.msra.mxu0 %v2713
    %2738 = vmatprep.subr.bf16.mxu0 0
    %2739 = vmatpush1.bf16.msra.mxu0 0
    %2740 = vmatprep.subr.bf16.mxu0 0
    %2741 = vmatpush1.bf16.msra.mxu0 0
    %2742 = vmatprep.subr.bf16.mxu0 0
    %2743 = vmatpush1.bf16.msra.mxu0 0
    %2744 = vmatprep.subr.bf16.mxu0 0
    %2745 = vmatpush1.bf16.msra.mxu0 0
    %2746 = vmatprep.subr.bf16.mxu0 0
    %2747 = vmatpush1.bf16.msra.mxu0 0
    %2748 = vmatprep.subr.bf16.mxu0 0
    %2749 = vmatpush1.bf16.msra.mxu0 0
    %2750 = vmatprep.subr.bf16.mxu0 0
    %2751 = vmatpush1.bf16.msra.mxu0 0
    %2752 = vmatprep.subr.bf16.mxu0 0
    %2753 = vmatpush1.bf16.msra.mxu0 0
    %2754 = vmatprep.mubr.bf16.mxu0 0
    %2755 = vmatmul.mubr.bf16.gmra.mrb[0].mxu0 %v2666
    %v2756 = vpop.f32.mrb[0].mxu0
    %v2757 = vadd.f32 %v2672, %v2756
    %v2758 = vpop.f32.mrb[0].mxu0
    %v2759 = vpop.f32.mrb[0].mxu0
    %v2760 = vpop.f32.mrb[0].mxu0
    %2761 = vdwg.mxu0
    %vm2762 = vcmask 48128
    %2763 = vst.msk [vmem:[#allocation7] sm:$0xff] %vm2762, %v2757
    // Predicated region
    $region26: #{specialized_model_forward.1} parent=1 // pred_check
      _
    $region27: #{specialized_model_forward.1} parent=1 // pred_check_branch
      %2765 = sbr.rel (0) target = $region29
    $region28: #{specialized_model_forward.1} parent=1 // pred_region
      %s2767 = ssub.s32 128, 128
      %2768 = vsyncadd [#allocation4], %s2767
      %s2770 = sshll.u32 [#allocation7], 4
      %s2771 = int_to_ptr.vmem [resolvable:$true] %s2770
      %2773 = dma.vmem_to_hbm [thread:$0]  %s2771, 128, %s4, [#allocation4]
    $region29: #{specialized_model_forward.1} parent=1 // pred_fallthru
      _
    // Predicated region
    $region30: #{specialized_model_forward.1} parent=1 // pred_check
      _
    $region31: #{specialized_model_forward.1} parent=1 // pred_check_branch
      %2775 = sbr.rel (0) target = $region33
    $region32: #{specialized_model_forward.1} parent=1 // pred_region
      %2776 = dma.done [#allocation4], 128
    $region33: #{specialized_model_forward.1} parent=1 // pred_fallthru
      _
    %2777 = vsyncpa [#allocation3], 1
    %2778 = vsyncpa [#allocation6], 1
    %2779 = vsyncpa [#allocation4], 1

</llo_original>
